<compile_context>
chip_gen: v6e
topology: v6e:2x2x1
jax: 0.10.0
libtpu: 0.0.40
codegen_flags: <defaults>
</compile_context>

<pallas_src>
import jax
import jax.numpy as jnp
from jax.experimental import pallas as pl
from jax.experimental.pallas import tpu as pltpu

# ---------------- config (small, TPU-aligned) ----------------
VOCAB = 50          # input_size
E = 300             # embedding dim (fixed to 300 in the module)
H = 128             # hidden_size  (== CA_NET c_dim here)
N_LAYERS = 2        # n_layers (kernel structure specialized to 2)
B = 8               # batch (fills the 8-sublane vreg dimension)
T = 8               # sequence length


# ---------------- Pallas kernel ----------------
def encoder_rnn_kernel(gi0_ref, eps_ref, h0_ref,
                       w_hh0_ref, w_cat1_ref,
                       b_rz_ref, b_in_ref, b_hn_ref,
                       w_fc_ref, b_fc_ref,
                       hid_out_ref, c_code_ref, mu_ref, logvar_ref,
                       top_scratch):
    H2 = 2 * H
    H3 = 3 * H

    # ---- hoisted weight loads: read once, reused by all T unrolled steps ----
    w_hh0 = w_hh0_ref[...]        # (H, 3H)  bf16, layer-0 hidden projection
    w_cat1 = w_cat1_ref[...]      # (2H, 4H) bf16, fused layer-1 weight
    w_fc = w_fc_ref[...]          # (H, 2H)  bf16, CA_NET fc

    # ---- hoisted bias broadcasts (emitted ONCE, not T*L times) ----
    b_rz0 = jnp.broadcast_to(b_rz_ref[0], (B, H2))
    b_rz1 = jnp.broadcast_to(b_rz_ref[1], (B, H2))
    b_in0 = jnp.broadcast_to(b_in_ref[0], (B, H))
    b_in1 = jnp.broadcast_to(b_in_ref[1], (B, H))
    b_hn0 = jnp.broadcast_to(b_hn_ref[0], (B, H))
    b_hn1 = jnp.broadcast_to(b_hn_ref[1], (B, H))
    b_fc = jnp.broadcast_to(b_fc_ref[...], (T * B, H2))

    h0 = h0_ref[0]   # (B, H) f32 recurrent state, layer 0
    h1 = h0_ref[1]   # (B, H) f32 recurrent state, layer 1

    # Fully-unrolled recurrence (T is tiny) -> one straight-line region.
    for t in range(T):
        # ----- layer 0: input projection is precomputed (gi0); only the hidden
        #       projection sits on the serial path -----
        gi0 = gi0_ref[t]                                              # (B, 3H)
        gh0 = jnp.dot(h0.astype(jnp.bfloat16), w_hh0,
                      preferred_element_type=jnp.float32)             # (B, 3H)
        rz0 = jax.nn.sigmoid(gi0[:, :H2] + gh0[:, :H2] + b_rz0)
        r0 = rz0[:, :H]
        z0 = rz0[:, H:]
        n0 = jnp.tanh(gi0[:, H2:] + b_in0 + r0 * (gh0[:, H2:] + b_hn0))
        h0 = (1.0 - z0) * n0 + z0 * h0

        # ----- layer 1: gi and gh fused into ONE K=256 matmul.
        # W_cat1 column blocks: [0:2H]=gi_rz+gh_rz, [2H:3H]=gi_n, [3H:4H]=gh_n
        # (zero-padded), so the r * gh_n structure of the n gate is exact. -----
        x_cat = jnp.concatenate(
            [h0.astype(jnp.bfloat16), h1.astype(jnp.bfloat16)], axis=1)  # (B, 2H)
        g1 = jnp.dot(x_cat, w_cat1, preferred_element_type=jnp.float32)  # (B, 4H)
        rz1 = jax.nn.sigmoid(g1[:, :H2] + b_rz1)
        r1 = rz1[:, :H]
        z1 = rz1[:, H:]
        n1 = jnp.tanh(g1[:, H2:H3] + b_in1 + r1 * (g1[:, H3:] + b_hn1))
        h1 = (1.0 - z1) * n1 + z1 * h1

        # top-layer output straight into VMEM scratch (static slice: t is Python)
        top_scratch[pl.ds(t * B, B), :] = h1

    # Final hidden state (L, B, H), written unconditionally.
    hid_out_ref[0] = h0
    hid_out_ref[1] = h1

    # ---- CA_NET head, batched over every timestep: one (T*B,H)@(H,2H) matmul ----
    pre = jnp.dot(top_scratch[...].astype(jnp.bfloat16), w_fc,
                  preferred_element_type=jnp.float32) + b_fc
    act = jnp.maximum(pre, 0.0).reshape(T, B, H2)
    mu = act[:, :, :H]
    logvar = act[:, :, H:]
    std = jnp.exp(0.5 * logvar)
    c_code_ref[...] = eps_ref[...] * std + mu
    mu_ref[...] = mu
    logvar_ref[...] = logvar


# ---------------- weight prep (done once, off the hot path) ----------------
def prepare_params(params):
    (emb_table, w_ih0, w_ih_rest, w_hh, b_ih, b_hh, w_fc, b_fc) = params
    H2 = 2 * H

    # Fold embedding lookup + layer-0 input projection into ONE gather table.
    emb_proj = emb_table @ w_ih0                              # (VOCAB, 3H) f32

    # Fused layer-1 weight (2H, 4H): columns [rz | gi_n | gh_n], zero-padded so
    # the x-rows never touch the gh_n block and the h-rows never touch gi_n.
    w_ih1 = w_ih_rest[0]
    w_hh1 = w_hh[1]
    zeros = jnp.zeros((H, H), jnp.float32)
    w_cat1 = jnp.concatenate(
        [jnp.concatenate([w_ih1[:, :H2], w_ih1[:, H2:], zeros], axis=1),
         jnp.concatenate([w_hh1[:, :H2], zeros, w_hh1[:, H2:]], axis=1)],
        axis=0)                                               # (2H, 4H)

    # r/z biases only ever appear as (b_ih + b_hh): pre-combine.  n-gate biases
    # stay split because b_hn sits inside the r * (...) term.
    b_rz = (b_ih[:, :H2] + b_hh[:, :H2])[:, None, :]          # (L, 1, 2H)
    b_in = b_ih[:, H2:][:, None, :]                           # (L, 1, H)
    b_hn = b_hh[:, H2:][:, None, :]                           # (L, 1, H)

    return dict(
        emb_proj=emb_proj,
        w_hh0=w_hh[0].astype(jnp.bfloat16),
        w_cat1=w_cat1.astype(jnp.bfloat16),
        b_rz=b_rz, b_in=b_in, b_hn=b_hn,
        w_fc=w_fc.astype(jnp.bfloat16),
        b_fc=b_fc,
    )


# ---------------- wrapper ----------------
def encoder_rnn_forward(word_inputs, hidden, eps, prepped):
    """word_inputs: (B, T) int32; hidden: (L, B, H); eps: (T, B, H)."""
    # Embedding + layer-0 projection == a 64-row gather of the folded table,
    # then seq-major transpose -> (T, B, 3H).  No separate XLA matmul.
    gi0 = jnp.take(prepped["emb_proj"], word_inputs, axis=0).transpose(1, 0, 2)

    grid_spec = pltpu.PrefetchScalarGridSpec(
        num_scalar_prefetch=0,
        grid=(1,),   # single invocation: entire working set (<1 MiB) VMEM-resident
        in_specs=[
            pl.BlockSpec((T, B, 3 * H), lambda i: (0, 0, 0)),           # gi0
            pl.BlockSpec((T, B, H), lambda i: (0, 0, 0)),               # eps
            pl.BlockSpec((N_LAYERS, B, H), lambda i: (0, 0, 0)),        # h0
            pl.BlockSpec((H, 3 * H), lambda i: (0, 0)),                 # W_hh0 (bf16)
            pl.BlockSpec((2 * H, 4 * H), lambda i: (0, 0)),             # W_cat1 (bf16)
            pl.BlockSpec((N_LAYERS, 1, 2 * H), lambda i: (0, 0, 0)),    # b_rz
            pl.BlockSpec((N_LAYERS, 1, H), lambda i: (0, 0, 0)),        # b_in
            pl.BlockSpec((N_LAYERS, 1, H), lambda i: (0, 0, 0)),        # b_hn
            pl.BlockSpec((H, 2 * H), lambda i: (0, 0)),                 # W_fc (bf16)
            pl.BlockSpec((1, 2 * H), lambda i: (0, 0)),                 # b_fc
        ],
        out_specs=[
            pl.BlockSpec((N_LAYERS, B, H), lambda i: (0, 0, 0)),        # final hidden
            pl.BlockSpec((T, B, H), lambda i: (0, 0, 0)),               # c_code
            pl.BlockSpec((T, B, H), lambda i: (0, 0, 0)),               # mu
            pl.BlockSpec((T, B, H), lambda i: (0, 0, 0)),               # logvar
        ],
        scratch_shapes=[pltpu.VMEM((T * B, H), jnp.float32)],           # top outputs
    )

    out_shapes = (
        jax.ShapeDtypeStruct((N_LAYERS, B, H), jnp.float32),
        jax.ShapeDtypeStruct((T, B, H), jnp.float32),
        jax.ShapeDtypeStruct((T, B, H), jnp.float32),
        jax.ShapeDtypeStruct((T, B, H), jnp.float32),
    )

    hidden_out, c_code, mu, logvar = pl.pallas_call(
        encoder_rnn_kernel,
        out_shape=out_shapes,
        grid_spec=grid_spec,
        compiler_params=pltpu.CompilerParams(
            dimension_semantics=("arbitrary",)),
    )(gi0, eps, hidden,
      prepped["w_hh0"], prepped["w_cat1"],
      prepped["b_rz"], prepped["b_in"], prepped["b_hn"],
      prepped["w_fc"], prepped["b_fc"])

    return c_code, hidden_out, mu, logvar


# ---------------- pure-JAX reference (mirrors the module; bf16 matmul operands
# with f32 accumulation, matching the kernel's precision scheme) ----------------
def reference_forward(word_inputs, hidden, eps, params):
    (emb_table, w_ih0, w_ih_rest, w_hh, b_ih, b_hh, w_fc, b_fc) = params
    embedded = jnp.take(emb_table, word_inputs, axis=0).transpose(1, 0, 2)
    embedded = embedded.astype(jnp.float32)
    w_ih_rest_bf = w_ih_rest.astype(jnp.bfloat16)
    w_hh_bf = w_hh.astype(jnp.bfloat16)
    w_fc_bf = w_fc.astype(jnp.bfloat16)

    h = hidden
    outs = []
    for t in range(T):
        x = embedded[t]
        new_h = []
        for layer in range(N_LAYERS):
            if layer == 0:
                gi = x @ w_ih0 + b_ih[layer]
            else:
                gi = jnp.dot(x.astype(jnp.bfloat16), w_ih_rest_bf[layer - 1],
                             preferred_element_type=jnp.float32) + b_ih[layer]
            gh = jnp.dot(h[layer].astype(jnp.bfloat16), w_hh_bf[layer],
                         preferred_element_type=jnp.float32) + b_hh[layer]
            r = jax.nn.sigmoid(gi[:, :H] + gh[:, :H])
            z = jax.nn.sigmoid(gi[:, H:2 * H] + gh[:, H:2 * H])
            n = jnp.tanh(gi[:, 2 * H:] + r * gh[:, 2 * H:])
            h_new = (1.0 - z) * n + z * h[layer]
            new_h.append(h_new)
            x = h_new
        h = jnp.stack(new_h)
        outs.append(x)
    output = jnp.stack(outs)                                    # (T, B, H)
    act = jax.nn.relu(jnp.dot(output.astype(jnp.bfloat16), w_fc_bf,
                              preferred_element_type=jnp.float32) + b_fc[0])
    mu = act[..., :H]
    logvar = act[..., H:]
    c_code = eps * jnp.exp(0.5 * logvar) + mu
    return c_code, h, mu, logvar


# ---------------- deterministic parameter init ----------------
def init_params(key):
    ks = jax.random.split(key, 8)
    scale = 0.1
    emb_table = jax.random.normal(ks[0], (VOCAB, E), jnp.float32) * scale
    w_ih0 = jax.random.normal(ks[1], (E, 3 * H), jnp.float32) * scale
    w_ih_rest = jax.random.normal(ks[2], (N_LAYERS - 1, H, 3 * H), jnp.float32) * scale
    w_hh = jax.random.normal(ks[3], (N_LAYERS, H, 3 * H), jnp.float32) * scale
    b_ih = jax.random.normal(ks[4], (N_LAYERS, 3 * H), jnp.float32) * scale
    b_hh = jax.random.normal(ks[5], (N_LAYERS, 3 * H), jnp.float32) * scale
    w_fc = jax.random.normal(ks[6], (H, 2 * H), jnp.float32) * scale
    b_fc = jax.random.normal(ks[7], (1, 2 * H), jnp.float32) * scale
    return (emb_table, w_ih0, w_ih_rest, w_hh, b_ih, b_hh, w_fc, b_fc)


if __name__ == "__main__":
    key = jax.random.PRNGKey(0)
    k_param, k_tok, k_hid, k_eps = jax.random.split(key, 4)

    params = init_params(k_param)
    prepped = prepare_params(params)

    word_inputs = jax.random.randint(k_tok, (B, T), 0, VOCAB, dtype=jnp.int32)
    hidden0 = jnp.zeros((N_LAYERS, B, H), jnp.float32)  # EncoderRNN.init_hidden
    # eps drawn outside the kernel so the reparametrization is deterministic/testable.
    eps = jax.random.normal(k_eps, (T, B, H), jnp.float32)

    c_code, hidden_out, mu, logvar = jax.block_until_ready(
        encoder_rnn_forward(word_inputs, hidden0, eps, prepped))

    c_ref, h_ref, mu_ref, lv_ref = reference_forward(word_inputs, hidden0, eps, params)
    # bf16 operands + f32 accumulation on both sides; loose-but-meaningful tolerance.
    assert jnp.allclose(c_code, c_ref, atol=2e-2, rtol=2e-2)
    assert jnp.allclose(hidden_out, h_ref, atol=2e-2, rtol=2e-2)
    assert jnp.allclose(mu, mu_ref, atol=2e-2, rtol=2e-2)
    assert jnp.allclose(logvar, lv_ref, atol=2e-2, rtol=2e-2)

    print("KERNEL_OK")
</pallas_src>

<mosaic_0001>
module attributes {stable_mosaic.version = 11 : i64} {
  func.func @encoder_rnn_kernel(%arg0: i32, %arg1: memref<8x8x384xf32, #tpu.memory_space<vmem>>, %arg2: memref<8x8x128xf32, #tpu.memory_space<vmem>>, %arg3: memref<2x8x128xf32, #tpu.memory_space<vmem>>, %arg4: memref<128x384xbf16, #tpu.memory_space<vmem>>, %arg5: memref<256x512xbf16, #tpu.memory_space<vmem>>, %arg6: memref<2x1x256xf32, #tpu.memory_space<vmem>>, %arg7: memref<2x1x128xf32, #tpu.memory_space<vmem>>, %arg8: memref<2x1x128xf32, #tpu.memory_space<vmem>>, %arg9: memref<128x256xbf16, #tpu.memory_space<vmem>>, %arg10: memref<1x256xf32, #tpu.memory_space<vmem>>, %arg11: memref<2x8x128xf32, #tpu.memory_space<vmem>>, %arg12: memref<8x8x128xf32, #tpu.memory_space<vmem>>, %arg13: memref<8x8x128xf32, #tpu.memory_space<vmem>>, %arg14: memref<8x8x128xf32, #tpu.memory_space<vmem>>, %arg15: memref<64x128xf32, #tpu.memory_space<vmem>>) attributes {dimension_semantics = [#tpu.dimension_semantics<arbitrary>], iteration_bounds = array<i64: 1>, scalar_prefetch = 0 : i64, scratch_operands = 1 : i64, tpu.core_type = #tpu.core_type<tc>, window_params = [{pipeline_mode = #tpu.pipeline_mode<synchronous>, transform_indices = @transform_0, window_bounds = array<i64: 8, 8, 384>}, {pipeline_mode = #tpu.pipeline_mode<synchronous>, transform_indices = @transform_1, window_bounds = array<i64: 8, 8, 128>}, {pipeline_mode = #tpu.pipeline_mode<synchronous>, transform_indices = @transform_2, window_bounds = array<i64: 2, 8, 128>}, {pipeline_mode = #tpu.pipeline_mode<synchronous>, transform_indices = @transform_3, window_bounds = array<i64: 128, 384>}, {pipeline_mode = #tpu.pipeline_mode<synchronous>, transform_indices = @transform_4, window_bounds = array<i64: 256, 512>}, {pipeline_mode = #tpu.pipeline_mode<synchronous>, transform_indices = @transform_5, window_bounds = array<i64: 2, 1, 256>}, {pipeline_mode = #tpu.pipeline_mode<synchronous>, transform_indices = @transform_6, window_bounds = array<i64: 2, 1, 128>}, {pipeline_mode = #tpu.pipeline_mode<synchronous>, transform_indices = @transform_7, window_bounds = array<i64: 2, 1, 128>}, {pipeline_mode = #tpu.pipeline_mode<synchronous>, transform_indices = @transform_8, window_bounds = array<i64: 128, 256>}, {pipeline_mode = #tpu.pipeline_mode<synchronous>, transform_indices = @transform_9, window_bounds = array<i64: 1, 256>}, {pipeline_mode = #tpu.pipeline_mode<synchronous>, transform_indices = @transform_10, window_bounds = array<i64: 2, 8, 128>}, {pipeline_mode = #tpu.pipeline_mode<synchronous>, transform_indices = @transform_11, window_bounds = array<i64: 8, 8, 128>}, {pipeline_mode = #tpu.pipeline_mode<synchronous>, transform_indices = @transform_12, window_bounds = array<i64: 8, 8, 128>}, {pipeline_mode = #tpu.pipeline_mode<synchronous>, transform_indices = @transform_13, window_bounds = array<i64: 8, 8, 128>}]} {
    %c0 = arith.constant 0 : index
    %c0_0 = arith.constant 0 : index
    %0 = vector.load %arg4[%c0, %c0_0] : memref<128x384xbf16, #tpu.memory_space<vmem>>, vector<128x384xbf16>
    %c0_1 = arith.constant 0 : index
    %c0_2 = arith.constant 0 : index
    %1 = vector.load %arg5[%c0_1, %c0_2] : memref<256x512xbf16, #tpu.memory_space<vmem>>, vector<256x512xbf16>
    %c0_3 = arith.constant 0 : index
    %c0_4 = arith.constant 0 : index
    %2 = vector.load %arg9[%c0_3, %c0_4] : memref<128x256xbf16, #tpu.memory_space<vmem>>, vector<128x256xbf16>
    %c0_5 = arith.constant 0 : index
    %c0_6 = arith.constant 0 : index
    %c0_7 = arith.constant 0 : index
    %3 = vector.load %arg6[%c0_5, %c0_6, %c0_7] : memref<2x1x256xf32, #tpu.memory_space<vmem>>, vector<1x1x256xf32>
    %4 = vector.shape_cast %3 : vector<1x1x256xf32> to vector<1x256xf32>
    %5 = vector.shape_cast %4 : vector<1x256xf32> to vector<1x256xf32>
    %6 = vector.broadcast %5 : vector<1x256xf32> to vector<8x256xf32>
    %c1 = arith.constant 1 : index
    %c0_8 = arith.constant 0 : index
    %c0_9 = arith.constant 0 : index
    %7 = vector.load %arg6[%c1, %c0_8, %c0_9] : memref<2x1x256xf32, #tpu.memory_space<vmem>>, vector<1x1x256xf32>
    %8 = vector.shape_cast %7 : vector<1x1x256xf32> to vector<1x256xf32>
    %9 = vector.shape_cast %8 : vector<1x256xf32> to vector<1x256xf32>
    %10 = vector.broadcast %9 : vector<1x256xf32> to vector<8x256xf32>
    %c0_10 = arith.constant 0 : index
    %c0_11 = arith.constant 0 : index
    %c0_12 = arith.constant 0 : index
    %11 = vector.load %arg7[%c0_10, %c0_11, %c0_12] : memref<2x1x128xf32, #tpu.memory_space<vmem>>, vector<1x1x128xf32>
    %12 = vector.shape_cast %11 : vector<1x1x128xf32> to vector<1x128xf32>
    %13 = vector.shape_cast %12 : vector<1x128xf32> to vector<1x128xf32>
    %14 = vector.broadcast %13 : vector<1x128xf32> to vector<8x128xf32>
    %c1_13 = arith.constant 1 : index
    %c0_14 = arith.constant 0 : index
    %c0_15 = arith.constant 0 : index
    %15 = vector.load %arg7[%c1_13, %c0_14, %c0_15] : memref<2x1x128xf32, #tpu.memory_space<vmem>>, vector<1x1x128xf32>
    %16 = vector.shape_cast %15 : vector<1x1x128xf32> to vector<1x128xf32>
    %17 = vector.shape_cast %16 : vector<1x128xf32> to vector<1x128xf32>
    %18 = vector.broadcast %17 : vector<1x128xf32> to vector<8x128xf32>
    %c0_16 = arith.constant 0 : index
    %c0_17 = arith.constant 0 : index
    %c0_18 = arith.constant 0 : index
    %19 = vector.load %arg8[%c0_16, %c0_17, %c0_18] : memref<2x1x128xf32, #tpu.memory_space<vmem>>, vector<1x1x128xf32>
    %20 = vector.shape_cast %19 : vector<1x1x128xf32> to vector<1x128xf32>
    %21 = vector.shape_cast %20 : vector<1x128xf32> to vector<1x128xf32>
    %22 = vector.broadcast %21 : vector<1x128xf32> to vector<8x128xf32>
    %c1_19 = arith.constant 1 : index
    %c0_20 = arith.constant 0 : index
    %c0_21 = arith.constant 0 : index
    %23 = vector.load %arg8[%c1_19, %c0_20, %c0_21] : memref<2x1x128xf32, #tpu.memory_space<vmem>>, vector<1x1x128xf32>
    %24 = vector.shape_cast %23 : vector<1x1x128xf32> to vector<1x128xf32>
    %25 = vector.shape_cast %24 : vector<1x128xf32> to vector<1x128xf32>
    %26 = vector.broadcast %25 : vector<1x128xf32> to vector<8x128xf32>
    %c0_22 = arith.constant 0 : index
    %c0_23 = arith.constant 0 : index
    %27 = vector.load %arg10[%c0_22, %c0_23] : memref<1x256xf32, #tpu.memory_space<vmem>>, vector<1x256xf32>
    %28 = vector.shape_cast %27 : vector<1x256xf32> to vector<1x256xf32>
    %29 = vector.broadcast %28 : vector<1x256xf32> to vector<64x256xf32>
    %c0_24 = arith.constant 0 : index
    %c0_25 = arith.constant 0 : index
    %c0_26 = arith.constant 0 : index
    %30 = vector.load %arg3[%c0_24, %c0_25, %c0_26] : memref<2x8x128xf32, #tpu.memory_space<vmem>>, vector<1x8x128xf32>
    %31 = vector.shape_cast %30 : vector<1x8x128xf32> to vector<8x128xf32>
    %c1_27 = arith.constant 1 : index
    %c0_28 = arith.constant 0 : index
    %c0_29 = arith.constant 0 : index
    %32 = vector.load %arg3[%c1_27, %c0_28, %c0_29] : memref<2x8x128xf32, #tpu.memory_space<vmem>>, vector<1x8x128xf32>
    %33 = vector.shape_cast %32 : vector<1x8x128xf32> to vector<8x128xf32>
    %c0_30 = arith.constant 0 : index
    %c0_31 = arith.constant 0 : index
    %c0_32 = arith.constant 0 : index
    %34 = vector.load %arg1[%c0_30, %c0_31, %c0_32] : memref<8x8x384xf32, #tpu.memory_space<vmem>>, vector<1x8x384xf32>
    %35 = vector.shape_cast %34 : vector<1x8x384xf32> to vector<8x384xf32>
    %36 = arith.truncf %31 : vector<8x128xf32> to vector<8x128xbf16>
    %cst = arith.constant dense<0.000000e+00> : vector<8x384xf32>
    %37 = tpu.matmul %36, %0, %cst {dimension_numbers = #tpu.dot_dimension_numbers<[1], [0], [0], [1], [0, 0, 1, 1], [], []>} : vector<8x128xbf16>, vector<128x384xbf16>, vector<8x384xf32> -> vector<8x384xf32>
    %38 = vector.extract_strided_slice %35 {offsets = [0, 0], sizes = [8, 256], strides = [1, 1]} : vector<8x384xf32> to vector<8x256xf32>
    %39 = vector.extract_strided_slice %37 {offsets = [0, 0], sizes = [8, 256], strides = [1, 1]} : vector<8x384xf32> to vector<8x256xf32>
    %40 = arith.addf %38, %39 : vector<8x256xf32>
    %41 = arith.addf %40, %6 : vector<8x256xf32>
    %42 = arith.negf %41 : vector<8x256xf32>
    %43 = math.exp %42 : vector<8x256xf32>
    %cst_33 = arith.constant 1.000000e+00 : f32
    %44 = vector.broadcast %cst_33 : f32 to vector<8x256xf32>
    %45 = arith.addf %44, %43 : vector<8x256xf32>
    %46 = arith.divf %44, %45 : vector<8x256xf32>
    %47 = vector.extract_strided_slice %46 {offsets = [0, 0], sizes = [8, 128], strides = [1, 1]} : vector<8x256xf32> to vector<8x128xf32>
    %48 = vector.extract_strided_slice %46 {offsets = [0, 128], sizes = [8, 128], strides = [1, 1]} : vector<8x256xf32> to vector<8x128xf32>
    %49 = vector.extract_strided_slice %35 {offsets = [0, 256], sizes = [8, 128], strides = [1, 1]} : vector<8x384xf32> to vector<8x128xf32>
    %50 = arith.addf %49, %14 : vector<8x128xf32>
    %51 = vector.extract_strided_slice %37 {offsets = [0, 256], sizes = [8, 128], strides = [1, 1]} : vector<8x384xf32> to vector<8x128xf32>
    %52 = arith.addf %51, %22 : vector<8x128xf32>
    %53 = arith.mulf %47, %52 : vector<8x128xf32>
    %54 = arith.addf %50, %53 : vector<8x128xf32>
    %55 = math.tanh %54 : vector<8x128xf32>
    %cst_34 = arith.constant 1.000000e+00 : f32
    %56 = vector.broadcast %cst_34 : f32 to vector<8x128xf32>
    %57 = arith.subf %56, %48 : vector<8x128xf32>
    %58 = arith.mulf %57, %55 : vector<8x128xf32>
    %59 = arith.mulf %48, %31 : vector<8x128xf32>
    %60 = arith.addf %58, %59 : vector<8x128xf32>
    %61 = arith.truncf %60 : vector<8x128xf32> to vector<8x128xbf16>
    %62 = arith.truncf %33 : vector<8x128xf32> to vector<8x128xbf16>
    %63 = tpu.concatenate %61, %62 in 1 : vector<8x128xbf16>, vector<8x128xbf16> -> vector<8x256xbf16>
    %cst_35 = arith.constant dense<0.000000e+00> : vector<8x512xf32>
    %64 = tpu.matmul %63, %1, %cst_35 {dimension_numbers = #tpu.dot_dimension_numbers<[1], [0], [0], [1], [0, 0, 1, 1], [], []>} : vector<8x256xbf16>, vector<256x512xbf16>, vector<8x512xf32> -> vector<8x512xf32>
    %65 = vector.extract_strided_slice %64 {offsets = [0, 0], sizes = [8, 256], strides = [1, 1]} : vector<8x512xf32> to vector<8x256xf32>
    %66 = arith.addf %65, %10 : vector<8x256xf32>
    %67 = arith.negf %66 : vector<8x256xf32>
    %68 = math.exp %67 : vector<8x256xf32>
    %cst_36 = arith.constant 1.000000e+00 : f32
    %69 = vector.broadcast %cst_36 : f32 to vector<8x256xf32>
    %70 = arith.addf %69, %68 : vector<8x256xf32>
    %71 = arith.divf %69, %70 : vector<8x256xf32>
    %72 = vector.extract_strided_slice %71 {offsets = [0, 0], sizes = [8, 128], strides = [1, 1]} : vector<8x256xf32> to vector<8x128xf32>
    %73 = vector.extract_strided_slice %71 {offsets = [0, 128], sizes = [8, 128], strides = [1, 1]} : vector<8x256xf32> to vector<8x128xf32>
    %74 = vector.extract_strided_slice %64 {offsets = [0, 256], sizes = [8, 128], strides = [1, 1]} : vector<8x512xf32> to vector<8x128xf32>
    %75 = arith.addf %74, %18 : vector<8x128xf32>
    %76 = vector.extract_strided_slice %64 {offsets = [0, 384], sizes = [8, 128], strides = [1, 1]} : vector<8x512xf32> to vector<8x128xf32>
    %77 = arith.addf %76, %26 : vector<8x128xf32>
    %78 = arith.mulf %72, %77 : vector<8x128xf32>
    %79 = arith.addf %75, %78 : vector<8x128xf32>
    %80 = math.tanh %79 : vector<8x128xf32>
    %cst_37 = arith.constant 1.000000e+00 : f32
    %81 = vector.broadcast %cst_37 : f32 to vector<8x128xf32>
    %82 = arith.subf %81, %73 : vector<8x128xf32>
    %83 = arith.mulf %82, %80 : vector<8x128xf32>
    %84 = arith.mulf %73, %33 : vector<8x128xf32>
    %85 = arith.addf %83, %84 : vector<8x128xf32>
    %c0_38 = arith.constant 0 : index
    %c0_39 = arith.constant 0 : index
    %86 = vector.load %arg15[%c0_38, %c0_39] : memref<64x128xf32, #tpu.memory_space<vmem>>, vector<8x128xf32>
    tpu.vector_store %arg15[%c0_38, %c0_39], %85 {strides = array<i32>} : memref<64x128xf32, #tpu.memory_space<vmem>>, vector<8x128xf32>,
    %c1_40 = arith.constant 1 : index
    %c0_41 = arith.constant 0 : index
    %c0_42 = arith.constant 0 : index
    %87 = vector.load %arg1[%c1_40, %c0_41, %c0_42] : memref<8x8x384xf32, #tpu.memory_space<vmem>>, vector<1x8x384xf32>
    %88 = vector.shape_cast %87 : vector<1x8x384xf32> to vector<8x384xf32>
    %89 = arith.truncf %60 : vector<8x128xf32> to vector<8x128xbf16>
    %cst_43 = arith.constant dense<0.000000e+00> : vector<8x384xf32>
    %90 = tpu.matmul %89, %0, %cst_43 {dimension_numbers = #tpu.dot_dimension_numbers<[1], [0], [0], [1], [0, 0, 1, 1], [], []>} : vector<8x128xbf16>, vector<128x384xbf16>, vector<8x384xf32> -> vector<8x384xf32>
    %91 = vector.extract_strided_slice %88 {offsets = [0, 0], sizes = [8, 256], strides = [1, 1]} : vector<8x384xf32> to vector<8x256xf32>
    %92 = vector.extract_strided_slice %90 {offsets = [0, 0], sizes = [8, 256], strides = [1, 1]} : vector<8x384xf32> to vector<8x256xf32>
    %93 = arith.addf %91, %92 : vector<8x256xf32>
    %94 = arith.addf %93, %6 : vector<8x256xf32>
    %95 = arith.negf %94 : vector<8x256xf32>
    %96 = math.exp %95 : vector<8x256xf32>
    %cst_44 = arith.constant 1.000000e+00 : f32
    %97 = vector.broadcast %cst_44 : f32 to vector<8x256xf32>
    %98 = arith.addf %97, %96 : vector<8x256xf32>
    %99 = arith.divf %97, %98 : vector<8x256xf32>
    %100 = vector.extract_strided_slice %99 {offsets = [0, 0], sizes = [8, 128], strides = [1, 1]} : vector<8x256xf32> to vector<8x128xf32>
    %101 = vector.extract_strided_slice %99 {offsets = [0, 128], sizes = [8, 128], strides = [1, 1]} : vector<8x256xf32> to vector<8x128xf32>
    %102 = vector.extract_strided_slice %88 {offsets = [0, 256], sizes = [8, 128], strides = [1, 1]} : vector<8x384xf32> to vector<8x128xf32>
    %103 = arith.addf %102, %14 : vector<8x128xf32>
    %104 = vector.extract_strided_slice %90 {offsets = [0, 256], sizes = [8, 128], strides = [1, 1]} : vector<8x384xf32> to vector<8x128xf32>
    %105 = arith.addf %104, %22 : vector<8x128xf32>
    %106 = arith.mulf %100, %105 : vector<8x128xf32>
    %107 = arith.addf %103, %106 : vector<8x128xf32>
    %108 = math.tanh %107 : vector<8x128xf32>
    %cst_45 = arith.constant 1.000000e+00 : f32
    %109 = vector.broadcast %cst_45 : f32 to vector<8x128xf32>
    %110 = arith.subf %109, %101 : vector<8x128xf32>
    %111 = arith.mulf %110, %108 : vector<8x128xf32>
    %112 = arith.mulf %101, %60 : vector<8x128xf32>
    %113 = arith.addf %111, %112 : vector<8x128xf32>
    %114 = arith.truncf %113 : vector<8x128xf32> to vector<8x128xbf16>
    %115 = arith.truncf %85 : vector<8x128xf32> to vector<8x128xbf16>
    %116 = tpu.concatenate %114, %115 in 1 : vector<8x128xbf16>, vector<8x128xbf16> -> vector<8x256xbf16>
    %cst_46 = arith.constant dense<0.000000e+00> : vector<8x512xf32>
    %117 = tpu.matmul %116, %1, %cst_46 {dimension_numbers = #tpu.dot_dimension_numbers<[1], [0], [0], [1], [0, 0, 1, 1], [], []>} : vector<8x256xbf16>, vector<256x512xbf16>, vector<8x512xf32> -> vector<8x512xf32>
    %118 = vector.extract_strided_slice %117 {offsets = [0, 0], sizes = [8, 256], strides = [1, 1]} : vector<8x512xf32> to vector<8x256xf32>
    %119 = arith.addf %118, %10 : vector<8x256xf32>
    %120 = arith.negf %119 : vector<8x256xf32>
    %121 = math.exp %120 : vector<8x256xf32>
    %cst_47 = arith.constant 1.000000e+00 : f32
    %122 = vector.broadcast %cst_47 : f32 to vector<8x256xf32>
    %123 = arith.addf %122, %121 : vector<8x256xf32>
    %124 = arith.divf %122, %123 : vector<8x256xf32>
    %125 = vector.extract_strided_slice %124 {offsets = [0, 0], sizes = [8, 128], strides = [1, 1]} : vector<8x256xf32> to vector<8x128xf32>
    %126 = vector.extract_strided_slice %124 {offsets = [0, 128], sizes = [8, 128], strides = [1, 1]} : vector<8x256xf32> to vector<8x128xf32>
    %127 = vector.extract_strided_slice %117 {offsets = [0, 256], sizes = [8, 128], strides = [1, 1]} : vector<8x512xf32> to vector<8x128xf32>
    %128 = arith.addf %127, %18 : vector<8x128xf32>
    %129 = vector.extract_strided_slice %117 {offsets = [0, 384], sizes = [8, 128], strides = [1, 1]} : vector<8x512xf32> to vector<8x128xf32>
    %130 = arith.addf %129, %26 : vector<8x128xf32>
    %131 = arith.mulf %125, %130 : vector<8x128xf32>
    %132 = arith.addf %128, %131 : vector<8x128xf32>
    %133 = math.tanh %132 : vector<8x128xf32>
    %cst_48 = arith.constant 1.000000e+00 : f32
    %134 = vector.broadcast %cst_48 : f32 to vector<8x128xf32>
    %135 = arith.subf %134, %126 : vector<8x128xf32>
    %136 = arith.mulf %135, %133 : vector<8x128xf32>
    %137 = arith.mulf %126, %85 : vector<8x128xf32>
    %138 = arith.addf %136, %137 : vector<8x128xf32>
    %c8 = arith.constant 8 : index
    %c0_49 = arith.constant 0 : index
    %139 = vector.load %arg15[%c8, %c0_49] : memref<64x128xf32, #tpu.memory_space<vmem>>, vector<8x128xf32>
    tpu.vector_store %arg15[%c8, %c0_49], %138 {strides = array<i32>} : memref<64x128xf32, #tpu.memory_space<vmem>>, vector<8x128xf32>,
    %c2 = arith.constant 2 : index
    %c0_50 = arith.constant 0 : index
    %c0_51 = arith.constant 0 : index
    %140 = vector.load %arg1[%c2, %c0_50, %c0_51] : memref<8x8x384xf32, #tpu.memory_space<vmem>>, vector<1x8x384xf32>
    %141 = vector.shape_cast %140 : vector<1x8x384xf32> to vector<8x384xf32>
    %142 = arith.truncf %113 : vector<8x128xf32> to vector<8x128xbf16>
    %cst_52 = arith.constant dense<0.000000e+00> : vector<8x384xf32>
    %143 = tpu.matmul %142, %0, %cst_52 {dimension_numbers = #tpu.dot_dimension_numbers<[1], [0], [0], [1], [0, 0, 1, 1], [], []>} : vector<8x128xbf16>, vector<128x384xbf16>, vector<8x384xf32> -> vector<8x384xf32>
    %144 = vector.extract_strided_slice %141 {offsets = [0, 0], sizes = [8, 256], strides = [1, 1]} : vector<8x384xf32> to vector<8x256xf32>
    %145 = vector.extract_strided_slice %143 {offsets = [0, 0], sizes = [8, 256], strides = [1, 1]} : vector<8x384xf32> to vector<8x256xf32>
    %146 = arith.addf %144, %145 : vector<8x256xf32>
    %147 = arith.addf %146, %6 : vector<8x256xf32>
    %148 = arith.negf %147 : vector<8x256xf32>
    %149 = math.exp %148 : vector<8x256xf32>
    %cst_53 = arith.constant 1.000000e+00 : f32
    %150 = vector.broadcast %cst_53 : f32 to vector<8x256xf32>
    %151 = arith.addf %150, %149 : vector<8x256xf32>
    %152 = arith.divf %150, %151 : vector<8x256xf32>
    %153 = vector.extract_strided_slice %152 {offsets = [0, 0], sizes = [8, 128], strides = [1, 1]} : vector<8x256xf32> to vector<8x128xf32>
    %154 = vector.extract_strided_slice %152 {offsets = [0, 128], sizes = [8, 128], strides = [1, 1]} : vector<8x256xf32> to vector<8x128xf32>
    %155 = vector.extract_strided_slice %141 {offsets = [0, 256], sizes = [8, 128], strides = [1, 1]} : vector<8x384xf32> to vector<8x128xf32>
    %156 = arith.addf %155, %14 : vector<8x128xf32>
    %157 = vector.extract_strided_slice %143 {offsets = [0, 256], sizes = [8, 128], strides = [1, 1]} : vector<8x384xf32> to vector<8x128xf32>
    %158 = arith.addf %157, %22 : vector<8x128xf32>
    %159 = arith.mulf %153, %158 : vector<8x128xf32>
    %160 = arith.addf %156, %159 : vector<8x128xf32>
    %161 = math.tanh %160 : vector<8x128xf32>
    %cst_54 = arith.constant 1.000000e+00 : f32
    %162 = vector.broadcast %cst_54 : f32 to vector<8x128xf32>
    %163 = arith.subf %162, %154 : vector<8x128xf32>
    %164 = arith.mulf %163, %161 : vector<8x128xf32>
    %165 = arith.mulf %154, %113 : vector<8x128xf32>
    %166 = arith.addf %164, %165 : vector<8x128xf32>
    %167 = arith.truncf %166 : vector<8x128xf32> to vector<8x128xbf16>
    %168 = arith.truncf %138 : vector<8x128xf32> to vector<8x128xbf16>
    %169 = tpu.concatenate %167, %168 in 1 : vector<8x128xbf16>, vector<8x128xbf16> -> vector<8x256xbf16>
    %cst_55 = arith.constant dense<0.000000e+00> : vector<8x512xf32>
    %170 = tpu.matmul %169, %1, %cst_55 {dimension_numbers = #tpu.dot_dimension_numbers<[1], [0], [0], [1], [0, 0, 1, 1], [], []>} : vector<8x256xbf16>, vector<256x512xbf16>, vector<8x512xf32> -> vector<8x512xf32>
    %171 = vector.extract_strided_slice %170 {offsets = [0, 0], sizes = [8, 256], strides = [1, 1]} : vector<8x512xf32> to vector<8x256xf32>
    %172 = arith.addf %171, %10 : vector<8x256xf32>
    %173 = arith.negf %172 : vector<8x256xf32>
    %174 = math.exp %173 : vector<8x256xf32>
    %cst_56 = arith.constant 1.000000e+00 : f32
    %175 = vector.broadcast %cst_56 : f32 to vector<8x256xf32>
    %176 = arith.addf %175, %174 : vector<8x256xf32>
    %177 = arith.divf %175, %176 : vector<8x256xf32>
    %178 = vector.extract_strided_slice %177 {offsets = [0, 0], sizes = [8, 128], strides = [1, 1]} : vector<8x256xf32> to vector<8x128xf32>
    %179 = vector.extract_strided_slice %177 {offsets = [0, 128], sizes = [8, 128], strides = [1, 1]} : vector<8x256xf32> to vector<8x128xf32>
    %180 = vector.extract_strided_slice %170 {offsets = [0, 256], sizes = [8, 128], strides = [1, 1]} : vector<8x512xf32> to vector<8x128xf32>
    %181 = arith.addf %180, %18 : vector<8x128xf32>
    %182 = vector.extract_strided_slice %170 {offsets = [0, 384], sizes = [8, 128], strides = [1, 1]} : vector<8x512xf32> to vector<8x128xf32>
    %183 = arith.addf %182, %26 : vector<8x128xf32>
    %184 = arith.mulf %178, %183 : vector<8x128xf32>
    %185 = arith.addf %181, %184 : vector<8x128xf32>
    %186 = math.tanh %185 : vector<8x128xf32>
    %cst_57 = arith.constant 1.000000e+00 : f32
    %187 = vector.broadcast %cst_57 : f32 to vector<8x128xf32>
    %188 = arith.subf %187, %179 : vector<8x128xf32>
    %189 = arith.mulf %188, %186 : vector<8x128xf32>
    %190 = arith.mulf %179, %138 : vector<8x128xf32>
    %191 = arith.addf %189, %190 : vector<8x128xf32>
    %c16 = arith.constant 16 : index
    %c0_58 = arith.constant 0 : index
    %192 = vector.load %arg15[%c16, %c0_58] : memref<64x128xf32, #tpu.memory_space<vmem>>, vector<8x128xf32>
    tpu.vector_store %arg15[%c16, %c0_58], %191 {strides = array<i32>} : memref<64x128xf32, #tpu.memory_space<vmem>>, vector<8x128xf32>,
    %c3 = arith.constant 3 : index
    %c0_59 = arith.constant 0 : index
    %c0_60 = arith.constant 0 : index
    %193 = vector.load %arg1[%c3, %c0_59, %c0_60] : memref<8x8x384xf32, #tpu.memory_space<vmem>>, vector<1x8x384xf32>
    %194 = vector.shape_cast %193 : vector<1x8x384xf32> to vector<8x384xf32>
    %195 = arith.truncf %166 : vector<8x128xf32> to vector<8x128xbf16>
    %cst_61 = arith.constant dense<0.000000e+00> : vector<8x384xf32>
    %196 = tpu.matmul %195, %0, %cst_61 {dimension_numbers = #tpu.dot_dimension_numbers<[1], [0], [0], [1], [0, 0, 1, 1], [], []>} : vector<8x128xbf16>, vector<128x384xbf16>, vector<8x384xf32> -> vector<8x384xf32>
    %197 = vector.extract_strided_slice %194 {offsets = [0, 0], sizes = [8, 256], strides = [1, 1]} : vector<8x384xf32> to vector<8x256xf32>
    %198 = vector.extract_strided_slice %196 {offsets = [0, 0], sizes = [8, 256], strides = [1, 1]} : vector<8x384xf32> to vector<8x256xf32>
    %199 = arith.addf %197, %198 : vector<8x256xf32>
    %200 = arith.addf %199, %6 : vector<8x256xf32>
    %201 = arith.negf %200 : vector<8x256xf32>
    %202 = math.exp %201 : vector<8x256xf32>
    %cst_62 = arith.constant 1.000000e+00 : f32
    %203 = vector.broadcast %cst_62 : f32 to vector<8x256xf32>
    %204 = arith.addf %203, %202 : vector<8x256xf32>
    %205 = arith.divf %203, %204 : vector<8x256xf32>
    %206 = vector.extract_strided_slice %205 {offsets = [0, 0], sizes = [8, 128], strides = [1, 1]} : vector<8x256xf32> to vector<8x128xf32>
    %207 = vector.extract_strided_slice %205 {offsets = [0, 128], sizes = [8, 128], strides = [1, 1]} : vector<8x256xf32> to vector<8x128xf32>
    %208 = vector.extract_strided_slice %194 {offsets = [0, 256], sizes = [8, 128], strides = [1, 1]} : vector<8x384xf32> to vector<8x128xf32>
    %209 = arith.addf %208, %14 : vector<8x128xf32>
    %210 = vector.extract_strided_slice %196 {offsets = [0, 256], sizes = [8, 128], strides = [1, 1]} : vector<8x384xf32> to vector<8x128xf32>
    %211 = arith.addf %210, %22 : vector<8x128xf32>
    %212 = arith.mulf %206, %211 : vector<8x128xf32>
    %213 = arith.addf %209, %212 : vector<8x128xf32>
    %214 = math.tanh %213 : vector<8x128xf32>
    %cst_63 = arith.constant 1.000000e+00 : f32
    %215 = vector.broadcast %cst_63 : f32 to vector<8x128xf32>
    %216 = arith.subf %215, %207 : vector<8x128xf32>
    %217 = arith.mulf %216, %214 : vector<8x128xf32>
    %218 = arith.mulf %207, %166 : vector<8x128xf32>
    %219 = arith.addf %217, %218 : vector<8x128xf32>
    %220 = arith.truncf %219 : vector<8x128xf32> to vector<8x128xbf16>
    %221 = arith.truncf %191 : vector<8x128xf32> to vector<8x128xbf16>
    %222 = tpu.concatenate %220, %221 in 1 : vector<8x128xbf16>, vector<8x128xbf16> -> vector<8x256xbf16>
    %cst_64 = arith.constant dense<0.000000e+00> : vector<8x512xf32>
    %223 = tpu.matmul %222, %1, %cst_64 {dimension_numbers = #tpu.dot_dimension_numbers<[1], [0], [0], [1], [0, 0, 1, 1], [], []>} : vector<8x256xbf16>, vector<256x512xbf16>, vector<8x512xf32> -> vector<8x512xf32>
    %224 = vector.extract_strided_slice %223 {offsets = [0, 0], sizes = [8, 256], strides = [1, 1]} : vector<8x512xf32> to vector<8x256xf32>
    %225 = arith.addf %224, %10 : vector<8x256xf32>
    %226 = arith.negf %225 : vector<8x256xf32>
    %227 = math.exp %226 : vector<8x256xf32>
    %cst_65 = arith.constant 1.000000e+00 : f32
    %228 = vector.broadcast %cst_65 : f32 to vector<8x256xf32>
    %229 = arith.addf %228, %227 : vector<8x256xf32>
    %230 = arith.divf %228, %229 : vector<8x256xf32>
    %231 = vector.extract_strided_slice %230 {offsets = [0, 0], sizes = [8, 128], strides = [1, 1]} : vector<8x256xf32> to vector<8x128xf32>
    %232 = vector.extract_strided_slice %230 {offsets = [0, 128], sizes = [8, 128], strides = [1, 1]} : vector<8x256xf32> to vector<8x128xf32>
    %233 = vector.extract_strided_slice %223 {offsets = [0, 256], sizes = [8, 128], strides = [1, 1]} : vector<8x512xf32> to vector<8x128xf32>
    %234 = arith.addf %233, %18 : vector<8x128xf32>
    %235 = vector.extract_strided_slice %223 {offsets = [0, 384], sizes = [8, 128], strides = [1, 1]} : vector<8x512xf32> to vector<8x128xf32>
    %236 = arith.addf %235, %26 : vector<8x128xf32>
    %237 = arith.mulf %231, %236 : vector<8x128xf32>
    %238 = arith.addf %234, %237 : vector<8x128xf32>
    %239 = math.tanh %238 : vector<8x128xf32>
    %cst_66 = arith.constant 1.000000e+00 : f32
    %240 = vector.broadcast %cst_66 : f32 to vector<8x128xf32>
    %241 = arith.subf %240, %232 : vector<8x128xf32>
    %242 = arith.mulf %241, %239 : vector<8x128xf32>
    %243 = arith.mulf %232, %191 : vector<8x128xf32>
    %244 = arith.addf %242, %243 : vector<8x128xf32>
    %c24 = arith.constant 24 : index
    %c0_67 = arith.constant 0 : index
    %245 = vector.load %arg15[%c24, %c0_67] : memref<64x128xf32, #tpu.memory_space<vmem>>, vector<8x128xf32>
    tpu.vector_store %arg15[%c24, %c0_67], %244 {strides = array<i32>} : memref<64x128xf32, #tpu.memory_space<vmem>>, vector<8x128xf32>,
    %c4 = arith.constant 4 : index
    %c0_68 = arith.constant 0 : index
    %c0_69 = arith.constant 0 : index
    %246 = vector.load %arg1[%c4, %c0_68, %c0_69] : memref<8x8x384xf32, #tpu.memory_space<vmem>>, vector<1x8x384xf32>
    %247 = vector.shape_cast %246 : vector<1x8x384xf32> to vector<8x384xf32>
    %248 = arith.truncf %219 : vector<8x128xf32> to vector<8x128xbf16>
    %cst_70 = arith.constant dense<0.000000e+00> : vector<8x384xf32>
    %249 = tpu.matmul %248, %0, %cst_70 {dimension_numbers = #tpu.dot_dimension_numbers<[1], [0], [0], [1], [0, 0, 1, 1], [], []>} : vector<8x128xbf16>, vector<128x384xbf16>, vector<8x384xf32> -> vector<8x384xf32>
    %250 = vector.extract_strided_slice %247 {offsets = [0, 0], sizes = [8, 256], strides = [1, 1]} : vector<8x384xf32> to vector<8x256xf32>
    %251 = vector.extract_strided_slice %249 {offsets = [0, 0], sizes = [8, 256], strides = [1, 1]} : vector<8x384xf32> to vector<8x256xf32>
    %252 = arith.addf %250, %251 : vector<8x256xf32>
    %253 = arith.addf %252, %6 : vector<8x256xf32>
    %254 = arith.negf %253 : vector<8x256xf32>
    %255 = math.exp %254 : vector<8x256xf32>
    %cst_71 = arith.constant 1.000000e+00 : f32
    %256 = vector.broadcast %cst_71 : f32 to vector<8x256xf32>
    %257 = arith.addf %256, %255 : vector<8x256xf32>
    %258 = arith.divf %256, %257 : vector<8x256xf32>
    %259 = vector.extract_strided_slice %258 {offsets = [0, 0], sizes = [8, 128], strides = [1, 1]} : vector<8x256xf32> to vector<8x128xf32>
    %260 = vector.extract_strided_slice %258 {offsets = [0, 128], sizes = [8, 128], strides = [1, 1]} : vector<8x256xf32> to vector<8x128xf32>
    %261 = vector.extract_strided_slice %247 {offsets = [0, 256], sizes = [8, 128], strides = [1, 1]} : vector<8x384xf32> to vector<8x128xf32>
    %262 = arith.addf %261, %14 : vector<8x128xf32>
    %263 = vector.extract_strided_slice %249 {offsets = [0, 256], sizes = [8, 128], strides = [1, 1]} : vector<8x384xf32> to vector<8x128xf32>
    %264 = arith.addf %263, %22 : vector<8x128xf32>
    %265 = arith.mulf %259, %264 : vector<8x128xf32>
    %266 = arith.addf %262, %265 : vector<8x128xf32>
    %267 = math.tanh %266 : vector<8x128xf32>
    %cst_72 = arith.constant 1.000000e+00 : f32
    %268 = vector.broadcast %cst_72 : f32 to vector<8x128xf32>
    %269 = arith.subf %268, %260 : vector<8x128xf32>
    %270 = arith.mulf %269, %267 : vector<8x128xf32>
    %271 = arith.mulf %260, %219 : vector<8x128xf32>
    %272 = arith.addf %270, %271 : vector<8x128xf32>
    %273 = arith.truncf %272 : vector<8x128xf32> to vector<8x128xbf16>
    %274 = arith.truncf %244 : vector<8x128xf32> to vector<8x128xbf16>
    %275 = tpu.concatenate %273, %274 in 1 : vector<8x128xbf16>, vector<8x128xbf16> -> vector<8x256xbf16>
    %cst_73 = arith.constant dense<0.000000e+00> : vector<8x512xf32>
    %276 = tpu.matmul %275, %1, %cst_73 {dimension_numbers = #tpu.dot_dimension_numbers<[1], [0], [0], [1], [0, 0, 1, 1], [], []>} : vector<8x256xbf16>, vector<256x512xbf16>, vector<8x512xf32> -> vector<8x512xf32>
    %277 = vector.extract_strided_slice %276 {offsets = [0, 0], sizes = [8, 256], strides = [1, 1]} : vector<8x512xf32> to vector<8x256xf32>
    %278 = arith.addf %277, %10 : vector<8x256xf32>
    %279 = arith.negf %278 : vector<8x256xf32>
    %280 = math.exp %279 : vector<8x256xf32>
    %cst_74 = arith.constant 1.000000e+00 : f32
    %281 = vector.broadcast %cst_74 : f32 to vector<8x256xf32>
    %282 = arith.addf %281, %280 : vector<8x256xf32>
    %283 = arith.divf %281, %282 : vector<8x256xf32>
    %284 = vector.extract_strided_slice %283 {offsets = [0, 0], sizes = [8, 128], strides = [1, 1]} : vector<8x256xf32> to vector<8x128xf32>
    %285 = vector.extract_strided_slice %283 {offsets = [0, 128], sizes = [8, 128], strides = [1, 1]} : vector<8x256xf32> to vector<8x128xf32>
    %286 = vector.extract_strided_slice %276 {offsets = [0, 256], sizes = [8, 128], strides = [1, 1]} : vector<8x512xf32> to vector<8x128xf32>
    %287 = arith.addf %286, %18 : vector<8x128xf32>
    %288 = vector.extract_strided_slice %276 {offsets = [0, 384], sizes = [8, 128], strides = [1, 1]} : vector<8x512xf32> to vector<8x128xf32>
    %289 = arith.addf %288, %26 : vector<8x128xf32>
    %290 = arith.mulf %284, %289 : vector<8x128xf32>
    %291 = arith.addf %287, %290 : vector<8x128xf32>
    %292 = math.tanh %291 : vector<8x128xf32>
    %cst_75 = arith.constant 1.000000e+00 : f32
    %293 = vector.broadcast %cst_75 : f32 to vector<8x128xf32>
    %294 = arith.subf %293, %285 : vector<8x128xf32>
    %295 = arith.mulf %294, %292 : vector<8x128xf32>
    %296 = arith.mulf %285, %244 : vector<8x128xf32>
    %297 = arith.addf %295, %296 : vector<8x128xf32>
    %c32 = arith.constant 32 : index
    %c0_76 = arith.constant 0 : index
    %298 = vector.load %arg15[%c32, %c0_76] : memref<64x128xf32, #tpu.memory_space<vmem>>, vector<8x128xf32>
    tpu.vector_store %arg15[%c32, %c0_76], %297 {strides = array<i32>} : memref<64x128xf32, #tpu.memory_space<vmem>>, vector<8x128xf32>,
    %c5 = arith.constant 5 : index
    %c0_77 = arith.constant 0 : index
    %c0_78 = arith.constant 0 : index
    %299 = vector.load %arg1[%c5, %c0_77, %c0_78] : memref<8x8x384xf32, #tpu.memory_space<vmem>>, vector<1x8x384xf32>
    %300 = vector.shape_cast %299 : vector<1x8x384xf32> to vector<8x384xf32>
    %301 = arith.truncf %272 : vector<8x128xf32> to vector<8x128xbf16>
    %cst_79 = arith.constant dense<0.000000e+00> : vector<8x384xf32>
    %302 = tpu.matmul %301, %0, %cst_79 {dimension_numbers = #tpu.dot_dimension_numbers<[1], [0], [0], [1], [0, 0, 1, 1], [], []>} : vector<8x128xbf16>, vector<128x384xbf16>, vector<8x384xf32> -> vector<8x384xf32>
    %303 = vector.extract_strided_slice %300 {offsets = [0, 0], sizes = [8, 256], strides = [1, 1]} : vector<8x384xf32> to vector<8x256xf32>
    %304 = vector.extract_strided_slice %302 {offsets = [0, 0], sizes = [8, 256], strides = [1, 1]} : vector<8x384xf32> to vector<8x256xf32>
    %305 = arith.addf %303, %304 : vector<8x256xf32>
    %306 = arith.addf %305, %6 : vector<8x256xf32>
    %307 = arith.negf %306 : vector<8x256xf32>
    %308 = math.exp %307 : vector<8x256xf32>
    %cst_80 = arith.constant 1.000000e+00 : f32
    %309 = vector.broadcast %cst_80 : f32 to vector<8x256xf32>
    %310 = arith.addf %309, %308 : vector<8x256xf32>
    %311 = arith.divf %309, %310 : vector<8x256xf32>
    %312 = vector.extract_strided_slice %311 {offsets = [0, 0], sizes = [8, 128], strides = [1, 1]} : vector<8x256xf32> to vector<8x128xf32>
    %313 = vector.extract_strided_slice %311 {offsets = [0, 128], sizes = [8, 128], strides = [1, 1]} : vector<8x256xf32> to vector<8x128xf32>
    %314 = vector.extract_strided_slice %300 {offsets = [0, 256], sizes = [8, 128], strides = [1, 1]} : vector<8x384xf32> to vector<8x128xf32>
    %315 = arith.addf %314, %14 : vector<8x128xf32>
    %316 = vector.extract_strided_slice %302 {offsets = [0, 256], sizes = [8, 128], strides = [1, 1]} : vector<8x384xf32> to vector<8x128xf32>
    %317 = arith.addf %316, %22 : vector<8x128xf32>
    %318 = arith.mulf %312, %317 : vector<8x128xf32>
    %319 = arith.addf %315, %318 : vector<8x128xf32>
    %320 = math.tanh %319 : vector<8x128xf32>
    %cst_81 = arith.constant 1.000000e+00 : f32
    %321 = vector.broadcast %cst_81 : f32 to vector<8x128xf32>
    %322 = arith.subf %321, %313 : vector<8x128xf32>
    %323 = arith.mulf %322, %320 : vector<8x128xf32>
    %324 = arith.mulf %313, %272 : vector<8x128xf32>
    %325 = arith.addf %323, %324 : vector<8x128xf32>
    %326 = arith.truncf %325 : vector<8x128xf32> to vector<8x128xbf16>
    %327 = arith.truncf %297 : vector<8x128xf32> to vector<8x128xbf16>
    %328 = tpu.concatenate %326, %327 in 1 : vector<8x128xbf16>, vector<8x128xbf16> -> vector<8x256xbf16>
    %cst_82 = arith.constant dense<0.000000e+00> : vector<8x512xf32>
    %329 = tpu.matmul %328, %1, %cst_82 {dimension_numbers = #tpu.dot_dimension_numbers<[1], [0], [0], [1], [0, 0, 1, 1], [], []>} : vector<8x256xbf16>, vector<256x512xbf16>, vector<8x512xf32> -> vector<8x512xf32>
    %330 = vector.extract_strided_slice %329 {offsets = [0, 0], sizes = [8, 256], strides = [1, 1]} : vector<8x512xf32> to vector<8x256xf32>
    %331 = arith.addf %330, %10 : vector<8x256xf32>
    %332 = arith.negf %331 : vector<8x256xf32>
    %333 = math.exp %332 : vector<8x256xf32>
    %cst_83 = arith.constant 1.000000e+00 : f32
    %334 = vector.broadcast %cst_83 : f32 to vector<8x256xf32>
    %335 = arith.addf %334, %333 : vector<8x256xf32>
    %336 = arith.divf %334, %335 : vector<8x256xf32>
    %337 = vector.extract_strided_slice %336 {offsets = [0, 0], sizes = [8, 128], strides = [1, 1]} : vector<8x256xf32> to vector<8x128xf32>
    %338 = vector.extract_strided_slice %336 {offsets = [0, 128], sizes = [8, 128], strides = [1, 1]} : vector<8x256xf32> to vector<8x128xf32>
    %339 = vector.extract_strided_slice %329 {offsets = [0, 256], sizes = [8, 128], strides = [1, 1]} : vector<8x512xf32> to vector<8x128xf32>
    %340 = arith.addf %339, %18 : vector<8x128xf32>
    %341 = vector.extract_strided_slice %329 {offsets = [0, 384], sizes = [8, 128], strides = [1, 1]} : vector<8x512xf32> to vector<8x128xf32>
    %342 = arith.addf %341, %26 : vector<8x128xf32>
    %343 = arith.mulf %337, %342 : vector<8x128xf32>
    %344 = arith.addf %340, %343 : vector<8x128xf32>
    %345 = math.tanh %344 : vector<8x128xf32>
    %cst_84 = arith.constant 1.000000e+00 : f32
    %346 = vector.broadcast %cst_84 : f32 to vector<8x128xf32>
    %347 = arith.subf %346, %338 : vector<8x128xf32>
    %348 = arith.mulf %347, %345 : vector<8x128xf32>
    %349 = arith.mulf %338, %297 : vector<8x128xf32>
    %350 = arith.addf %348, %349 : vector<8x128xf32>
    %c40 = arith.constant 40 : index
    %c0_85 = arith.constant 0 : index
    %351 = vector.load %arg15[%c40, %c0_85] : memref<64x128xf32, #tpu.memory_space<vmem>>, vector<8x128xf32>
    tpu.vector_store %arg15[%c40, %c0_85], %350 {strides = array<i32>} : memref<64x128xf32, #tpu.memory_space<vmem>>, vector<8x128xf32>,
    %c6 = arith.constant 6 : index
    %c0_86 = arith.constant 0 : index
    %c0_87 = arith.constant 0 : index
    %352 = vector.load %arg1[%c6, %c0_86, %c0_87] : memref<8x8x384xf32, #tpu.memory_space<vmem>>, vector<1x8x384xf32>
    %353 = vector.shape_cast %352 : vector<1x8x384xf32> to vector<8x384xf32>
    %354 = arith.truncf %325 : vector<8x128xf32> to vector<8x128xbf16>
    %cst_88 = arith.constant dense<0.000000e+00> : vector<8x384xf32>
    %355 = tpu.matmul %354, %0, %cst_88 {dimension_numbers = #tpu.dot_dimension_numbers<[1], [0], [0], [1], [0, 0, 1, 1], [], []>} : vector<8x128xbf16>, vector<128x384xbf16>, vector<8x384xf32> -> vector<8x384xf32>
    %356 = vector.extract_strided_slice %353 {offsets = [0, 0], sizes = [8, 256], strides = [1, 1]} : vector<8x384xf32> to vector<8x256xf32>
    %357 = vector.extract_strided_slice %355 {offsets = [0, 0], sizes = [8, 256], strides = [1, 1]} : vector<8x384xf32> to vector<8x256xf32>
    %358 = arith.addf %356, %357 : vector<8x256xf32>
    %359 = arith.addf %358, %6 : vector<8x256xf32>
    %360 = arith.negf %359 : vector<8x256xf32>
    %361 = math.exp %360 : vector<8x256xf32>
    %cst_89 = arith.constant 1.000000e+00 : f32
    %362 = vector.broadcast %cst_89 : f32 to vector<8x256xf32>
    %363 = arith.addf %362, %361 : vector<8x256xf32>
    %364 = arith.divf %362, %363 : vector<8x256xf32>
    %365 = vector.extract_strided_slice %364 {offsets = [0, 0], sizes = [8, 128], strides = [1, 1]} : vector<8x256xf32> to vector<8x128xf32>
    %366 = vector.extract_strided_slice %364 {offsets = [0, 128], sizes = [8, 128], strides = [1, 1]} : vector<8x256xf32> to vector<8x128xf32>
    %367 = vector.extract_strided_slice %353 {offsets = [0, 256], sizes = [8, 128], strides = [1, 1]} : vector<8x384xf32> to vector<8x128xf32>
    %368 = arith.addf %367, %14 : vector<8x128xf32>
    %369 = vector.extract_strided_slice %355 {offsets = [0, 256], sizes = [8, 128], strides = [1, 1]} : vector<8x384xf32> to vector<8x128xf32>
    %370 = arith.addf %369, %22 : vector<8x128xf32>
    %371 = arith.mulf %365, %370 : vector<8x128xf32>
    %372 = arith.addf %368, %371 : vector<8x128xf32>
    %373 = math.tanh %372 : vector<8x128xf32>
    %cst_90 = arith.constant 1.000000e+00 : f32
    %374 = vector.broadcast %cst_90 : f32 to vector<8x128xf32>
    %375 = arith.subf %374, %366 : vector<8x128xf32>
    %376 = arith.mulf %375, %373 : vector<8x128xf32>
    %377 = arith.mulf %366, %325 : vector<8x128xf32>
    %378 = arith.addf %376, %377 : vector<8x128xf32>
    %379 = arith.truncf %378 : vector<8x128xf32> to vector<8x128xbf16>
    %380 = arith.truncf %350 : vector<8x128xf32> to vector<8x128xbf16>
    %381 = tpu.concatenate %379, %380 in 1 : vector<8x128xbf16>, vector<8x128xbf16> -> vector<8x256xbf16>
    %cst_91 = arith.constant dense<0.000000e+00> : vector<8x512xf32>
    %382 = tpu.matmul %381, %1, %cst_91 {dimension_numbers = #tpu.dot_dimension_numbers<[1], [0], [0], [1], [0, 0, 1, 1], [], []>} : vector<8x256xbf16>, vector<256x512xbf16>, vector<8x512xf32> -> vector<8x512xf32>
    %383 = vector.extract_strided_slice %382 {offsets = [0, 0], sizes = [8, 256], strides = [1, 1]} : vector<8x512xf32> to vector<8x256xf32>
    %384 = arith.addf %383, %10 : vector<8x256xf32>
    %385 = arith.negf %384 : vector<8x256xf32>
    %386 = math.exp %385 : vector<8x256xf32>
    %cst_92 = arith.constant 1.000000e+00 : f32
    %387 = vector.broadcast %cst_92 : f32 to vector<8x256xf32>
    %388 = arith.addf %387, %386 : vector<8x256xf32>
    %389 = arith.divf %387, %388 : vector<8x256xf32>
    %390 = vector.extract_strided_slice %389 {offsets = [0, 0], sizes = [8, 128], strides = [1, 1]} : vector<8x256xf32> to vector<8x128xf32>
    %391 = vector.extract_strided_slice %389 {offsets = [0, 128], sizes = [8, 128], strides = [1, 1]} : vector<8x256xf32> to vector<8x128xf32>
    %392 = vector.extract_strided_slice %382 {offsets = [0, 256], sizes = [8, 128], strides = [1, 1]} : vector<8x512xf32> to vector<8x128xf32>
    %393 = arith.addf %392, %18 : vector<8x128xf32>
    %394 = vector.extract_strided_slice %382 {offsets = [0, 384], sizes = [8, 128], strides = [1, 1]} : vector<8x512xf32> to vector<8x128xf32>
    %395 = arith.addf %394, %26 : vector<8x128xf32>
    %396 = arith.mulf %390, %395 : vector<8x128xf32>
    %397 = arith.addf %393, %396 : vector<8x128xf32>
    %398 = math.tanh %397 : vector<8x128xf32>
    %cst_93 = arith.constant 1.000000e+00 : f32
    %399 = vector.broadcast %cst_93 : f32 to vector<8x128xf32>
    %400 = arith.subf %399, %391 : vector<8x128xf32>
    %401 = arith.mulf %400, %398 : vector<8x128xf32>
    %402 = arith.mulf %391, %350 : vector<8x128xf32>
    %403 = arith.addf %401, %402 : vector<8x128xf32>
    %c48 = arith.constant 48 : index
    %c0_94 = arith.constant 0 : index
    %404 = vector.load %arg15[%c48, %c0_94] : memref<64x128xf32, #tpu.memory_space<vmem>>, vector<8x128xf32>
    tpu.vector_store %arg15[%c48, %c0_94], %403 {strides = array<i32>} : memref<64x128xf32, #tpu.memory_space<vmem>>, vector<8x128xf32>,
    %c7 = arith.constant 7 : index
    %c0_95 = arith.constant 0 : index
    %c0_96 = arith.constant 0 : index
    %405 = vector.load %arg1[%c7, %c0_95, %c0_96] : memref<8x8x384xf32, #tpu.memory_space<vmem>>, vector<1x8x384xf32>
    %406 = vector.shape_cast %405 : vector<1x8x384xf32> to vector<8x384xf32>
    %407 = arith.truncf %378 : vector<8x128xf32> to vector<8x128xbf16>
    %cst_97 = arith.constant dense<0.000000e+00> : vector<8x384xf32>
    %408 = tpu.matmul %407, %0, %cst_97 {dimension_numbers = #tpu.dot_dimension_numbers<[1], [0], [0], [1], [0, 0, 1, 1], [], []>} : vector<8x128xbf16>, vector<128x384xbf16>, vector<8x384xf32> -> vector<8x384xf32>
    %409 = vector.extract_strided_slice %406 {offsets = [0, 0], sizes = [8, 256], strides = [1, 1]} : vector<8x384xf32> to vector<8x256xf32>
    %410 = vector.extract_strided_slice %408 {offsets = [0, 0], sizes = [8, 256], strides = [1, 1]} : vector<8x384xf32> to vector<8x256xf32>
    %411 = arith.addf %409, %410 : vector<8x256xf32>
    %412 = arith.addf %411, %6 : vector<8x256xf32>
    %413 = arith.negf %412 : vector<8x256xf32>
    %414 = math.exp %413 : vector<8x256xf32>
    %cst_98 = arith.constant 1.000000e+00 : f32
    %415 = vector.broadcast %cst_98 : f32 to vector<8x256xf32>
    %416 = arith.addf %415, %414 : vector<8x256xf32>
    %417 = arith.divf %415, %416 : vector<8x256xf32>
    %418 = vector.extract_strided_slice %417 {offsets = [0, 0], sizes = [8, 128], strides = [1, 1]} : vector<8x256xf32> to vector<8x128xf32>
    %419 = vector.extract_strided_slice %417 {offsets = [0, 128], sizes = [8, 128], strides = [1, 1]} : vector<8x256xf32> to vector<8x128xf32>
    %420 = vector.extract_strided_slice %406 {offsets = [0, 256], sizes = [8, 128], strides = [1, 1]} : vector<8x384xf32> to vector<8x128xf32>
    %421 = arith.addf %420, %14 : vector<8x128xf32>
    %422 = vector.extract_strided_slice %408 {offsets = [0, 256], sizes = [8, 128], strides = [1, 1]} : vector<8x384xf32> to vector<8x128xf32>
    %423 = arith.addf %422, %22 : vector<8x128xf32>
    %424 = arith.mulf %418, %423 : vector<8x128xf32>
    %425 = arith.addf %421, %424 : vector<8x128xf32>
    %426 = math.tanh %425 : vector<8x128xf32>
    %cst_99 = arith.constant 1.000000e+00 : f32
    %427 = vector.broadcast %cst_99 : f32 to vector<8x128xf32>
    %428 = arith.subf %427, %419 : vector<8x128xf32>
    %429 = arith.mulf %428, %426 : vector<8x128xf32>
    %430 = arith.mulf %419, %378 : vector<8x128xf32>
    %431 = arith.addf %429, %430 : vector<8x128xf32>
    %432 = arith.truncf %431 : vector<8x128xf32> to vector<8x128xbf16>
    %433 = arith.truncf %403 : vector<8x128xf32> to vector<8x128xbf16>
    %434 = tpu.concatenate %432, %433 in 1 : vector<8x128xbf16>, vector<8x128xbf16> -> vector<8x256xbf16>
    %cst_100 = arith.constant dense<0.000000e+00> : vector<8x512xf32>
    %435 = tpu.matmul %434, %1, %cst_100 {dimension_numbers = #tpu.dot_dimension_numbers<[1], [0], [0], [1], [0, 0, 1, 1], [], []>} : vector<8x256xbf16>, vector<256x512xbf16>, vector<8x512xf32> -> vector<8x512xf32>
    %436 = vector.extract_strided_slice %435 {offsets = [0, 0], sizes = [8, 256], strides = [1, 1]} : vector<8x512xf32> to vector<8x256xf32>
    %437 = arith.addf %436, %10 : vector<8x256xf32>
    %438 = arith.negf %437 : vector<8x256xf32>
    %439 = math.exp %438 : vector<8x256xf32>
    %cst_101 = arith.constant 1.000000e+00 : f32
    %440 = vector.broadcast %cst_101 : f32 to vector<8x256xf32>
    %441 = arith.addf %440, %439 : vector<8x256xf32>
    %442 = arith.divf %440, %441 : vector<8x256xf32>
    %443 = vector.extract_strided_slice %442 {offsets = [0, 0], sizes = [8, 128], strides = [1, 1]} : vector<8x256xf32> to vector<8x128xf32>
    %444 = vector.extract_strided_slice %442 {offsets = [0, 128], sizes = [8, 128], strides = [1, 1]} : vector<8x256xf32> to vector<8x128xf32>
    %445 = vector.extract_strided_slice %435 {offsets = [0, 256], sizes = [8, 128], strides = [1, 1]} : vector<8x512xf32> to vector<8x128xf32>
    %446 = arith.addf %445, %18 : vector<8x128xf32>
    %447 = vector.extract_strided_slice %435 {offsets = [0, 384], sizes = [8, 128], strides = [1, 1]} : vector<8x512xf32> to vector<8x128xf32>
    %448 = arith.addf %447, %26 : vector<8x128xf32>
    %449 = arith.mulf %443, %448 : vector<8x128xf32>
    %450 = arith.addf %446, %449 : vector<8x128xf32>
    %451 = math.tanh %450 : vector<8x128xf32>
    %cst_102 = arith.constant 1.000000e+00 : f32
    %452 = vector.broadcast %cst_102 : f32 to vector<8x128xf32>
    %453 = arith.subf %452, %444 : vector<8x128xf32>
    %454 = arith.mulf %453, %451 : vector<8x128xf32>
    %455 = arith.mulf %444, %403 : vector<8x128xf32>
    %456 = arith.addf %454, %455 : vector<8x128xf32>
    %c56 = arith.constant 56 : index
    %c0_103 = arith.constant 0 : index
    %457 = vector.load %arg15[%c56, %c0_103] : memref<64x128xf32, #tpu.memory_space<vmem>>, vector<8x128xf32>
    tpu.vector_store %arg15[%c56, %c0_103], %456 {strides = array<i32>} : memref<64x128xf32, #tpu.memory_space<vmem>>, vector<8x128xf32>,
    %c0_104 = arith.constant 0 : index
    %c0_105 = arith.constant 0 : index
    %c0_106 = arith.constant 0 : index
    %458 = vector.load %arg11[%c0_104, %c0_105, %c0_106] : memref<2x8x128xf32, #tpu.memory_space<vmem>>, vector<1x8x128xf32>
    %459 = vector.shape_cast %458 : vector<1x8x128xf32> to vector<8x128xf32>
    %460 = vector.shape_cast %431 : vector<8x128xf32> to vector<1x8x128xf32>
    tpu.vector_store %arg11[%c0_104, %c0_105, %c0_106], %460 {strides = array<i32>} : memref<2x8x128xf32, #tpu.memory_space<vmem>>, vector<1x8x128xf32>,
    %c1_107 = arith.constant 1 : index
    %c0_108 = arith.constant 0 : index
    %c0_109 = arith.constant 0 : index
    %461 = vector.load %arg11[%c1_107, %c0_108, %c0_109] : memref<2x8x128xf32, #tpu.memory_space<vmem>>, vector<1x8x128xf32>
    %462 = vector.shape_cast %461 : vector<1x8x128xf32> to vector<8x128xf32>
    %463 = vector.shape_cast %456 : vector<8x128xf32> to vector<1x8x128xf32>
    tpu.vector_store %arg11[%c1_107, %c0_108, %c0_109], %463 {strides = array<i32>} : memref<2x8x128xf32, #tpu.memory_space<vmem>>, vector<1x8x128xf32>,
    %c0_110 = arith.constant 0 : index
    %c0_111 = arith.constant 0 : index
    %464 = vector.load %arg15[%c0_110, %c0_111] : memref<64x128xf32, #tpu.memory_space<vmem>>, vector<64x128xf32>
    %465 = arith.truncf %464 : vector<64x128xf32> to vector<64x128xbf16>
    %cst_112 = arith.constant dense<0.000000e+00> : vector<64x256xf32>
    %466 = tpu.matmul %465, %2, %cst_112 {dimension_numbers = #tpu.dot_dimension_numbers<[1], [0], [0], [1], [0, 0, 1, 1], [], []>} : vector<64x128xbf16>, vector<128x256xbf16>, vector<64x256xf32> -> vector<64x256xf32>
    %467 = arith.addf %466, %29 : vector<64x256xf32>
    %cst_113 = arith.constant 0.000000e+00 : f32
    %468 = vector.broadcast %cst_113 : f32 to vector<64x256xf32>
    %469 = arith.maximumf %467, %468 : vector<64x256xf32>
    %470 = vector.shape_cast %469 : vector<64x256xf32> to vector<8x8x256xf32>
    %471 = vector.extract_strided_slice %470 {offsets = [0, 0, 0], sizes = [8, 8, 128], strides = [1, 1, 1]} : vector<8x8x256xf32> to vector<8x8x128xf32>
    %472 = vector.extract_strided_slice %470 {offsets = [0, 0, 128], sizes = [8, 8, 128], strides = [1, 1, 1]} : vector<8x8x256xf32> to vector<8x8x128xf32>
    %cst_114 = arith.constant 5.000000e-01 : f32
    %473 = vector.broadcast %cst_114 : f32 to vector<8x8x128xf32>
    %474 = arith.mulf %473, %472 : vector<8x8x128xf32>
    %475 = math.exp %474 : vector<8x8x128xf32>
    %c0_115 = arith.constant 0 : index
    %c0_116 = arith.constant 0 : index
    %c0_117 = arith.constant 0 : index
    %476 = vector.load %arg2[%c0_115, %c0_116, %c0_117] : memref<8x8x128xf32, #tpu.memory_space<vmem>>, vector<8x8x128xf32>
    %477 = arith.mulf %476, %475 : vector<8x8x128xf32>
    %478 = arith.addf %477, %471 : vector<8x8x128xf32>
    %c0_118 = arith.constant 0 : index
    %c0_119 = arith.constant 0 : index
    %c0_120 = arith.constant 0 : index
    %479 = vector.load %arg12[%c0_118, %c0_119, %c0_120] : memref<8x8x128xf32, #tpu.memory_space<vmem>>, vector<8x8x128xf32>
    tpu.vector_store %arg12[%c0_118, %c0_119, %c0_120], %478 {strides = array<i32>} : memref<8x8x128xf32, #tpu.memory_space<vmem>>, vector<8x8x128xf32>,
    %c0_121 = arith.constant 0 : index
    %c0_122 = arith.constant 0 : index
    %c0_123 = arith.constant 0 : index
    %480 = vector.load %arg13[%c0_121, %c0_122, %c0_123] : memref<8x8x128xf32, #tpu.memory_space<vmem>>, vector<8x8x128xf32>
    tpu.vector_store %arg13[%c0_121, %c0_122, %c0_123], %471 {strides = array<i32>} : memref<8x8x128xf32, #tpu.memory_space<vmem>>, vector<8x8x128xf32>,
    %c0_124 = arith.constant 0 : index
    %c0_125 = arith.constant 0 : index
    %c0_126 = arith.constant 0 : index
    %481 = vector.load %arg14[%c0_124, %c0_125, %c0_126] : memref<8x8x128xf32, #tpu.memory_space<vmem>>, vector<8x8x128xf32>
    tpu.vector_store %arg14[%c0_124, %c0_125, %c0_126], %472 {strides = array<i32>} : memref<8x8x128xf32, #tpu.memory_space<vmem>>, vector<8x8x128xf32>,
    return
  }
  func.func @transform_0(%arg0: i32) -> (i32, i32, i32) {
    %c0_i32 = arith.constant 0 : i32
    %c0_i32_0 = arith.constant 0 : i32
    %c0_i32_1 = arith.constant 0 : i32
    %c0_i32_2 = arith.constant 0 : i32
    return %c0_i32, %c0_i32_0, %c0_i32_1 : i32, i32, i32
  }
  func.func @transform_1(%arg0: i32) -> (i32, i32, i32) {
    %c0_i32 = arith.constant 0 : i32
    %c0_i32_0 = arith.constant 0 : i32
    %c0_i32_1 = arith.constant 0 : i32
    %c0_i32_2 = arith.constant 0 : i32
    return %c0_i32, %c0_i32_0, %c0_i32_1 : i32, i32, i32
  }
  func.func @transform_2(%arg0: i32) -> (i32, i32, i32) {
    %c0_i32 = arith.constant 0 : i32
    %c0_i32_0 = arith.constant 0 : i32
    %c0_i32_1 = arith.constant 0 : i32
    %c0_i32_2 = arith.constant 0 : i32
    return %c0_i32, %c0_i32_0, %c0_i32_1 : i32, i32, i32
  }
  func.func @transform_3(%arg0: i32) -> (i32, i32) {
    %c0_i32 = arith.constant 0 : i32
    %c0_i32_0 = arith.constant 0 : i32
    %c0_i32_1 = arith.constant 0 : i32
    return %c0_i32, %c0_i32_0 : i32, i32
  }
  func.func @transform_4(%arg0: i32) -> (i32, i32) {
    %c0_i32 = arith.constant 0 : i32
    %c0_i32_0 = arith.constant 0 : i32
    %c0_i32_1 = arith.constant 0 : i32
    return %c0_i32, %c0_i32_0 : i32, i32
  }
  func.func @transform_5(%arg0: i32) -> (i32, i32, i32) {
    %c0_i32 = arith.constant 0 : i32
    %c0_i32_0 = arith.constant 0 : i32
    %c0_i32_1 = arith.constant 0 : i32
    %c0_i32_2 = arith.constant 0 : i32
    return %c0_i32, %c0_i32_0, %c0_i32_1 : i32, i32, i32
  }
  func.func @transform_6(%arg0: i32) -> (i32, i32, i32) {
    %c0_i32 = arith.constant 0 : i32
    %c0_i32_0 = arith.constant 0 : i32
    %c0_i32_1 = arith.constant 0 : i32
    %c0_i32_2 = arith.constant 0 : i32
    return %c0_i32, %c0_i32_0, %c0_i32_1 : i32, i32, i32
  }
  func.func @transform_7(%arg0: i32) -> (i32, i32, i32) {
    %c0_i32 = arith.constant 0 : i32
    %c0_i32_0 = arith.constant 0 : i32
    %c0_i32_1 = arith.constant 0 : i32
    %c0_i32_2 = arith.constant 0 : i32
    return %c0_i32, %c0_i32_0, %c0_i32_1 : i32, i32, i32
  }
  func.func @transform_8(%arg0: i32) -> (i32, i32) {
    %c0_i32 = arith.constant 0 : i32
    %c0_i32_0 = arith.constant 0 : i32
    %c0_i32_1 = arith.constant 0 : i32
    return %c0_i32, %c0_i32_0 : i32, i32
  }
  func.func @transform_9(%arg0: i32) -> (i32, i32) {
    %c0_i32 = arith.constant 0 : i32
    %c0_i32_0 = arith.constant 0 : i32
    %c0_i32_1 = arith.constant 0 : i32
    return %c0_i32, %c0_i32_0 : i32, i32
  }
  func.func @transform_10(%arg0: i32) -> (i32, i32, i32) {
    %c0_i32 = arith.constant 0 : i32
    %c0_i32_0 = arith.constant 0 : i32
    %c0_i32_1 = arith.constant 0 : i32
    %c0_i32_2 = arith.constant 0 : i32
    return %c0_i32, %c0_i32_0, %c0_i32_1 : i32, i32, i32
  }
  func.func @transform_11(%arg0: i32) -> (i32, i32, i32) {
    %c0_i32 = arith.constant 0 : i32
    %c0_i32_0 = arith.constant 0 : i32
    %c0_i32_1 = arith.constant 0 : i32
    %c0_i32_2 = arith.constant 0 : i32
    return %c0_i32, %c0_i32_0, %c0_i32_1 : i32, i32, i32
  }
  func.func @transform_12(%arg0: i32) -> (i32, i32, i32) {
    %c0_i32 = arith.constant 0 : i32
    %c0_i32_0 = arith.constant 0 : i32
    %c0_i32_1 = arith.constant 0 : i32
    %c0_i32_2 = arith.constant 0 : i32
    return %c0_i32, %c0_i32_0, %c0_i32_1 : i32, i32, i32
  }
  func.func @transform_13(%arg0: i32) -> (i32, i32, i32) {
    %c0_i32 = arith.constant 0 : i32
    %c0_i32_0 = arith.constant 0 : i32
    %c0_i32_1 = arith.constant 0 : i32
    %c0_i32_2 = arith.constant 0 : i32
    return %c0_i32, %c0_i32_0, %c0_i32_1 : i32, i32, i32
  }
}

</mosaic_0001>

<llo_original>
// kernel: tpu_custom_call.1
$region0: #{tpu_custom_call.1}
  #allocation0 [shape = 'u32[]', space=smem, size = 0x4, offset = 0x4, fixed_abs, tag = 'smem constant byte address 0x4 - core index']
  #allocation1 [shape = 'u32[144,128]{1,0:T(1,128)}', space=vmem, size = 0x12000, scoped, tag = 'internal scratch']
  #allocation2 [shape = 'f32[64,128]{1,0:T(8,128)}', space=vmem, size = 0x8000, scoped, tag = 'scratch operand']
  %s0 = inlined_call_operand.hbm [shape: f32[8,8,384], index: 0, kind: input, shape index: {}]
  %s1 = inlined_call_operand.hbm [shape: f32[8,8,128], index: 1, kind: input, shape index: {}]
  %s2 = inlined_call_operand.hbm [shape: f32[2,8,128], index: 2, kind: input, shape index: {}]
  %s3 = inlined_call_operand.hbm [shape: bf16[128,384], index: 3, kind: input, shape index: {}]
  %s4 = inlined_call_operand.hbm [shape: bf16[256,512], index: 4, kind: input, shape index: {}]
  %s5 = inlined_call_operand.vmem [shape: f32[2,1,256], index: 5, kind: input, shape index: {}]
  %s6 = inlined_call_operand.vmem [shape: f32[2,1,128], index: 6, kind: input, shape index: {}]
  %s7 = inlined_call_operand.vmem [shape: f32[2,1,128], index: 7, kind: input, shape index: {}]
  %s8 = inlined_call_operand.hbm [shape: bf16[128,256], index: 8, kind: input, shape index: {}]
  %s9 = inlined_call_operand.vmem [shape: f32[1,256], index: 9, kind: input, shape index: {}]
  %s10 = inlined_call_operand.hbm [shape: f32[2,8,128], index: 10, kind: output, shape index: {0}]
  %s11 = inlined_call_operand.hbm [shape: f32[8,8,128], index: 11, kind: output, shape index: {1}]
  %s12 = inlined_call_operand.hbm [shape: f32[8,8,128], index: 12, kind: output, shape index: {2}]
  %s13 = inlined_call_operand.hbm [shape: f32[8,8,128], index: 13, kind: output, shape index: {3}]
  %14 = xla_tuple %s10, %s11, %s12, %s13
  %s15 = sld [smem:[#allocation0]]
  $region98: #{tpu_custom_call.1} parent=0
    _
  %s17 = ssub.s32 1, %s15
  %s18 = scalar_select 0, %s17, %s15
  $region1: #{tpu_custom_call.1} parent=0
    #allocation3 [shape = 'u8[98304]{0}', space=vmem, size = 0x18000, scoped, tag = 'input window, operand 0, single buffered']
    #allocation4 [shape = 's32[1]{0}', space=sflag, size = 0x4, scoped, tag = 'scoped memory for tpu_custom_call.1']
    #allocation5 [shape = 's32[1]{0}', space=sflag, size = 0x4, scoped, tag = 'scoped memory for tpu_custom_call.1']
    #allocation6 [shape = 'u8[32768]{0}', space=vmem, size = 0x8000, scoped, tag = 'input window, operand 1, single buffered']
    #allocation7 [shape = 's32[1]{0}', space=sflag, size = 0x4, scoped, tag = 'scoped memory for tpu_custom_call.1']
    #allocation8 [shape = 'u8[8192]{0}', space=vmem, size = 0x2000, scoped, tag = 'input window, operand 2, single buffered']
    #allocation9 [shape = 'u8[98304]{0}', space=vmem, size = 0x18000, scoped, tag = 'input window, operand 3, single buffered']
    #allocation10 [shape = 's32[1]{0}', space=sflag, size = 0x4, scoped, tag = 'scoped memory for tpu_custom_call.1']
    #allocation11 [shape = 'u8[262144]{0}', space=vmem, size = 0x40000, scoped, tag = 'input window, operand 4, single buffered']
    #allocation12 [shape = 'u8[65536]{0}', space=vmem, size = 0x10000, scoped, tag = 'input window, operand 8, single buffered']
    #allocation13 [shape = 's32[1]{0}', space=sflag, size = 0x4, scoped, tag = 'scoped memory for tpu_custom_call.1']
    #allocation14 [shape = 'u8[8192]{0}', space=vmem, size = 0x2000, scoped, tag = 'output window, operand 0, single buffered']
    #allocation15 [shape = 'u8[32768]{0}', space=vmem, size = 0x8000, scoped, tag = 'output window, operand 1, single buffered']
    #allocation16 [shape = 's32[1]{0}', space=sflag, size = 0x4, scoped, tag = 'scoped memory for tpu_custom_call.1']
    #allocation17 [shape = 'u8[32768]{0}', space=vmem, size = 0x8000, scoped, tag = 'output window, operand 2, single buffered']
    #allocation18 [shape = 'u8[32768]{0}', space=vmem, size = 0x8000, scoped, tag = 'output window, operand 3, single buffered']
    #allocation19 [shape = 's32[1]{0}', space=sflag, size = 0x4, scoped, tag = 'scoped memory for tpu_custom_call.1']
    %19 = vsyncpa [#allocation4], 0
    %20 = vsyncpa [#allocation7], 0
    %21 = vsyncpa [#allocation10], 0
    %22 = vsyncpa [#allocation13], 0
    %23 = vsyncpa [#allocation5], 0
    %24 = vsyncpa [#allocation16], 0
    %25 = vsyncpa [#allocation19], 0
    // Predicated region
    $region2: #{tpu_custom_call.1} parent=1 // pred_check
      _
    $region3: #{tpu_custom_call.1} parent=1 // pred_check_branch
      %27 = sbr.rel (0) target = $region5
    $region4: #{tpu_custom_call.1} parent=1 // pred_region
      %s29 = ssub.s32 3072, 3072
      %30 = vsyncadd [#allocation4], %s29
      %s31 = sshll.u32 [#allocation3], 4
      %s32 = int_to_ptr.vmem [resolvable:$true] %s31
      %37 = dma.hbm_to_vmem [thread:$0]  %s0, 3072, %s32, [#allocation4], 384, 384, 24
    $region5: #{tpu_custom_call.1} parent=1 // pred_fallthru
      _
    // Predicated region
    $region6: #{tpu_custom_call.1} parent=1 // pred_check
      _
    $region7: #{tpu_custom_call.1} parent=1 // pred_check_branch
      %39 = sbr.rel (0) target = $region9
    $region8: #{tpu_custom_call.1} parent=1 // pred_region
      %s41 = ssub.s32 1024, 1024
      %42 = vsyncadd [#allocation7], %s41
      %s43 = sshll.u32 [#allocation6], 4
      %s44 = int_to_ptr.vmem [resolvable:$true] %s43
      %49 = dma.hbm_to_vmem [thread:$0]  %s1, 1024, %s44, [#allocation7], 128, 128, 8
    $region9: #{tpu_custom_call.1} parent=1 // pred_fallthru
      _
    // Predicated region
    $region10: #{tpu_custom_call.1} parent=1 // pred_check
      _
    $region11: #{tpu_custom_call.1} parent=1 // pred_check_branch
      %51 = sbr.rel (0) target = $region13
    $region12: #{tpu_custom_call.1} parent=1 // pred_region
      %s53 = ssub.s32 256, 256
      %54 = vsyncadd [#allocation7], %s53
      %s55 = sshll.u32 [#allocation8], 4
      %s56 = int_to_ptr.vmem [resolvable:$true] %s55
      %61 = dma.hbm_to_vmem [thread:$0]  %s2, 256, %s56, [#allocation7], 128, 128, 8
    $region13: #{tpu_custom_call.1} parent=1 // pred_fallthru
      _
    // Predicated region
    $region14: #{tpu_custom_call.1} parent=1 // pred_check
      _
    $region15: #{tpu_custom_call.1} parent=1 // pred_check_branch
      %63 = sbr.rel (0) target = $region17
    $region16: #{tpu_custom_call.1} parent=1 // pred_region
      %s65 = ssub.s32 3072, 3072
      %66 = vsyncadd [#allocation10], %s65
      %s67 = sshll.u32 [#allocation9], 4
      %s68 = int_to_ptr.vmem [resolvable:$true] %s67
      %73 = dma.hbm_to_vmem [thread:$0]  %s3, 3072, %s68, [#allocation10], 192, 192, 12
    $region17: #{tpu_custom_call.1} parent=1 // pred_fallthru
      _
    // Predicated region
    $region18: #{tpu_custom_call.1} parent=1 // pred_check
      _
    $region19: #{tpu_custom_call.1} parent=1 // pred_check_branch
      %75 = sbr.rel (0) target = $region21
    $region20: #{tpu_custom_call.1} parent=1 // pred_region
      %s77 = ssub.s32 8192, 8192
      %78 = vsyncadd [#allocation10], %s77
      %s79 = sshll.u32 [#allocation11], 4
      %s80 = int_to_ptr.vmem [resolvable:$true] %s79
      %85 = dma.hbm_to_vmem [thread:$0]  %s4, 8192, %s80, [#allocation10], 256, 256, 16
    $region21: #{tpu_custom_call.1} parent=1 // pred_fallthru
      _
    // Predicated region
    $region22: #{tpu_custom_call.1} parent=1 // pred_check
      _
    $region23: #{tpu_custom_call.1} parent=1 // pred_check_branch
      %87 = sbr.rel (0) target = $region25
    $region24: #{tpu_custom_call.1} parent=1 // pred_region
      _
    $region25: #{tpu_custom_call.1} parent=1 // pred_fallthru
      _
    // Predicated region
    $region26: #{tpu_custom_call.1} parent=1 // pred_check
      _
    $region27: #{tpu_custom_call.1} parent=1 // pred_check_branch
      %89 = sbr.rel (0) target = $region29
    $region28: #{tpu_custom_call.1} parent=1 // pred_region
      _
    $region29: #{tpu_custom_call.1} parent=1 // pred_fallthru
      _
    // Predicated region
    $region30: #{tpu_custom_call.1} parent=1 // pred_check
      _
    $region31: #{tpu_custom_call.1} parent=1 // pred_check_branch
      %91 = sbr.rel (0) target = $region33
    $region32: #{tpu_custom_call.1} parent=1 // pred_region
      _
    $region33: #{tpu_custom_call.1} parent=1 // pred_fallthru
      _
    // Predicated region
    $region34: #{tpu_custom_call.1} parent=1 // pred_check
      _
    $region35: #{tpu_custom_call.1} parent=1 // pred_check_branch
      %93 = sbr.rel (0) target = $region37
    $region36: #{tpu_custom_call.1} parent=1 // pred_region
      %s95 = ssub.s32 2048, 2048
      %96 = vsyncadd [#allocation13], %s95
      %s97 = sshll.u32 [#allocation12], 4
      %s98 = int_to_ptr.vmem [resolvable:$true] %s97
      %103 = dma.hbm_to_vmem [thread:$0]  %s8, 2048, %s98, [#allocation13], 128, 128, 8
    $region37: #{tpu_custom_call.1} parent=1 // pred_fallthru
      _
    // Predicated region
    $region38: #{tpu_custom_call.1} parent=1 // pred_check
      _
    $region39: #{tpu_custom_call.1} parent=1 // pred_check_branch
      %105 = sbr.rel (0) target = $region41
    $region40: #{tpu_custom_call.1} parent=1 // pred_region
      _
    $region41: #{tpu_custom_call.1} parent=1 // pred_fallthru
      _
    // Predicated region
    $region42: #{tpu_custom_call.1} parent=1 // pred_check
      _
    $region43: #{tpu_custom_call.1} parent=1 // pred_check_branch
      %107 = sbr.rel (0) target = $region45
    $region44: #{tpu_custom_call.1} parent=1 // pred_region
      %108 = dma.done [#allocation4], 3072
    $region45: #{tpu_custom_call.1} parent=1 // pred_fallthru
      _
    // Predicated region
    $region46: #{tpu_custom_call.1} parent=1 // pred_check
      _
    $region47: #{tpu_custom_call.1} parent=1 // pred_check_branch
      %110 = sbr.rel (0) target = $region49
    $region48: #{tpu_custom_call.1} parent=1 // pred_region
      %111 = dma.done [#allocation7], 1024
    $region49: #{tpu_custom_call.1} parent=1 // pred_fallthru
      _
    // Predicated region
    $region50: #{tpu_custom_call.1} parent=1 // pred_check
      _
    $region51: #{tpu_custom_call.1} parent=1 // pred_check_branch
      %113 = sbr.rel (0) target = $region53
    $region52: #{tpu_custom_call.1} parent=1 // pred_region
      %114 = dma.done [#allocation7], 256
    $region53: #{tpu_custom_call.1} parent=1 // pred_fallthru
      _
    // Predicated region
    $region54: #{tpu_custom_call.1} parent=1 // pred_check
      _
    $region55: #{tpu_custom_call.1} parent=1 // pred_check_branch
      %116 = sbr.rel (0) target = $region57
    $region56: #{tpu_custom_call.1} parent=1 // pred_region
      %117 = dma.done [#allocation10], 3072
    $region57: #{tpu_custom_call.1} parent=1 // pred_fallthru
      _
    // Predicated region
    $region58: #{tpu_custom_call.1} parent=1 // pred_check
      _
    $region59: #{tpu_custom_call.1} parent=1 // pred_check_branch
      %119 = sbr.rel (0) target = $region61
    $region60: #{tpu_custom_call.1} parent=1 // pred_region
      %120 = dma.done [#allocation10], 8192
    $region61: #{tpu_custom_call.1} parent=1 // pred_fallthru
      _
    // Predicated region
    $region62: #{tpu_custom_call.1} parent=1 // pred_check
      _
    $region63: #{tpu_custom_call.1} parent=1 // pred_check_branch
      %122 = sbr.rel (0) target = $region65
    $region64: #{tpu_custom_call.1} parent=1 // pred_region
      %123 = dma.done [#allocation13], 2048
    $region65: #{tpu_custom_call.1} parent=1 // pred_fallthru
      _
    %v125 = vld [vmem:[#allocation9] sm:$0xff]
    %v126 = vld [vmem:[#allocation9 + $0x8] sm:$0xf]
    %v127 = vld [vmem:[#allocation9 + $0xc] sm:$0xff]
    %v128 = vld [vmem:[#allocation9 + $0x14] sm:$0xf]
    %v129 = vld [vmem:[#allocation9 + $0x18] sm:$0xff]
    %v130 = vld [vmem:[#allocation9 + $0x20] sm:$0xf]
    %v131 = vld [vmem:[#allocation9 + $0x24] sm:$0xff]
    %v132 = vld [vmem:[#allocation9 + $0x2c] sm:$0xf]
    %v133 = vld [vmem:[#allocation9 + $0x30] sm:$0xff]
    %v134 = vld [vmem:[#allocation9 + $0x38] sm:$0xf]
    %v135 = vld [vmem:[#allocation9 + $0x3c] sm:$0xff]
    %v136 = vld [vmem:[#allocation9 + $0x44] sm:$0xf]
    %v137 = vld [vmem:[#allocation9 + $0x48] sm:$0xff]
    %v138 = vld [vmem:[#allocation9 + $0x50] sm:$0xf]
    %v139 = vld [vmem:[#allocation9 + $0x54] sm:$0xff]
    %v140 = vld [vmem:[#allocation9 + $0x5c] sm:$0xf]
    %v141 = vld [vmem:[#allocation9 + $0x60] sm:$0xff]
    %v142 = vld [vmem:[#allocation9 + $0x68] sm:$0xf]
    %v143 = vld [vmem:[#allocation9 + $0x6c] sm:$0xff]
    %v144 = vld [vmem:[#allocation9 + $0x74] sm:$0xf]
    %v145 = vld [vmem:[#allocation9 + $0x78] sm:$0xff]
    %v146 = vld [vmem:[#allocation9 + $0x80] sm:$0xf]
    %v147 = vld [vmem:[#allocation9 + $0x84] sm:$0xff]
    %v148 = vld [vmem:[#allocation9 + $0x8c] sm:$0xf]
    %v149 = vld [vmem:[#allocation9 + $0x90] sm:$0xff]
    %v150 = vld [vmem:[#allocation9 + $0x98] sm:$0xf]
    %v151 = vld [vmem:[#allocation9 + $0x9c] sm:$0xff]
    %v152 = vld [vmem:[#allocation9 + $0xa4] sm:$0xf]
    %v153 = vld [vmem:[#allocation9 + $0xa8] sm:$0xff]
    %v154 = vld [vmem:[#allocation9 + $0xb0] sm:$0xf]
    %v155 = vld [vmem:[#allocation9 + $0xb4] sm:$0xff]
    %v156 = vld [vmem:[#allocation9 + $0xbc] sm:$0xf]
    %v157 = vld [vmem:[#allocation11] sm:$0xff]
    %v158 = vld [vmem:[#allocation11 + $0x8] sm:$0xff]
    %v159 = vld [vmem:[#allocation11 + $0x10] sm:$0xff]
    %v160 = vld [vmem:[#allocation11 + $0x18] sm:$0xff]
    %v161 = vld [vmem:[#allocation11 + $0x20] sm:$0xff]
    %v162 = vld [vmem:[#allocation11 + $0x28] sm:$0xff]
    %v163 = vld [vmem:[#allocation11 + $0x30] sm:$0xff]
    %v164 = vld [vmem:[#allocation11 + $0x38] sm:$0xff]
    %v165 = vld [vmem:[#allocation11 + $0x40] sm:$0xff]
    %v166 = vld [vmem:[#allocation11 + $0x48] sm:$0xff]
    %v167 = vld [vmem:[#allocation11 + $0x50] sm:$0xff]
    %v168 = vld [vmem:[#allocation11 + $0x58] sm:$0xff]
    %v169 = vld [vmem:[#allocation11 + $0x60] sm:$0xff]
    %v170 = vld [vmem:[#allocation11 + $0x68] sm:$0xff]
    %v171 = vld [vmem:[#allocation11 + $0x70] sm:$0xff]
    %v172 = vld [vmem:[#allocation11 + $0x78] sm:$0xff]
    %v173 = vld [vmem:[#allocation11 + $0x80] sm:$0xff]
    %v174 = vld [vmem:[#allocation11 + $0x88] sm:$0xff]
    %v175 = vld [vmem:[#allocation11 + $0x90] sm:$0xff]
    %v176 = vld [vmem:[#allocation11 + $0x98] sm:$0xff]
    %v177 = vld [vmem:[#allocation11 + $0xa0] sm:$0xff]
    %v178 = vld [vmem:[#allocation11 + $0xa8] sm:$0xff]
    %v179 = vld [vmem:[#allocation11 + $0xb0] sm:$0xff]
    %v180 = vld [vmem:[#allocation11 + $0xb8] sm:$0xff]
    %v181 = vld [vmem:[#allocation11 + $0xc0] sm:$0xff]
    %v182 = vld [vmem:[#allocation11 + $0xc8] sm:$0xff]
    %v183 = vld [vmem:[#allocation11 + $0xd0] sm:$0xff]
    %v184 = vld [vmem:[#allocation11 + $0xd8] sm:$0xff]
    %v185 = vld [vmem:[#allocation11 + $0xe0] sm:$0xff]
    %v186 = vld [vmem:[#allocation11 + $0xe8] sm:$0xff]
    %v187 = vld [vmem:[#allocation11 + $0xf0] sm:$0xff]
    %v188 = vld [vmem:[#allocation11 + $0xf8] sm:$0xff]
    %v189 = vld [vmem:[#allocation11 + $0x100] sm:$0xff]
    %v190 = vld [vmem:[#allocation11 + $0x108] sm:$0xff]
    %v191 = vld [vmem:[#allocation11 + $0x110] sm:$0xff]
    %v192 = vld [vmem:[#allocation11 + $0x118] sm:$0xff]
    %v193 = vld [vmem:[#allocation11 + $0x120] sm:$0xff]
    %v194 = vld [vmem:[#allocation11 + $0x128] sm:$0xff]
    %v195 = vld [vmem:[#allocation11 + $0x130] sm:$0xff]
    %v196 = vld [vmem:[#allocation11 + $0x138] sm:$0xff]
    %v197 = vld [vmem:[#allocation11 + $0x140] sm:$0xff]
    %v198 = vld [vmem:[#allocation11 + $0x148] sm:$0xff]
    %v199 = vld [vmem:[#allocation11 + $0x150] sm:$0xff]
    %v200 = vld [vmem:[#allocation11 + $0x158] sm:$0xff]
    %v201 = vld [vmem:[#allocation11 + $0x160] sm:$0xff]
    %v202 = vld [vmem:[#allocation11 + $0x168] sm:$0xff]
    %v203 = vld [vmem:[#allocation11 + $0x170] sm:$0xff]
    %v204 = vld [vmem:[#allocation11 + $0x178] sm:$0xff]
    %v205 = vld [vmem:[#allocation11 + $0x180] sm:$0xff]
    %v206 = vld [vmem:[#allocation11 + $0x188] sm:$0xff]
    %v207 = vld [vmem:[#allocation11 + $0x190] sm:$0xff]
    %v208 = vld [vmem:[#allocation11 + $0x198] sm:$0xff]
    %v209 = vld [vmem:[#allocation11 + $0x1a0] sm:$0xff]
    %v210 = vld [vmem:[#allocation11 + $0x1a8] sm:$0xff]
    %v211 = vld [vmem:[#allocation11 + $0x1b0] sm:$0xff]
    %v212 = vld [vmem:[#allocation11 + $0x1b8] sm:$0xff]
    %v213 = vld [vmem:[#allocation11 + $0x1c0] sm:$0xff]
    %v214 = vld [vmem:[#allocation11 + $0x1c8] sm:$0xff]
    %v215 = vld [vmem:[#allocation11 + $0x1d0] sm:$0xff]
    %v216 = vld [vmem:[#allocation11 + $0x1d8] sm:$0xff]
    %v217 = vld [vmem:[#allocation11 + $0x1e0] sm:$0xff]
    %v218 = vld [vmem:[#allocation11 + $0x1e8] sm:$0xff]
    %v219 = vld [vmem:[#allocation11 + $0x1f0] sm:$0xff]
    %v220 = vld [vmem:[#allocation11 + $0x1f8] sm:$0xff]
    %v221 = vld [vmem:[#allocation12] sm:$0xff]
    %v222 = vld [vmem:[#allocation12 + $0x8] sm:$0xff]
    %v223 = vld [vmem:[#allocation12 + $0x10] sm:$0xff]
    %v224 = vld [vmem:[#allocation12 + $0x18] sm:$0xff]
    %v225 = vld [vmem:[#allocation12 + $0x20] sm:$0xff]
    %v226 = vld [vmem:[#allocation12 + $0x28] sm:$0xff]
    %v227 = vld [vmem:[#allocation12 + $0x30] sm:$0xff]
    %v228 = vld [vmem:[#allocation12 + $0x38] sm:$0xff]
    %v229 = vld [vmem:[#allocation12 + $0x40] sm:$0xff]
    %v230 = vld [vmem:[#allocation12 + $0x48] sm:$0xff]
    %v231 = vld [vmem:[#allocation12 + $0x50] sm:$0xff]
    %v232 = vld [vmem:[#allocation12 + $0x58] sm:$0xff]
    %v233 = vld [vmem:[#allocation12 + $0x60] sm:$0xff]
    %v234 = vld [vmem:[#allocation12 + $0x68] sm:$0xff]
    %v235 = vld [vmem:[#allocation12 + $0x70] sm:$0xff]
    %v236 = vld [vmem:[#allocation12 + $0x78] sm:$0xff]
    %v237 = vld [vmem:[%s5] sm:$0x3]
    %v239 = vlaneseq
    %v240 = vshrl.u32 %v239, 7
    %v241 = vsub.s32 0, %v240
    %v242 = vrot.slane %v237, %v241
    %v243 = vlaneseq
    %v244 = vshrl.u32 %v243, 7
    %v245 = vsub.s32 1, %v244
    %v246 = vrot.slane %v237, %v245
    %s249 = scalar_lea.vmem %s5, 2
    %v250 = vld [vmem:[%s249] sm:$0x3]
    %v252 = vlaneseq
    %v253 = vshrl.u32 %v252, 7
    %v254 = vsub.s32 0, %v253
    %v255 = vrot.slane %v250, %v254
    %v256 = vlaneseq
    %v257 = vshrl.u32 %v256, 7
    %v258 = vsub.s32 1, %v257
    %v259 = vrot.slane %v250, %v258
    %v262 = vld [vmem:[%s6] sm:$0x1]
    %v264 = vlaneseq
    %v265 = vshrl.u32 %v264, 7
    %v266 = vsub.s32 0, %v265
    %v267 = vrot.slane %v262, %v266
    %s269 = scalar_lea.vmem %s6, 1
    %v270 = vld [vmem:[%s269] sm:$0x1]
    %v272 = vlaneseq
    %v273 = vshrl.u32 %v272, 7
    %v274 = vsub.s32 0, %v273
    %v275 = vrot.slane %v270, %v274
    %v277 = vld [vmem:[%s7] sm:$0x1]
    %v279 = vlaneseq
    %v280 = vshrl.u32 %v279, 7
    %v281 = vsub.s32 0, %v280
    %v282 = vrot.slane %v277, %v281
    %s284 = scalar_lea.vmem %s7, 1
    %v285 = vld [vmem:[%s284] sm:$0x1]
    %v287 = vlaneseq
    %v288 = vshrl.u32 %v287, 7
    %v289 = vsub.s32 0, %v288
    %v290 = vrot.slane %v285, %v289
    %v292 = vld [vmem:[%s9] sm:$0x3]
    %v294 = vlaneseq
    %v295 = vshrl.u32 %v294, 7
    %v296 = vsub.s32 0, %v295
    %v297 = vrot.slane %v292, %v296
    %v298 = vlaneseq
    %v299 = vshrl.u32 %v298, 7
    %v300 = vsub.s32 1, %v299
    %v301 = vrot.slane %v292, %v300
    %v304 = vld [vmem:[#allocation8] sm:$0xff]
    %s305 = scalar_lea.vmem [#allocation8], 8
    %v306 = vld [vmem:[%s305] sm:$0xff]
    %v307 = vld [vmem:[#allocation3] sm:$0xff]
    %v308 = vld [vmem:[#allocation3 + $0x8] sm:$0xff]
    %v309 = vld [vmem:[#allocation3 + $0x10] sm:$0xff]
    %v310 = vpack.c.bf16 %v304, %v304
    %v343 = vunpack.c.l.b16 %v125
    %v344 = vunpack.c.h.b16 %v125
    %v345 = vunpack.c.l.b16 %v126
    %v346 = vunpack.c.l.b16 %v127
    %v347 = vunpack.c.h.b16 %v127
    %v348 = vunpack.c.l.b16 %v128
    %v349 = vunpack.c.l.b16 %v129
    %v350 = vunpack.c.h.b16 %v129
    %v351 = vunpack.c.l.b16 %v130
    %v352 = vunpack.c.l.b16 %v131
    %v353 = vunpack.c.h.b16 %v131
    %v354 = vunpack.c.l.b16 %v132
    %v355 = vunpack.c.l.b16 %v133
    %v356 = vunpack.c.h.b16 %v133
    %v357 = vunpack.c.l.b16 %v134
    %v358 = vunpack.c.l.b16 %v135
    %v359 = vunpack.c.h.b16 %v135
    %v360 = vunpack.c.l.b16 %v136
    %v361 = vunpack.c.l.b16 %v137
    %v362 = vunpack.c.h.b16 %v137
    %v363 = vunpack.c.l.b16 %v138
    %v364 = vunpack.c.l.b16 %v139
    %v365 = vunpack.c.h.b16 %v139
    %v366 = vunpack.c.l.b16 %v140
    %v367 = vunpack.c.l.b16 %v141
    %v368 = vunpack.c.h.b16 %v141
    %v369 = vunpack.c.l.b16 %v142
    %v370 = vunpack.c.l.b16 %v143
    %v371 = vunpack.c.h.b16 %v143
    %v372 = vunpack.c.l.b16 %v144
    %v373 = vunpack.c.l.b16 %v145
    %v374 = vunpack.c.h.b16 %v145
    %v375 = vunpack.c.l.b16 %v146
    %v376 = vunpack.c.l.b16 %v147
    %v377 = vunpack.c.h.b16 %v147
    %v378 = vunpack.c.l.b16 %v148
    %v379 = vunpack.c.l.b16 %v149
    %v380 = vunpack.c.h.b16 %v149
    %v381 = vunpack.c.l.b16 %v150
    %v382 = vunpack.c.l.b16 %v151
    %v383 = vunpack.c.h.b16 %v151
    %v384 = vunpack.c.l.b16 %v152
    %v385 = vunpack.c.l.b16 %v153
    %v386 = vunpack.c.h.b16 %v153
    %v387 = vunpack.c.l.b16 %v154
    %v388 = vunpack.c.l.b16 %v155
    %v389 = vunpack.c.h.b16 %v155
    %v390 = vunpack.c.l.b16 %v156
    %v391 = vpack.c.b16 %v346, %v343
    %v392 = vpack.c.b16 %v347, %v344
    %v393 = vpack.c.b16 %v348, %v345
    %v394 = vpack.c.b16 %v352, %v349
    %v395 = vpack.c.b16 %v353, %v350
    %v396 = vpack.c.b16 %v354, %v351
    %v397 = vpack.c.b16 %v358, %v355
    %v398 = vpack.c.b16 %v359, %v356
    %v399 = vpack.c.b16 %v360, %v357
    %v400 = vpack.c.b16 %v364, %v361
    %v401 = vpack.c.b16 %v365, %v362
    %v402 = vpack.c.b16 %v366, %v363
    %v403 = vpack.c.b16 %v370, %v367
    %v404 = vpack.c.b16 %v371, %v368
    %v405 = vpack.c.b16 %v372, %v369
    %v406 = vpack.c.b16 %v376, %v373
    %v407 = vpack.c.b16 %v377, %v374
    %v408 = vpack.c.b16 %v378, %v375
    %v409 = vpack.c.b16 %v382, %v379
    %v410 = vpack.c.b16 %v383, %v380
    %v411 = vpack.c.b16 %v384, %v381
    %v412 = vpack.c.b16 %v388, %v385
    %v413 = vpack.c.b16 %v389, %v386
    %v414 = vpack.c.b16 %v390, %v387
    %439 = vmatprep.subr.bf16.mxu0 %v413
    %440 = vmatpush1.bf16.msra.mxu0 %v412
    %441 = vmatprep.subr.bf16.mxu0 %v410
    %442 = vmatpush1.bf16.msra.mxu0 %v409
    %443 = vmatprep.subr.bf16.mxu0 %v407
    %444 = vmatpush1.bf16.msra.mxu0 %v406
    %445 = vmatprep.subr.bf16.mxu0 %v404
    %446 = vmatpush1.bf16.msra.mxu0 %v403
    %447 = vmatprep.subr.bf16.mxu0 %v401
    %448 = vmatpush1.bf16.msra.mxu0 %v400
    %449 = vmatprep.subr.bf16.mxu0 %v398
    %450 = vmatpush1.bf16.msra.mxu0 %v397
    %451 = vmatprep.subr.bf16.mxu0 %v395
    %452 = vmatpush1.bf16.msra.mxu0 %v394
    %453 = vmatprep.subr.bf16.mxu0 %v392
    %454 = vmatpush1.bf16.msra.mxu0 %v391
    %455 = vmatprep.subr.bf16.mxu0 0
    %456 = vmatpush2.bf16.msra.mxu0 0
    %457 = vmatprep.subr.bf16.mxu0 0
    %458 = vmatpush2.bf16.msra.mxu0 0
    %459 = vmatprep.subr.bf16.mxu0 0
    %460 = vmatpush2.bf16.msra.mxu0 0
    %461 = vmatprep.subr.bf16.mxu0 0
    %462 = vmatpush2.bf16.msra.mxu0 0
    %463 = vmatprep.subr.bf16.mxu0 0
    %464 = vmatpush2.bf16.msra.mxu0 0
    %465 = vmatprep.subr.bf16.mxu0 0
    %466 = vmatpush2.bf16.msra.mxu0 0
    %467 = vmatprep.subr.bf16.mxu0 0
    %468 = vmatpush2.bf16.msra.mxu0 0
    %469 = vmatprep.subr.bf16.mxu0 0
    %470 = vmatpush2.bf16.msra.mxu0 0
    %471 = vmatprep.mubr.bf16.mxu0 0
    %472 = vmatmul.mubr.bf16.gmra.mxu0 %v310
    %v473 = vpop.f32.mrf.mxu0
    %v474 = vadd.f32 0.0, %v473
    %v475 = vpop.f32.mrf.mxu0
    %v476 = vadd.f32 0.0, %v475
    %v477 = vpop.f32.mrf.mxu0
    %v478 = vpop.f32.mrf.mxu0
    %479 = vdwg.mxu0
    %480 = vmatprep.subr.bf16.mxu0 0
    %481 = vmatpush1.bf16.msra.mxu0 %v414
    %482 = vmatprep.subr.bf16.mxu0 0
    %483 = vmatpush1.bf16.msra.mxu0 %v411
    %484 = vmatprep.subr.bf16.mxu0 0
    %485 = vmatpush1.bf16.msra.mxu0 %v408
    %486 = vmatprep.subr.bf16.mxu0 0
    %487 = vmatpush1.bf16.msra.mxu0 %v405
    %488 = vmatprep.subr.bf16.mxu0 0
    %489 = vmatpush1.bf16.msra.mxu0 %v402
    %490 = vmatprep.subr.bf16.mxu0 0
    %491 = vmatpush1.bf16.msra.mxu0 %v399
    %492 = vmatprep.subr.bf16.mxu0 0
    %493 = vmatpush1.bf16.msra.mxu0 %v396
    %494 = vmatprep.subr.bf16.mxu0 0
    %495 = vmatpush1.bf16.msra.mxu0 %v393
    %496 = vmatprep.subr.bf16.mxu0 0
    %497 = vmatpush2.bf16.msra.mxu0 0
    %498 = vmatprep.subr.bf16.mxu0 0
    %499 = vmatpush2.bf16.msra.mxu0 0
    %500 = vmatprep.subr.bf16.mxu0 0
    %501 = vmatpush2.bf16.msra.mxu0 0
    %502 = vmatprep.subr.bf16.mxu0 0
    %503 = vmatpush2.bf16.msra.mxu0 0
    %504 = vmatprep.subr.bf16.mxu0 0
    %505 = vmatpush2.bf16.msra.mxu0 0
    %506 = vmatprep.subr.bf16.mxu0 0
    %507 = vmatpush2.bf16.msra.mxu0 0
    %508 = vmatprep.subr.bf16.mxu0 0
    %509 = vmatpush2.bf16.msra.mxu0 0
    %510 = vmatprep.subr.bf16.mxu0 0
    %511 = vmatpush2.bf16.msra.mxu0 0
    %512 = vmatprep.mubr.bf16.mxu0 0
    %513 = vmatmul.mubr.bf16.gmra.mxu0 %v310
    %v514 = vpop.f32.mrf.mxu0
    %v515 = vadd.f32 0.0, %v514
    %v516 = vpop.f32.mrf.mxu0
    %v517 = vpop.f32.mrf.mxu0
    %v518 = vpop.f32.mrf.mxu0
    %519 = vdwg.mxu0
    %v520 = vadd.f32 %v307, %v474
    %v521 = vadd.f32 %v308, %v476
    %v522 = vadd.f32 %v520, %v242
    %v523 = vadd.f32 %v521, %v246
    %v524 = vxor.u32 %v522, 2147483648
    %v525 = vxor.u32 %v523, 2147483648
    %v526 = vmul.f32 %v524, 1.442695
    %v527 = vpow.pop %v526
    %v528 = vmul.f32 %v525, 1.442695
    %v529 = vpow.pop %v528
    %v530 = vadd.f32 %v527, 1.0
    %v531 = vadd.f32 %v529, 1.0
    %v532 = vrcp.pop %v530
    %v533 = vmul.f32 1.0, %v532
    %v534 = vrcp.pop %v531
    %v535 = vmul.f32 1.0, %v534
    %v536 = vadd.f32 %v309, %v267
    %v537 = vadd.f32 %v515, %v282
    %v538 = vmul.f32 %v533, %v537
    %v539 = vadd.f32 %v536, %v538
    %v540 = vtanh.pop %v539
    %v541 = vsub.f32 1.0, %v535
    %v542 = vmul.f32 %v541, %v540
    %v543 = vmul.f32 %v535, %v304
    %v544 = vadd.f32 %v542, %v543
    %v545 = vpack.c.bf16 %v544, %v544
    %v546 = vpack.c.bf16 %v306, %v306
    %v611 = vunpack.c.l.b16 %v157
    %v612 = vunpack.c.h.b16 %v157
    %v613 = vunpack.c.l.b16 %v158
    %v614 = vunpack.c.h.b16 %v158
    %v615 = vunpack.c.l.b16 %v159
    %v616 = vunpack.c.h.b16 %v159
    %v617 = vunpack.c.l.b16 %v160
    %v618 = vunpack.c.h.b16 %v160
    %v619 = vunpack.c.l.b16 %v161
    %v620 = vunpack.c.h.b16 %v161
    %v621 = vunpack.c.l.b16 %v162
    %v622 = vunpack.c.h.b16 %v162
    %v623 = vunpack.c.l.b16 %v163
    %v624 = vunpack.c.h.b16 %v163
    %v625 = vunpack.c.l.b16 %v164
    %v626 = vunpack.c.h.b16 %v164
    %v627 = vunpack.c.l.b16 %v165
    %v628 = vunpack.c.h.b16 %v165
    %v629 = vunpack.c.l.b16 %v166
    %v630 = vunpack.c.h.b16 %v166
    %v631 = vunpack.c.l.b16 %v167
    %v632 = vunpack.c.h.b16 %v167
    %v633 = vunpack.c.l.b16 %v168
    %v634 = vunpack.c.h.b16 %v168
    %v635 = vunpack.c.l.b16 %v169
    %v636 = vunpack.c.h.b16 %v169
    %v637 = vunpack.c.l.b16 %v170
    %v638 = vunpack.c.h.b16 %v170
    %v639 = vunpack.c.l.b16 %v171
    %v640 = vunpack.c.h.b16 %v171
    %v641 = vunpack.c.l.b16 %v172
    %v642 = vunpack.c.h.b16 %v172
    %v643 = vunpack.c.l.b16 %v173
    %v644 = vunpack.c.h.b16 %v173
    %v645 = vunpack.c.l.b16 %v174
    %v646 = vunpack.c.h.b16 %v174
    %v647 = vunpack.c.l.b16 %v175
    %v648 = vunpack.c.h.b16 %v175
    %v649 = vunpack.c.l.b16 %v176
    %v650 = vunpack.c.h.b16 %v176
    %v651 = vunpack.c.l.b16 %v177
    %v652 = vunpack.c.h.b16 %v177
    %v653 = vunpack.c.l.b16 %v178
    %v654 = vunpack.c.h.b16 %v178
    %v655 = vunpack.c.l.b16 %v179
    %v656 = vunpack.c.h.b16 %v179
    %v657 = vunpack.c.l.b16 %v180
    %v658 = vunpack.c.h.b16 %v180
    %v659 = vunpack.c.l.b16 %v181
    %v660 = vunpack.c.h.b16 %v181
    %v661 = vunpack.c.l.b16 %v182
    %v662 = vunpack.c.h.b16 %v182
    %v663 = vunpack.c.l.b16 %v183
    %v664 = vunpack.c.h.b16 %v183
    %v665 = vunpack.c.l.b16 %v184
    %v666 = vunpack.c.h.b16 %v184
    %v667 = vunpack.c.l.b16 %v185
    %v668 = vunpack.c.h.b16 %v185
    %v669 = vunpack.c.l.b16 %v186
    %v670 = vunpack.c.h.b16 %v186
    %v671 = vunpack.c.l.b16 %v187
    %v672 = vunpack.c.h.b16 %v187
    %v673 = vunpack.c.l.b16 %v188
    %v674 = vunpack.c.h.b16 %v188
    %v675 = vunpack.c.l.b16 %v189
    %v676 = vunpack.c.h.b16 %v189
    %v677 = vunpack.c.l.b16 %v190
    %v678 = vunpack.c.h.b16 %v190
    %v679 = vunpack.c.l.b16 %v191
    %v680 = vunpack.c.h.b16 %v191
    %v681 = vunpack.c.l.b16 %v192
    %v682 = vunpack.c.h.b16 %v192
    %v683 = vunpack.c.l.b16 %v193
    %v684 = vunpack.c.h.b16 %v193
    %v685 = vunpack.c.l.b16 %v194
    %v686 = vunpack.c.h.b16 %v194
    %v687 = vunpack.c.l.b16 %v195
    %v688 = vunpack.c.h.b16 %v195
    %v689 = vunpack.c.l.b16 %v196
    %v690 = vunpack.c.h.b16 %v196
    %v691 = vunpack.c.l.b16 %v197
    %v692 = vunpack.c.h.b16 %v197
    %v693 = vunpack.c.l.b16 %v198
    %v694 = vunpack.c.h.b16 %v198
    %v695 = vunpack.c.l.b16 %v199
    %v696 = vunpack.c.h.b16 %v199
    %v697 = vunpack.c.l.b16 %v200
    %v698 = vunpack.c.h.b16 %v200
    %v699 = vunpack.c.l.b16 %v201
    %v700 = vunpack.c.h.b16 %v201
    %v701 = vunpack.c.l.b16 %v202
    %v702 = vunpack.c.h.b16 %v202
    %v703 = vunpack.c.l.b16 %v203
    %v704 = vunpack.c.h.b16 %v203
    %v705 = vunpack.c.l.b16 %v204
    %v706 = vunpack.c.h.b16 %v204
    %v707 = vunpack.c.l.b16 %v205
    %v708 = vunpack.c.h.b16 %v205
    %v709 = vunpack.c.l.b16 %v206
    %v710 = vunpack.c.h.b16 %v206
    %v711 = vunpack.c.l.b16 %v207
    %v712 = vunpack.c.h.b16 %v207
    %v713 = vunpack.c.l.b16 %v208
    %v714 = vunpack.c.h.b16 %v208
    %v715 = vunpack.c.l.b16 %v209
    %v716 = vunpack.c.h.b16 %v209
    %v717 = vunpack.c.l.b16 %v210
    %v718 = vunpack.c.h.b16 %v210
    %v719 = vunpack.c.l.b16 %v211
    %v720 = vunpack.c.h.b16 %v211
    %v721 = vunpack.c.l.b16 %v212
    %v722 = vunpack.c.h.b16 %v212
    %v723 = vunpack.c.l.b16 %v213
    %v724 = vunpack.c.h.b16 %v213
    %v725 = vunpack.c.l.b16 %v214
    %v726 = vunpack.c.h.b16 %v214
    %v727 = vunpack.c.l.b16 %v215
    %v728 = vunpack.c.h.b16 %v215
    %v729 = vunpack.c.l.b16 %v216
    %v730 = vunpack.c.h.b16 %v216
    %v731 = vunpack.c.l.b16 %v217
    %v732 = vunpack.c.h.b16 %v217
    %v733 = vunpack.c.l.b16 %v218
    %v734 = vunpack.c.h.b16 %v218
    %v735 = vunpack.c.l.b16 %v219
    %v736 = vunpack.c.h.b16 %v219
    %v737 = vunpack.c.l.b16 %v220
    %v738 = vunpack.c.h.b16 %v220
    %v739 = vpack.c.b16 %v615, %v611
    %v740 = vpack.c.b16 %v616, %v612
    %v741 = vpack.c.b16 %v617, %v613
    %v742 = vpack.c.b16 %v618, %v614
    %v743 = vpack.c.b16 %v623, %v619
    %v744 = vpack.c.b16 %v624, %v620
    %v745 = vpack.c.b16 %v625, %v621
    %v746 = vpack.c.b16 %v626, %v622
    %v747 = vpack.c.b16 %v631, %v627
    %v748 = vpack.c.b16 %v632, %v628
    %v749 = vpack.c.b16 %v633, %v629
    %v750 = vpack.c.b16 %v634, %v630
    %v751 = vpack.c.b16 %v639, %v635
    %v752 = vpack.c.b16 %v640, %v636
    %v753 = vpack.c.b16 %v641, %v637
    %v754 = vpack.c.b16 %v642, %v638
    %v755 = vpack.c.b16 %v647, %v643
    %v756 = vpack.c.b16 %v648, %v644
    %v757 = vpack.c.b16 %v649, %v645
    %v758 = vpack.c.b16 %v650, %v646
    %v759 = vpack.c.b16 %v655, %v651
    %v760 = vpack.c.b16 %v656, %v652
    %v761 = vpack.c.b16 %v657, %v653
    %v762 = vpack.c.b16 %v658, %v654
    %v763 = vpack.c.b16 %v663, %v659
    %v764 = vpack.c.b16 %v664, %v660
    %v765 = vpack.c.b16 %v665, %v661
    %v766 = vpack.c.b16 %v666, %v662
    %v767 = vpack.c.b16 %v671, %v667
    %v768 = vpack.c.b16 %v672, %v668
    %v769 = vpack.c.b16 %v673, %v669
    %v770 = vpack.c.b16 %v674, %v670
    %v771 = vpack.c.b16 %v679, %v675
    %v772 = vpack.c.b16 %v680, %v676
    %v773 = vpack.c.b16 %v681, %v677
    %v774 = vpack.c.b16 %v682, %v678
    %v775 = vpack.c.b16 %v687, %v683
    %v776 = vpack.c.b16 %v688, %v684
    %v777 = vpack.c.b16 %v689, %v685
    %v778 = vpack.c.b16 %v690, %v686
    %v779 = vpack.c.b16 %v695, %v691
    %v780 = vpack.c.b16 %v696, %v692
    %v781 = vpack.c.b16 %v697, %v693
    %v782 = vpack.c.b16 %v698, %v694
    %v783 = vpack.c.b16 %v703, %v699
    %v784 = vpack.c.b16 %v704, %v700
    %v785 = vpack.c.b16 %v705, %v701
    %v786 = vpack.c.b16 %v706, %v702
    %v787 = vpack.c.b16 %v711, %v707
    %v788 = vpack.c.b16 %v712, %v708
    %v789 = vpack.c.b16 %v713, %v709
    %v790 = vpack.c.b16 %v714, %v710
    %v791 = vpack.c.b16 %v719, %v715
    %v792 = vpack.c.b16 %v720, %v716
    %v793 = vpack.c.b16 %v721, %v717
    %v794 = vpack.c.b16 %v722, %v718
    %v795 = vpack.c.b16 %v727, %v723
    %v796 = vpack.c.b16 %v728, %v724
    %v797 = vpack.c.b16 %v729, %v725
    %v798 = vpack.c.b16 %v730, %v726
    %v799 = vpack.c.b16 %v735, %v731
    %v800 = vpack.c.b16 %v736, %v732
    %v801 = vpack.c.b16 %v737, %v733
    %v802 = vpack.c.b16 %v738, %v734
    %867 = vmatprep.subr.bf16.mxu0 %v768
    %868 = vmatpush1.bf16.msra.mxu0 %v767
    %869 = vmatprep.subr.bf16.mxu0 %v764
    %870 = vmatpush1.bf16.msra.mxu0 %v763
    %871 = vmatprep.subr.bf16.mxu0 %v760
    %872 = vmatpush1.bf16.msra.mxu0 %v759
    %873 = vmatprep.subr.bf16.mxu0 %v756
    %874 = vmatpush1.bf16.msra.mxu0 %v755
    %875 = vmatprep.subr.bf16.mxu0 %v752
    %876 = vmatpush1.bf16.msra.mxu0 %v751
    %877 = vmatprep.subr.bf16.mxu0 %v748
    %878 = vmatpush1.bf16.msra.mxu0 %v747
    %879 = vmatprep.subr.bf16.mxu0 %v744
    %880 = vmatpush1.bf16.msra.mxu0 %v743
    %881 = vmatprep.subr.bf16.mxu0 %v740
    %882 = vmatpush1.bf16.msra.mxu0 %v739
    %883 = vmatprep.subr.bf16.mxu0 %v800
    %884 = vmatpush2.bf16.msra.mxu0 %v799
    %885 = vmatprep.subr.bf16.mxu0 %v796
    %886 = vmatpush2.bf16.msra.mxu0 %v795
    %887 = vmatprep.subr.bf16.mxu0 %v792
    %888 = vmatpush2.bf16.msra.mxu0 %v791
    %889 = vmatprep.subr.bf16.mxu0 %v788
    %890 = vmatpush2.bf16.msra.mxu0 %v787
    %891 = vmatprep.subr.bf16.mxu0 %v784
    %892 = vmatpush2.bf16.msra.mxu0 %v783
    %893 = vmatprep.subr.bf16.mxu0 %v780
    %894 = vmatpush2.bf16.msra.mxu0 %v779
    %895 = vmatprep.subr.bf16.mxu0 %v776
    %896 = vmatpush2.bf16.msra.mxu0 %v775
    %897 = vmatprep.subr.bf16.mxu0 %v772
    %898 = vmatpush2.bf16.msra.mxu0 %v771
    %899 = vmatprep.mubr.bf16.mxu0 %v546
    %900 = vmatmul.mubr.bf16.gmra.mxu0 %v545
    %v901 = vpop.f32.mrf.mxu0
    %v902 = vadd.f32 0.0, %v901
    %v903 = vpop.f32.mrf.mxu0
    %v904 = vadd.f32 0.0, %v903
    %v905 = vpop.f32.mrf.mxu0
    %v906 = vpop.f32.mrf.mxu0
    %907 = vdwg.mxu0
    %908 = vmatprep.subr.bf16.mxu0 %v770
    %909 = vmatpush1.bf16.msra.mxu0 %v769
    %910 = vmatprep.subr.bf16.mxu0 %v766
    %911 = vmatpush1.bf16.msra.mxu0 %v765
    %912 = vmatprep.subr.bf16.mxu0 %v762
    %913 = vmatpush1.bf16.msra.mxu0 %v761
    %914 = vmatprep.subr.bf16.mxu0 %v758
    %915 = vmatpush1.bf16.msra.mxu0 %v757
    %916 = vmatprep.subr.bf16.mxu0 %v754
    %917 = vmatpush1.bf16.msra.mxu0 %v753
    %918 = vmatprep.subr.bf16.mxu0 %v750
    %919 = vmatpush1.bf16.msra.mxu0 %v749
    %920 = vmatprep.subr.bf16.mxu0 %v746
    %921 = vmatpush1.bf16.msra.mxu0 %v745
    %922 = vmatprep.subr.bf16.mxu0 %v742
    %923 = vmatpush1.bf16.msra.mxu0 %v741
    %924 = vmatprep.subr.bf16.mxu0 %v802
    %925 = vmatpush2.bf16.msra.mxu0 %v801
    %926 = vmatprep.subr.bf16.mxu0 %v798
    %927 = vmatpush2.bf16.msra.mxu0 %v797
    %928 = vmatprep.subr.bf16.mxu0 %v794
    %929 = vmatpush2.bf16.msra.mxu0 %v793
    %930 = vmatprep.subr.bf16.mxu0 %v790
    %931 = vmatpush2.bf16.msra.mxu0 %v789
    %932 = vmatprep.subr.bf16.mxu0 %v786
    %933 = vmatpush2.bf16.msra.mxu0 %v785
    %934 = vmatprep.subr.bf16.mxu0 %v782
    %935 = vmatpush2.bf16.msra.mxu0 %v781
    %936 = vmatprep.subr.bf16.mxu0 %v778
    %937 = vmatpush2.bf16.msra.mxu0 %v777
    %938 = vmatprep.subr.bf16.mxu0 %v774
    %939 = vmatpush2.bf16.msra.mxu0 %v773
    %940 = vmatprep.mubr.bf16.mxu0 %v546
    %941 = vmatmul.mubr.bf16.gmra.mxu0 %v545
    %v942 = vpop.f32.mrf.mxu0
    %v943 = vadd.f32 0.0, %v942
    %v944 = vpop.f32.mrf.mxu0
    %v945 = vadd.f32 0.0, %v944
    %v946 = vpop.f32.mrf.mxu0
    %v947 = vpop.f32.mrf.mxu0
    %948 = vdwg.mxu0
    %v949 = vadd.f32 %v902, %v255
    %v950 = vadd.f32 %v904, %v259
    %v951 = vxor.u32 %v949, 2147483648
    %v952 = vxor.u32 %v950, 2147483648
    %v953 = vmul.f32 %v951, 1.442695
    %v954 = vpow.pop %v953
    %v955 = vmul.f32 %v952, 1.442695
    %v956 = vpow.pop %v955
    %v957 = vadd.f32 %v954, 1.0
    %v958 = vadd.f32 %v956, 1.0
    %v959 = vrcp.pop %v957
    %v960 = vmul.f32 1.0, %v959
    %v961 = vrcp.pop %v958
    %v962 = vmul.f32 1.0, %v961
    %v963 = vadd.f32 %v943, %v275
    %v964 = vadd.f32 %v945, %v290
    %v965 = vmul.f32 %v960, %v964
    %v966 = vadd.f32 %v963, %v965
    %v967 = vtanh.pop %v966
    %v968 = vsub.f32 1.0, %v962
    %v969 = vmul.f32 %v968, %v967
    %v970 = vmul.f32 %v962, %v306
    %v971 = vadd.f32 %v969, %v970
    %972 = vst [vmem:[#allocation2] sm:$0xff] %v971
    %s973 = scalar_lea.vmem [#allocation3], 24
    %v974 = vld [vmem:[%s973] sm:$0xff]
    %v975 = vld [vmem:[%s973 + $0x8] sm:$0xff]
    %v976 = vld [vmem:[%s973 + $0x10] sm:$0xff]
    %977 = vmatprep.subr.bf16.mxu0 %v413
    %978 = vmatpush1.bf16.msra.mxu0 %v412
    %979 = vmatprep.subr.bf16.mxu0 %v410
    %980 = vmatpush1.bf16.msra.mxu0 %v409
    %981 = vmatprep.subr.bf16.mxu0 %v407
    %982 = vmatpush1.bf16.msra.mxu0 %v406
    %983 = vmatprep.subr.bf16.mxu0 %v404
    %984 = vmatpush1.bf16.msra.mxu0 %v403
    %985 = vmatprep.subr.bf16.mxu0 %v401
    %986 = vmatpush1.bf16.msra.mxu0 %v400
    %987 = vmatprep.subr.bf16.mxu0 %v398
    %988 = vmatpush1.bf16.msra.mxu0 %v397
    %989 = vmatprep.subr.bf16.mxu0 %v395
    %990 = vmatpush1.bf16.msra.mxu0 %v394
    %991 = vmatprep.subr.bf16.mxu0 %v392
    %992 = vmatpush1.bf16.msra.mxu0 %v391
    %993 = vmatprep.subr.bf16.mxu0 0
    %994 = vmatpush2.bf16.msra.mxu0 0
    %995 = vmatprep.subr.bf16.mxu0 0
    %996 = vmatpush2.bf16.msra.mxu0 0
    %997 = vmatprep.subr.bf16.mxu0 0
    %998 = vmatpush2.bf16.msra.mxu0 0
    %999 = vmatprep.subr.bf16.mxu0 0
    %1000 = vmatpush2.bf16.msra.mxu0 0
    %1001 = vmatprep.subr.bf16.mxu0 0
    %1002 = vmatpush2.bf16.msra.mxu0 0
    %1003 = vmatprep.subr.bf16.mxu0 0
    %1004 = vmatpush2.bf16.msra.mxu0 0
    %1005 = vmatprep.subr.bf16.mxu0 0
    %1006 = vmatpush2.bf16.msra.mxu0 0
    %1007 = vmatprep.subr.bf16.mxu0 0
    %1008 = vmatpush2.bf16.msra.mxu0 0
    %1009 = vmatprep.mubr.bf16.mxu0 0
    %1010 = vmatmul.mubr.bf16.gmra.mxu0 %v545
    %v1011 = vpop.f32.mrf.mxu0
    %v1012 = vadd.f32 0.0, %v1011
    %v1013 = vpop.f32.mrf.mxu0
    %v1014 = vadd.f32 0.0, %v1013
    %v1015 = vpop.f32.mrf.mxu0
    %v1016 = vpop.f32.mrf.mxu0
    %1017 = vdwg.mxu0
    %1018 = vmatprep.subr.bf16.mxu0 0
    %1019 = vmatpush1.bf16.msra.mxu0 %v414
    %1020 = vmatprep.subr.bf16.mxu0 0
    %1021 = vmatpush1.bf16.msra.mxu0 %v411
    %1022 = vmatprep.subr.bf16.mxu0 0
    %1023 = vmatpush1.bf16.msra.mxu0 %v408
    %1024 = vmatprep.subr.bf16.mxu0 0
    %1025 = vmatpush1.bf16.msra.mxu0 %v405
    %1026 = vmatprep.subr.bf16.mxu0 0
    %1027 = vmatpush1.bf16.msra.mxu0 %v402
    %1028 = vmatprep.subr.bf16.mxu0 0
    %1029 = vmatpush1.bf16.msra.mxu0 %v399
    %1030 = vmatprep.subr.bf16.mxu0 0
    %1031 = vmatpush1.bf16.msra.mxu0 %v396
    %1032 = vmatprep.subr.bf16.mxu0 0
    %1033 = vmatpush1.bf16.msra.mxu0 %v393
    %1034 = vmatprep.subr.bf16.mxu0 0
    %1035 = vmatpush2.bf16.msra.mxu0 0
    %1036 = vmatprep.subr.bf16.mxu0 0
    %1037 = vmatpush2.bf16.msra.mxu0 0
    %1038 = vmatprep.subr.bf16.mxu0 0
    %1039 = vmatpush2.bf16.msra.mxu0 0
    %1040 = vmatprep.subr.bf16.mxu0 0
    %1041 = vmatpush2.bf16.msra.mxu0 0
    %1042 = vmatprep.subr.bf16.mxu0 0
    %1043 = vmatpush2.bf16.msra.mxu0 0
    %1044 = vmatprep.subr.bf16.mxu0 0
    %1045 = vmatpush2.bf16.msra.mxu0 0
    %1046 = vmatprep.subr.bf16.mxu0 0
    %1047 = vmatpush2.bf16.msra.mxu0 0
    %1048 = vmatprep.subr.bf16.mxu0 0
    %1049 = vmatpush2.bf16.msra.mxu0 0
    %1050 = vmatprep.mubr.bf16.mxu0 0
    %1051 = vmatmul.mubr.bf16.gmra.mxu0 %v545
    %v1052 = vpop.f32.mrf.mxu0
    %v1053 = vadd.f32 0.0, %v1052
    %v1054 = vpop.f32.mrf.mxu0
    %v1055 = vpop.f32.mrf.mxu0
    %v1056 = vpop.f32.mrf.mxu0
    %1057 = vdwg.mxu0
    %v1058 = vadd.f32 %v974, %v1012
    %v1059 = vadd.f32 %v975, %v1014
    %v1060 = vadd.f32 %v1058, %v242
    %v1061 = vadd.f32 %v1059, %v246
    %v1062 = vxor.u32 %v1060, 2147483648
    %v1063 = vxor.u32 %v1061, 2147483648
    %v1064 = vmul.f32 %v1062, 1.442695
    %v1065 = vpow.pop %v1064
    %v1066 = vmul.f32 %v1063, 1.442695
    %v1067 = vpow.pop %v1066
    %v1068 = vadd.f32 %v1065, 1.0
    %v1069 = vadd.f32 %v1067, 1.0
    %v1070 = vrcp.pop %v1068
    %v1071 = vmul.f32 1.0, %v1070
    %v1072 = vrcp.pop %v1069
    %v1073 = vmul.f32 1.0, %v1072
    %v1074 = vadd.f32 %v976, %v267
    %v1075 = vadd.f32 %v1053, %v282
    %v1076 = vmul.f32 %v1071, %v1075
    %v1077 = vadd.f32 %v1074, %v1076
    %v1078 = vtanh.pop %v1077
    %v1079 = vsub.f32 1.0, %v1073
    %v1080 = vmul.f32 %v1079, %v1078
    %v1081 = vmul.f32 %v1073, %v544
    %v1082 = vadd.f32 %v1080, %v1081
    %v1083 = vpack.c.bf16 %v1082, %v1082
    %v1084 = vpack.c.bf16 %v971, %v971
    %1085 = vmatprep.subr.bf16.mxu0 %v768
    %1086 = vmatpush1.bf16.msra.mxu0 %v767
    %1087 = vmatprep.subr.bf16.mxu0 %v764
    %1088 = vmatpush1.bf16.msra.mxu0 %v763
    %1089 = vmatprep.subr.bf16.mxu0 %v760
    %1090 = vmatpush1.bf16.msra.mxu0 %v759
    %1091 = vmatprep.subr.bf16.mxu0 %v756
    %1092 = vmatpush1.bf16.msra.mxu0 %v755
    %1093 = vmatprep.subr.bf16.mxu0 %v752
    %1094 = vmatpush1.bf16.msra.mxu0 %v751
    %1095 = vmatprep.subr.bf16.mxu0 %v748
    %1096 = vmatpush1.bf16.msra.mxu0 %v747
    %1097 = vmatprep.subr.bf16.mxu0 %v744
    %1098 = vmatpush1.bf16.msra.mxu0 %v743
    %1099 = vmatprep.subr.bf16.mxu0 %v740
    %1100 = vmatpush1.bf16.msra.mxu0 %v739
    %1101 = vmatprep.subr.bf16.mxu0 %v800
    %1102 = vmatpush2.bf16.msra.mxu0 %v799
    %1103 = vmatprep.subr.bf16.mxu0 %v796
    %1104 = vmatpush2.bf16.msra.mxu0 %v795
    %1105 = vmatprep.subr.bf16.mxu0 %v792
    %1106 = vmatpush2.bf16.msra.mxu0 %v791
    %1107 = vmatprep.subr.bf16.mxu0 %v788
    %1108 = vmatpush2.bf16.msra.mxu0 %v787
    %1109 = vmatprep.subr.bf16.mxu0 %v784
    %1110 = vmatpush2.bf16.msra.mxu0 %v783
    %1111 = vmatprep.subr.bf16.mxu0 %v780
    %1112 = vmatpush2.bf16.msra.mxu0 %v779
    %1113 = vmatprep.subr.bf16.mxu0 %v776
    %1114 = vmatpush2.bf16.msra.mxu0 %v775
    %1115 = vmatprep.subr.bf16.mxu0 %v772
    %1116 = vmatpush2.bf16.msra.mxu0 %v771
    %1117 = vmatprep.mubr.bf16.mxu0 %v1084
    %1118 = vmatmul.mubr.bf16.gmra.mxu0 %v1083
    %v1119 = vpop.f32.mrf.mxu0
    %v1120 = vadd.f32 0.0, %v1119
    %v1121 = vpop.f32.mrf.mxu0
    %v1122 = vadd.f32 0.0, %v1121
    %v1123 = vpop.f32.mrf.mxu0
    %v1124 = vpop.f32.mrf.mxu0
    %1125 = vdwg.mxu0
    %1126 = vmatprep.subr.bf16.mxu0 %v770
    %1127 = vmatpush1.bf16.msra.mxu0 %v769
    %1128 = vmatprep.subr.bf16.mxu0 %v766
    %1129 = vmatpush1.bf16.msra.mxu0 %v765
    %1130 = vmatprep.subr.bf16.mxu0 %v762
    %1131 = vmatpush1.bf16.msra.mxu0 %v761
    %1132 = vmatprep.subr.bf16.mxu0 %v758
    %1133 = vmatpush1.bf16.msra.mxu0 %v757
    %1134 = vmatprep.subr.bf16.mxu0 %v754
    %1135 = vmatpush1.bf16.msra.mxu0 %v753
    %1136 = vmatprep.subr.bf16.mxu0 %v750
    %1137 = vmatpush1.bf16.msra.mxu0 %v749
    %1138 = vmatprep.subr.bf16.mxu0 %v746
    %1139 = vmatpush1.bf16.msra.mxu0 %v745
    %1140 = vmatprep.subr.bf16.mxu0 %v742
    %1141 = vmatpush1.bf16.msra.mxu0 %v741
    %1142 = vmatprep.subr.bf16.mxu0 %v802
    %1143 = vmatpush2.bf16.msra.mxu0 %v801
    %1144 = vmatprep.subr.bf16.mxu0 %v798
    %1145 = vmatpush2.bf16.msra.mxu0 %v797
    %1146 = vmatprep.subr.bf16.mxu0 %v794
    %1147 = vmatpush2.bf16.msra.mxu0 %v793
    %1148 = vmatprep.subr.bf16.mxu0 %v790
    %1149 = vmatpush2.bf16.msra.mxu0 %v789
    %1150 = vmatprep.subr.bf16.mxu0 %v786
    %1151 = vmatpush2.bf16.msra.mxu0 %v785
    %1152 = vmatprep.subr.bf16.mxu0 %v782
    %1153 = vmatpush2.bf16.msra.mxu0 %v781
    %1154 = vmatprep.subr.bf16.mxu0 %v778
    %1155 = vmatpush2.bf16.msra.mxu0 %v777
    %1156 = vmatprep.subr.bf16.mxu0 %v774
    %1157 = vmatpush2.bf16.msra.mxu0 %v773
    %1158 = vmatprep.mubr.bf16.mxu0 %v1084
    %1159 = vmatmul.mubr.bf16.gmra.mxu0 %v1083
    %v1160 = vpop.f32.mrf.mxu0
    %v1161 = vadd.f32 0.0, %v1160
    %v1162 = vpop.f32.mrf.mxu0
    %v1163 = vadd.f32 0.0, %v1162
    %v1164 = vpop.f32.mrf.mxu0
    %v1165 = vpop.f32.mrf.mxu0
    %1166 = vdwg.mxu0
    %v1167 = vadd.f32 %v1120, %v255
    %v1168 = vadd.f32 %v1122, %v259
    %v1169 = vxor.u32 %v1167, 2147483648
    %v1170 = vxor.u32 %v1168, 2147483648
    %v1171 = vmul.f32 %v1169, 1.442695
    %v1172 = vpow.pop %v1171
    %v1173 = vmul.f32 %v1170, 1.442695
    %v1174 = vpow.pop %v1173
    %v1175 = vadd.f32 %v1172, 1.0
    %v1176 = vadd.f32 %v1174, 1.0
    %v1177 = vrcp.pop %v1175
    %v1178 = vmul.f32 1.0, %v1177
    %v1179 = vrcp.pop %v1176
    %v1180 = vmul.f32 1.0, %v1179
    %v1181 = vadd.f32 %v1161, %v275
    %v1182 = vadd.f32 %v1163, %v290
    %v1183 = vmul.f32 %v1178, %v1182
    %v1184 = vadd.f32 %v1181, %v1183
    %v1185 = vtanh.pop %v1184
    %v1186 = vsub.f32 1.0, %v1180
    %v1187 = vmul.f32 %v1186, %v1185
    %v1188 = vmul.f32 %v1180, %v971
    %v1189 = vadd.f32 %v1187, %v1188
    %1190 = vst [vmem:[#allocation2 + $0x8] sm:$0xff] %v1189
    %s1191 = scalar_lea.vmem [#allocation3], 48
    %v1192 = vld [vmem:[%s1191] sm:$0xff]
    %v1193 = vld [vmem:[%s1191 + $0x8] sm:$0xff]
    %v1194 = vld [vmem:[%s1191 + $0x10] sm:$0xff]
    %1195 = vmatprep.subr.bf16.mxu0 %v413
    %1196 = vmatpush1.bf16.msra.mxu0 %v412
    %1197 = vmatprep.subr.bf16.mxu0 %v410
    %1198 = vmatpush1.bf16.msra.mxu0 %v409
    %1199 = vmatprep.subr.bf16.mxu0 %v407
    %1200 = vmatpush1.bf16.msra.mxu0 %v406
    %1201 = vmatprep.subr.bf16.mxu0 %v404
    %1202 = vmatpush1.bf16.msra.mxu0 %v403
    %1203 = vmatprep.subr.bf16.mxu0 %v401
    %1204 = vmatpush1.bf16.msra.mxu0 %v400
    %1205 = vmatprep.subr.bf16.mxu0 %v398
    %1206 = vmatpush1.bf16.msra.mxu0 %v397
    %1207 = vmatprep.subr.bf16.mxu0 %v395
    %1208 = vmatpush1.bf16.msra.mxu0 %v394
    %1209 = vmatprep.subr.bf16.mxu0 %v392
    %1210 = vmatpush1.bf16.msra.mxu0 %v391
    %1211 = vmatprep.subr.bf16.mxu0 0
    %1212 = vmatpush2.bf16.msra.mxu0 0
    %1213 = vmatprep.subr.bf16.mxu0 0
    %1214 = vmatpush2.bf16.msra.mxu0 0
    %1215 = vmatprep.subr.bf16.mxu0 0
    %1216 = vmatpush2.bf16.msra.mxu0 0
    %1217 = vmatprep.subr.bf16.mxu0 0
    %1218 = vmatpush2.bf16.msra.mxu0 0
    %1219 = vmatprep.subr.bf16.mxu0 0
    %1220 = vmatpush2.bf16.msra.mxu0 0
    %1221 = vmatprep.subr.bf16.mxu0 0
    %1222 = vmatpush2.bf16.msra.mxu0 0
    %1223 = vmatprep.subr.bf16.mxu0 0
    %1224 = vmatpush2.bf16.msra.mxu0 0
    %1225 = vmatprep.subr.bf16.mxu0 0
    %1226 = vmatpush2.bf16.msra.mxu0 0
    %1227 = vmatprep.mubr.bf16.mxu0 0
    %1228 = vmatmul.mubr.bf16.gmra.mxu0 %v1083
    %v1229 = vpop.f32.mrf.mxu0
    %v1230 = vadd.f32 0.0, %v1229
    %v1231 = vpop.f32.mrf.mxu0
    %v1232 = vadd.f32 0.0, %v1231
    %v1233 = vpop.f32.mrf.mxu0
    %v1234 = vpop.f32.mrf.mxu0
    %1235 = vdwg.mxu0
    %1236 = vmatprep.subr.bf16.mxu0 0
    %1237 = vmatpush1.bf16.msra.mxu0 %v414
    %1238 = vmatprep.subr.bf16.mxu0 0
    %1239 = vmatpush1.bf16.msra.mxu0 %v411
    %1240 = vmatprep.subr.bf16.mxu0 0
    %1241 = vmatpush1.bf16.msra.mxu0 %v408
    %1242 = vmatprep.subr.bf16.mxu0 0
    %1243 = vmatpush1.bf16.msra.mxu0 %v405
    %1244 = vmatprep.subr.bf16.mxu0 0
    %1245 = vmatpush1.bf16.msra.mxu0 %v402
    %1246 = vmatprep.subr.bf16.mxu0 0
    %1247 = vmatpush1.bf16.msra.mxu0 %v399
    %1248 = vmatprep.subr.bf16.mxu0 0
    %1249 = vmatpush1.bf16.msra.mxu0 %v396
    %1250 = vmatprep.subr.bf16.mxu0 0
    %1251 = vmatpush1.bf16.msra.mxu0 %v393
    %1252 = vmatprep.subr.bf16.mxu0 0
    %1253 = vmatpush2.bf16.msra.mxu0 0
    %1254 = vmatprep.subr.bf16.mxu0 0
    %1255 = vmatpush2.bf16.msra.mxu0 0
    %1256 = vmatprep.subr.bf16.mxu0 0
    %1257 = vmatpush2.bf16.msra.mxu0 0
    %1258 = vmatprep.subr.bf16.mxu0 0
    %1259 = vmatpush2.bf16.msra.mxu0 0
    %1260 = vmatprep.subr.bf16.mxu0 0
    %1261 = vmatpush2.bf16.msra.mxu0 0
    %1262 = vmatprep.subr.bf16.mxu0 0
    %1263 = vmatpush2.bf16.msra.mxu0 0
    %1264 = vmatprep.subr.bf16.mxu0 0
    %1265 = vmatpush2.bf16.msra.mxu0 0
    %1266 = vmatprep.subr.bf16.mxu0 0
    %1267 = vmatpush2.bf16.msra.mxu0 0
    %1268 = vmatprep.mubr.bf16.mxu0 0
    %1269 = vmatmul.mubr.bf16.gmra.mxu0 %v1083
    %v1270 = vpop.f32.mrf.mxu0
    %v1271 = vadd.f32 0.0, %v1270
    %v1272 = vpop.f32.mrf.mxu0
    %v1273 = vpop.f32.mrf.mxu0
    %v1274 = vpop.f32.mrf.mxu0
    %1275 = vdwg.mxu0
    %v1276 = vadd.f32 %v1192, %v1230
    %v1277 = vadd.f32 %v1193, %v1232
    %v1278 = vadd.f32 %v1276, %v242
    %v1279 = vadd.f32 %v1277, %v246
    %v1280 = vxor.u32 %v1278, 2147483648
    %v1281 = vxor.u32 %v1279, 2147483648
    %v1282 = vmul.f32 %v1280, 1.442695
    %v1283 = vpow.pop %v1282
    %v1284 = vmul.f32 %v1281, 1.442695
    %v1285 = vpow.pop %v1284
    %v1286 = vadd.f32 %v1283, 1.0
    %v1287 = vadd.f32 %v1285, 1.0
    %v1288 = vrcp.pop %v1286
    %v1289 = vmul.f32 1.0, %v1288
    %v1290 = vrcp.pop %v1287
    %v1291 = vmul.f32 1.0, %v1290
    %v1292 = vadd.f32 %v1194, %v267
    %v1293 = vadd.f32 %v1271, %v282
    %v1294 = vmul.f32 %v1289, %v1293
    %v1295 = vadd.f32 %v1292, %v1294
    %v1296 = vtanh.pop %v1295
    %v1297 = vsub.f32 1.0, %v1291
    %v1298 = vmul.f32 %v1297, %v1296
    %v1299 = vmul.f32 %v1291, %v1082
    %v1300 = vadd.f32 %v1298, %v1299
    %v1301 = vpack.c.bf16 %v1300, %v1300
    %v1302 = vpack.c.bf16 %v1189, %v1189
    %1303 = vmatprep.subr.bf16.mxu0 %v768
    %1304 = vmatpush1.bf16.msra.mxu0 %v767
    %1305 = vmatprep.subr.bf16.mxu0 %v764
    %1306 = vmatpush1.bf16.msra.mxu0 %v763
    %1307 = vmatprep.subr.bf16.mxu0 %v760
    %1308 = vmatpush1.bf16.msra.mxu0 %v759
    %1309 = vmatprep.subr.bf16.mxu0 %v756
    %1310 = vmatpush1.bf16.msra.mxu0 %v755
    %1311 = vmatprep.subr.bf16.mxu0 %v752
    %1312 = vmatpush1.bf16.msra.mxu0 %v751
    %1313 = vmatprep.subr.bf16.mxu0 %v748
    %1314 = vmatpush1.bf16.msra.mxu0 %v747
    %1315 = vmatprep.subr.bf16.mxu0 %v744
    %1316 = vmatpush1.bf16.msra.mxu0 %v743
    %1317 = vmatprep.subr.bf16.mxu0 %v740
    %1318 = vmatpush1.bf16.msra.mxu0 %v739
    %1319 = vmatprep.subr.bf16.mxu0 %v800
    %1320 = vmatpush2.bf16.msra.mxu0 %v799
    %1321 = vmatprep.subr.bf16.mxu0 %v796
    %1322 = vmatpush2.bf16.msra.mxu0 %v795
    %1323 = vmatprep.subr.bf16.mxu0 %v792
    %1324 = vmatpush2.bf16.msra.mxu0 %v791
    %1325 = vmatprep.subr.bf16.mxu0 %v788
    %1326 = vmatpush2.bf16.msra.mxu0 %v787
    %1327 = vmatprep.subr.bf16.mxu0 %v784
    %1328 = vmatpush2.bf16.msra.mxu0 %v783
    %1329 = vmatprep.subr.bf16.mxu0 %v780
    %1330 = vmatpush2.bf16.msra.mxu0 %v779
    %1331 = vmatprep.subr.bf16.mxu0 %v776
    %1332 = vmatpush2.bf16.msra.mxu0 %v775
    %1333 = vmatprep.subr.bf16.mxu0 %v772
    %1334 = vmatpush2.bf16.msra.mxu0 %v771
    %1335 = vmatprep.mubr.bf16.mxu0 %v1302
    %1336 = vmatmul.mubr.bf16.gmra.mxu0 %v1301
    %v1337 = vpop.f32.mrf.mxu0
    %v1338 = vadd.f32 0.0, %v1337
    %v1339 = vpop.f32.mrf.mxu0
    %v1340 = vadd.f32 0.0, %v1339
    %v1341 = vpop.f32.mrf.mxu0
    %v1342 = vpop.f32.mrf.mxu0
    %1343 = vdwg.mxu0
    %1344 = vmatprep.subr.bf16.mxu0 %v770
    %1345 = vmatpush1.bf16.msra.mxu0 %v769
    %1346 = vmatprep.subr.bf16.mxu0 %v766
    %1347 = vmatpush1.bf16.msra.mxu0 %v765
    %1348 = vmatprep.subr.bf16.mxu0 %v762
    %1349 = vmatpush1.bf16.msra.mxu0 %v761
    %1350 = vmatprep.subr.bf16.mxu0 %v758
    %1351 = vmatpush1.bf16.msra.mxu0 %v757
    %1352 = vmatprep.subr.bf16.mxu0 %v754
    %1353 = vmatpush1.bf16.msra.mxu0 %v753
    %1354 = vmatprep.subr.bf16.mxu0 %v750
    %1355 = vmatpush1.bf16.msra.mxu0 %v749
    %1356 = vmatprep.subr.bf16.mxu0 %v746
    %1357 = vmatpush1.bf16.msra.mxu0 %v745
    %1358 = vmatprep.subr.bf16.mxu0 %v742
    %1359 = vmatpush1.bf16.msra.mxu0 %v741
    %1360 = vmatprep.subr.bf16.mxu0 %v802
    %1361 = vmatpush2.bf16.msra.mxu0 %v801
    %1362 = vmatprep.subr.bf16.mxu0 %v798
    %1363 = vmatpush2.bf16.msra.mxu0 %v797
    %1364 = vmatprep.subr.bf16.mxu0 %v794
    %1365 = vmatpush2.bf16.msra.mxu0 %v793
    %1366 = vmatprep.subr.bf16.mxu0 %v790
    %1367 = vmatpush2.bf16.msra.mxu0 %v789
    %1368 = vmatprep.subr.bf16.mxu0 %v786
    %1369 = vmatpush2.bf16.msra.mxu0 %v785
    %1370 = vmatprep.subr.bf16.mxu0 %v782
    %1371 = vmatpush2.bf16.msra.mxu0 %v781
    %1372 = vmatprep.subr.bf16.mxu0 %v778
    %1373 = vmatpush2.bf16.msra.mxu0 %v777
    %1374 = vmatprep.subr.bf16.mxu0 %v774
    %1375 = vmatpush2.bf16.msra.mxu0 %v773
    %1376 = vmatprep.mubr.bf16.mxu0 %v1302
    %1377 = vmatmul.mubr.bf16.gmra.mxu0 %v1301
    %v1378 = vpop.f32.mrf.mxu0
    %v1379 = vadd.f32 0.0, %v1378
    %v1380 = vpop.f32.mrf.mxu0
    %v1381 = vadd.f32 0.0, %v1380
    %v1382 = vpop.f32.mrf.mxu0
    %v1383 = vpop.f32.mrf.mxu0
    %1384 = vdwg.mxu0
    %v1385 = vadd.f32 %v1338, %v255
    %v1386 = vadd.f32 %v1340, %v259
    %v1387 = vxor.u32 %v1385, 2147483648
    %v1388 = vxor.u32 %v1386, 2147483648
    %v1389 = vmul.f32 %v1387, 1.442695
    %v1390 = vpow.pop %v1389
    %v1391 = vmul.f32 %v1388, 1.442695
    %v1392 = vpow.pop %v1391
    %v1393 = vadd.f32 %v1390, 1.0
    %v1394 = vadd.f32 %v1392, 1.0
    %v1395 = vrcp.pop %v1393
    %v1396 = vmul.f32 1.0, %v1395
    %v1397 = vrcp.pop %v1394
    %v1398 = vmul.f32 1.0, %v1397
    %v1399 = vadd.f32 %v1379, %v275
    %v1400 = vadd.f32 %v1381, %v290
    %v1401 = vmul.f32 %v1396, %v1400
    %v1402 = vadd.f32 %v1399, %v1401
    %v1403 = vtanh.pop %v1402
    %v1404 = vsub.f32 1.0, %v1398
    %v1405 = vmul.f32 %v1404, %v1403
    %v1406 = vmul.f32 %v1398, %v1189
    %v1407 = vadd.f32 %v1405, %v1406
    %1408 = vst [vmem:[#allocation2 + $0x10] sm:$0xff] %v1407
    %s1409 = scalar_lea.vmem [#allocation3], 72
    %v1410 = vld [vmem:[%s1409] sm:$0xff]
    %v1411 = vld [vmem:[%s1409 + $0x8] sm:$0xff]
    %v1412 = vld [vmem:[%s1409 + $0x10] sm:$0xff]
    %1413 = vmatprep.subr.bf16.mxu0 %v413
    %1414 = vmatpush1.bf16.msra.mxu0 %v412
    %1415 = vmatprep.subr.bf16.mxu0 %v410
    %1416 = vmatpush1.bf16.msra.mxu0 %v409
    %1417 = vmatprep.subr.bf16.mxu0 %v407
    %1418 = vmatpush1.bf16.msra.mxu0 %v406
    %1419 = vmatprep.subr.bf16.mxu0 %v404
    %1420 = vmatpush1.bf16.msra.mxu0 %v403
    %1421 = vmatprep.subr.bf16.mxu0 %v401
    %1422 = vmatpush1.bf16.msra.mxu0 %v400
    %1423 = vmatprep.subr.bf16.mxu0 %v398
    %1424 = vmatpush1.bf16.msra.mxu0 %v397
    %1425 = vmatprep.subr.bf16.mxu0 %v395
    %1426 = vmatpush1.bf16.msra.mxu0 %v394
    %1427 = vmatprep.subr.bf16.mxu0 %v392
    %1428 = vmatpush1.bf16.msra.mxu0 %v391
    %1429 = vmatprep.subr.bf16.mxu0 0
    %1430 = vmatpush2.bf16.msra.mxu0 0
    %1431 = vmatprep.subr.bf16.mxu0 0
    %1432 = vmatpush2.bf16.msra.mxu0 0
    %1433 = vmatprep.subr.bf16.mxu0 0
    %1434 = vmatpush2.bf16.msra.mxu0 0
    %1435 = vmatprep.subr.bf16.mxu0 0
    %1436 = vmatpush2.bf16.msra.mxu0 0
    %1437 = vmatprep.subr.bf16.mxu0 0
    %1438 = vmatpush2.bf16.msra.mxu0 0
    %1439 = vmatprep.subr.bf16.mxu0 0
    %1440 = vmatpush2.bf16.msra.mxu0 0
    %1441 = vmatprep.subr.bf16.mxu0 0
    %1442 = vmatpush2.bf16.msra.mxu0 0
    %1443 = vmatprep.subr.bf16.mxu0 0
    %1444 = vmatpush2.bf16.msra.mxu0 0
    %1445 = vmatprep.mubr.bf16.mxu0 0
    %1446 = vmatmul.mubr.bf16.gmra.mxu0 %v1301
    %v1447 = vpop.f32.mrf.mxu0
    %v1448 = vadd.f32 0.0, %v1447
    %v1449 = vpop.f32.mrf.mxu0
    %v1450 = vadd.f32 0.0, %v1449
    %v1451 = vpop.f32.mrf.mxu0
    %v1452 = vpop.f32.mrf.mxu0
    %1453 = vdwg.mxu0
    %1454 = vmatprep.subr.bf16.mxu0 0
    %1455 = vmatpush1.bf16.msra.mxu0 %v414
    %1456 = vmatprep.subr.bf16.mxu0 0
    %1457 = vmatpush1.bf16.msra.mxu0 %v411
    %1458 = vmatprep.subr.bf16.mxu0 0
    %1459 = vmatpush1.bf16.msra.mxu0 %v408
    %1460 = vmatprep.subr.bf16.mxu0 0
    %1461 = vmatpush1.bf16.msra.mxu0 %v405
    %1462 = vmatprep.subr.bf16.mxu0 0
    %1463 = vmatpush1.bf16.msra.mxu0 %v402
    %1464 = vmatprep.subr.bf16.mxu0 0
    %1465 = vmatpush1.bf16.msra.mxu0 %v399
    %1466 = vmatprep.subr.bf16.mxu0 0
    %1467 = vmatpush1.bf16.msra.mxu0 %v396
    %1468 = vmatprep.subr.bf16.mxu0 0
    %1469 = vmatpush1.bf16.msra.mxu0 %v393
    %1470 = vmatprep.subr.bf16.mxu0 0
    %1471 = vmatpush2.bf16.msra.mxu0 0
    %1472 = vmatprep.subr.bf16.mxu0 0
    %1473 = vmatpush2.bf16.msra.mxu0 0
    %1474 = vmatprep.subr.bf16.mxu0 0
    %1475 = vmatpush2.bf16.msra.mxu0 0
    %1476 = vmatprep.subr.bf16.mxu0 0
    %1477 = vmatpush2.bf16.msra.mxu0 0
    %1478 = vmatprep.subr.bf16.mxu0 0
    %1479 = vmatpush2.bf16.msra.mxu0 0
    %1480 = vmatprep.subr.bf16.mxu0 0
    %1481 = vmatpush2.bf16.msra.mxu0 0
    %1482 = vmatprep.subr.bf16.mxu0 0
    %1483 = vmatpush2.bf16.msra.mxu0 0
    %1484 = vmatprep.subr.bf16.mxu0 0
    %1485 = vmatpush2.bf16.msra.mxu0 0
    %1486 = vmatprep.mubr.bf16.mxu0 0
    %1487 = vmatmul.mubr.bf16.gmra.mxu0 %v1301
    %v1488 = vpop.f32.mrf.mxu0
    %v1489 = vadd.f32 0.0, %v1488
    %v1490 = vpop.f32.mrf.mxu0
    %v1491 = vpop.f32.mrf.mxu0
    %v1492 = vpop.f32.mrf.mxu0
    %1493 = vdwg.mxu0
    %v1494 = vadd.f32 %v1410, %v1448
    %v1495 = vadd.f32 %v1411, %v1450
    %v1496 = vadd.f32 %v1494, %v242
    %v1497 = vadd.f32 %v1495, %v246
    %v1498 = vxor.u32 %v1496, 2147483648
    %v1499 = vxor.u32 %v1497, 2147483648
    %v1500 = vmul.f32 %v1498, 1.442695
    %v1501 = vpow.pop %v1500
    %v1502 = vmul.f32 %v1499, 1.442695
    %v1503 = vpow.pop %v1502
    %v1504 = vadd.f32 %v1501, 1.0
    %v1505 = vadd.f32 %v1503, 1.0
    %v1506 = vrcp.pop %v1504
    %v1507 = vmul.f32 1.0, %v1506
    %v1508 = vrcp.pop %v1505
    %v1509 = vmul.f32 1.0, %v1508
    %v1510 = vadd.f32 %v1412, %v267
    %v1511 = vadd.f32 %v1489, %v282
    %v1512 = vmul.f32 %v1507, %v1511
    %v1513 = vadd.f32 %v1510, %v1512
    %v1514 = vtanh.pop %v1513
    %v1515 = vsub.f32 1.0, %v1509
    %v1516 = vmul.f32 %v1515, %v1514
    %v1517 = vmul.f32 %v1509, %v1300
    %v1518 = vadd.f32 %v1516, %v1517
    %v1519 = vpack.c.bf16 %v1518, %v1518
    %v1520 = vpack.c.bf16 %v1407, %v1407
    %1521 = vmatprep.subr.bf16.mxu0 %v768
    %1522 = vmatpush1.bf16.msra.mxu0 %v767
    %1523 = vmatprep.subr.bf16.mxu0 %v764
    %1524 = vmatpush1.bf16.msra.mxu0 %v763
    %1525 = vmatprep.subr.bf16.mxu0 %v760
    %1526 = vmatpush1.bf16.msra.mxu0 %v759
    %1527 = vmatprep.subr.bf16.mxu0 %v756
    %1528 = vmatpush1.bf16.msra.mxu0 %v755
    %1529 = vmatprep.subr.bf16.mxu0 %v752
    %1530 = vmatpush1.bf16.msra.mxu0 %v751
    %1531 = vmatprep.subr.bf16.mxu0 %v748
    %1532 = vmatpush1.bf16.msra.mxu0 %v747
    %1533 = vmatprep.subr.bf16.mxu0 %v744
    %1534 = vmatpush1.bf16.msra.mxu0 %v743
    %1535 = vmatprep.subr.bf16.mxu0 %v740
    %1536 = vmatpush1.bf16.msra.mxu0 %v739
    %1537 = vmatprep.subr.bf16.mxu0 %v800
    %1538 = vmatpush2.bf16.msra.mxu0 %v799
    %1539 = vmatprep.subr.bf16.mxu0 %v796
    %1540 = vmatpush2.bf16.msra.mxu0 %v795
    %1541 = vmatprep.subr.bf16.mxu0 %v792
    %1542 = vmatpush2.bf16.msra.mxu0 %v791
    %1543 = vmatprep.subr.bf16.mxu0 %v788
    %1544 = vmatpush2.bf16.msra.mxu0 %v787
    %1545 = vmatprep.subr.bf16.mxu0 %v784
    %1546 = vmatpush2.bf16.msra.mxu0 %v783
    %1547 = vmatprep.subr.bf16.mxu0 %v780
    %1548 = vmatpush2.bf16.msra.mxu0 %v779
    %1549 = vmatprep.subr.bf16.mxu0 %v776
    %1550 = vmatpush2.bf16.msra.mxu0 %v775
    %1551 = vmatprep.subr.bf16.mxu0 %v772
    %1552 = vmatpush2.bf16.msra.mxu0 %v771
    %1553 = vmatprep.mubr.bf16.mxu0 %v1520
    %1554 = vmatmul.mubr.bf16.gmra.mxu0 %v1519
    %v1555 = vpop.f32.mrf.mxu0
    %v1556 = vadd.f32 0.0, %v1555
    %v1557 = vpop.f32.mrf.mxu0
    %v1558 = vadd.f32 0.0, %v1557
    %v1559 = vpop.f32.mrf.mxu0
    %v1560 = vpop.f32.mrf.mxu0
    %1561 = vdwg.mxu0
    %1562 = vmatprep.subr.bf16.mxu0 %v770
    %1563 = vmatpush1.bf16.msra.mxu0 %v769
    %1564 = vmatprep.subr.bf16.mxu0 %v766
    %1565 = vmatpush1.bf16.msra.mxu0 %v765
    %1566 = vmatprep.subr.bf16.mxu0 %v762
    %1567 = vmatpush1.bf16.msra.mxu0 %v761
    %1568 = vmatprep.subr.bf16.mxu0 %v758
    %1569 = vmatpush1.bf16.msra.mxu0 %v757
    %1570 = vmatprep.subr.bf16.mxu0 %v754
    %1571 = vmatpush1.bf16.msra.mxu0 %v753
    %1572 = vmatprep.subr.bf16.mxu0 %v750
    %1573 = vmatpush1.bf16.msra.mxu0 %v749
    %1574 = vmatprep.subr.bf16.mxu0 %v746
    %1575 = vmatpush1.bf16.msra.mxu0 %v745
    %1576 = vmatprep.subr.bf16.mxu0 %v742
    %1577 = vmatpush1.bf16.msra.mxu0 %v741
    %1578 = vmatprep.subr.bf16.mxu0 %v802
    %1579 = vmatpush2.bf16.msra.mxu0 %v801
    %1580 = vmatprep.subr.bf16.mxu0 %v798
    %1581 = vmatpush2.bf16.msra.mxu0 %v797
    %1582 = vmatprep.subr.bf16.mxu0 %v794
    %1583 = vmatpush2.bf16.msra.mxu0 %v793
    %1584 = vmatprep.subr.bf16.mxu0 %v790
    %1585 = vmatpush2.bf16.msra.mxu0 %v789
    %1586 = vmatprep.subr.bf16.mxu0 %v786
    %1587 = vmatpush2.bf16.msra.mxu0 %v785
    %1588 = vmatprep.subr.bf16.mxu0 %v782
    %1589 = vmatpush2.bf16.msra.mxu0 %v781
    %1590 = vmatprep.subr.bf16.mxu0 %v778
    %1591 = vmatpush2.bf16.msra.mxu0 %v777
    %1592 = vmatprep.subr.bf16.mxu0 %v774
    %1593 = vmatpush2.bf16.msra.mxu0 %v773
    %1594 = vmatprep.mubr.bf16.mxu0 %v1520
    %1595 = vmatmul.mubr.bf16.gmra.mxu0 %v1519
    %v1596 = vpop.f32.mrf.mxu0
    %v1597 = vadd.f32 0.0, %v1596
    %v1598 = vpop.f32.mrf.mxu0
    %v1599 = vadd.f32 0.0, %v1598
    %v1600 = vpop.f32.mrf.mxu0
    %v1601 = vpop.f32.mrf.mxu0
    %1602 = vdwg.mxu0
    %v1603 = vadd.f32 %v1556, %v255
    %v1604 = vadd.f32 %v1558, %v259
    %v1605 = vxor.u32 %v1603, 2147483648
    %v1606 = vxor.u32 %v1604, 2147483648
    %v1607 = vmul.f32 %v1605, 1.442695
    %v1608 = vpow.pop %v1607
    %v1609 = vmul.f32 %v1606, 1.442695
    %v1610 = vpow.pop %v1609
    %v1611 = vadd.f32 %v1608, 1.0
    %v1612 = vadd.f32 %v1610, 1.0
    %v1613 = vrcp.pop %v1611
    %v1614 = vmul.f32 1.0, %v1613
    %v1615 = vrcp.pop %v1612
    %v1616 = vmul.f32 1.0, %v1615
    %v1617 = vadd.f32 %v1597, %v275
    %v1618 = vadd.f32 %v1599, %v290
    %v1619 = vmul.f32 %v1614, %v1618
    %v1620 = vadd.f32 %v1617, %v1619
    %v1621 = vtanh.pop %v1620
    %v1622 = vsub.f32 1.0, %v1616
    %v1623 = vmul.f32 %v1622, %v1621
    %v1624 = vmul.f32 %v1616, %v1407
    %v1625 = vadd.f32 %v1623, %v1624
    %1626 = vst [vmem:[#allocation2 + $0x18] sm:$0xff] %v1625
    %s1627 = scalar_lea.vmem [#allocation3], 96
    %v1628 = vld [vmem:[%s1627] sm:$0xff]
    %v1629 = vld [vmem:[%s1627 + $0x8] sm:$0xff]
    %v1630 = vld [vmem:[%s1627 + $0x10] sm:$0xff]
    %1631 = vmatprep.subr.bf16.mxu0 %v413
    %1632 = vmatpush1.bf16.msra.mxu0 %v412
    %1633 = vmatprep.subr.bf16.mxu0 %v410
    %1634 = vmatpush1.bf16.msra.mxu0 %v409
    %1635 = vmatprep.subr.bf16.mxu0 %v407
    %1636 = vmatpush1.bf16.msra.mxu0 %v406
    %1637 = vmatprep.subr.bf16.mxu0 %v404
    %1638 = vmatpush1.bf16.msra.mxu0 %v403
    %1639 = vmatprep.subr.bf16.mxu0 %v401
    %1640 = vmatpush1.bf16.msra.mxu0 %v400
    %1641 = vmatprep.subr.bf16.mxu0 %v398
    %1642 = vmatpush1.bf16.msra.mxu0 %v397
    %1643 = vmatprep.subr.bf16.mxu0 %v395
    %1644 = vmatpush1.bf16.msra.mxu0 %v394
    %1645 = vmatprep.subr.bf16.mxu0 %v392
    %1646 = vmatpush1.bf16.msra.mxu0 %v391
    %1647 = vmatprep.subr.bf16.mxu0 0
    %1648 = vmatpush2.bf16.msra.mxu0 0
    %1649 = vmatprep.subr.bf16.mxu0 0
    %1650 = vmatpush2.bf16.msra.mxu0 0
    %1651 = vmatprep.subr.bf16.mxu0 0
    %1652 = vmatpush2.bf16.msra.mxu0 0
    %1653 = vmatprep.subr.bf16.mxu0 0
    %1654 = vmatpush2.bf16.msra.mxu0 0
    %1655 = vmatprep.subr.bf16.mxu0 0
    %1656 = vmatpush2.bf16.msra.mxu0 0
    %1657 = vmatprep.subr.bf16.mxu0 0
    %1658 = vmatpush2.bf16.msra.mxu0 0
    %1659 = vmatprep.subr.bf16.mxu0 0
    %1660 = vmatpush2.bf16.msra.mxu0 0
    %1661 = vmatprep.subr.bf16.mxu0 0
    %1662 = vmatpush2.bf16.msra.mxu0 0
    %1663 = vmatprep.mubr.bf16.mxu0 0
    %1664 = vmatmul.mubr.bf16.gmra.mxu0 %v1519
    %v1665 = vpop.f32.mrf.mxu0
    %v1666 = vadd.f32 0.0, %v1665
    %v1667 = vpop.f32.mrf.mxu0
    %v1668 = vadd.f32 0.0, %v1667
    %v1669 = vpop.f32.mrf.mxu0
    %v1670 = vpop.f32.mrf.mxu0
    %1671 = vdwg.mxu0
    %1672 = vmatprep.subr.bf16.mxu0 0
    %1673 = vmatpush1.bf16.msra.mxu0 %v414
    %1674 = vmatprep.subr.bf16.mxu0 0
    %1675 = vmatpush1.bf16.msra.mxu0 %v411
    %1676 = vmatprep.subr.bf16.mxu0 0
    %1677 = vmatpush1.bf16.msra.mxu0 %v408
    %1678 = vmatprep.subr.bf16.mxu0 0
    %1679 = vmatpush1.bf16.msra.mxu0 %v405
    %1680 = vmatprep.subr.bf16.mxu0 0
    %1681 = vmatpush1.bf16.msra.mxu0 %v402
    %1682 = vmatprep.subr.bf16.mxu0 0
    %1683 = vmatpush1.bf16.msra.mxu0 %v399
    %1684 = vmatprep.subr.bf16.mxu0 0
    %1685 = vmatpush1.bf16.msra.mxu0 %v396
    %1686 = vmatprep.subr.bf16.mxu0 0
    %1687 = vmatpush1.bf16.msra.mxu0 %v393
    %1688 = vmatprep.subr.bf16.mxu0 0
    %1689 = vmatpush2.bf16.msra.mxu0 0
    %1690 = vmatprep.subr.bf16.mxu0 0
    %1691 = vmatpush2.bf16.msra.mxu0 0
    %1692 = vmatprep.subr.bf16.mxu0 0
    %1693 = vmatpush2.bf16.msra.mxu0 0
    %1694 = vmatprep.subr.bf16.mxu0 0
    %1695 = vmatpush2.bf16.msra.mxu0 0
    %1696 = vmatprep.subr.bf16.mxu0 0
    %1697 = vmatpush2.bf16.msra.mxu0 0
    %1698 = vmatprep.subr.bf16.mxu0 0
    %1699 = vmatpush2.bf16.msra.mxu0 0
    %1700 = vmatprep.subr.bf16.mxu0 0
    %1701 = vmatpush2.bf16.msra.mxu0 0
    %1702 = vmatprep.subr.bf16.mxu0 0
    %1703 = vmatpush2.bf16.msra.mxu0 0
    %1704 = vmatprep.mubr.bf16.mxu0 0
    %1705 = vmatmul.mubr.bf16.gmra.mxu0 %v1519
    %v1706 = vpop.f32.mrf.mxu0
    %v1707 = vadd.f32 0.0, %v1706
    %v1708 = vpop.f32.mrf.mxu0
    %v1709 = vpop.f32.mrf.mxu0
    %v1710 = vpop.f32.mrf.mxu0
    %1711 = vdwg.mxu0
    %v1712 = vadd.f32 %v1628, %v1666
    %v1713 = vadd.f32 %v1629, %v1668
    %v1714 = vadd.f32 %v1712, %v242
    %v1715 = vadd.f32 %v1713, %v246
    %v1716 = vxor.u32 %v1714, 2147483648
    %v1717 = vxor.u32 %v1715, 2147483648
    %v1718 = vmul.f32 %v1716, 1.442695
    %v1719 = vpow.pop %v1718
    %v1720 = vmul.f32 %v1717, 1.442695
    %v1721 = vpow.pop %v1720
    %v1722 = vadd.f32 %v1719, 1.0
    %v1723 = vadd.f32 %v1721, 1.0
    %v1724 = vrcp.pop %v1722
    %v1725 = vmul.f32 1.0, %v1724
    %v1726 = vrcp.pop %v1723
    %v1727 = vmul.f32 1.0, %v1726
    %v1728 = vadd.f32 %v1630, %v267
    %v1729 = vadd.f32 %v1707, %v282
    %v1730 = vmul.f32 %v1725, %v1729
    %v1731 = vadd.f32 %v1728, %v1730
    %v1732 = vtanh.pop %v1731
    %v1733 = vsub.f32 1.0, %v1727
    %v1734 = vmul.f32 %v1733, %v1732
    %v1735 = vmul.f32 %v1727, %v1518
    %v1736 = vadd.f32 %v1734, %v1735
    %v1737 = vpack.c.bf16 %v1736, %v1736
    %v1738 = vpack.c.bf16 %v1625, %v1625
    %1739 = vmatprep.subr.bf16.mxu0 %v768
    %1740 = vmatpush1.bf16.msra.mxu0 %v767
    %1741 = vmatprep.subr.bf16.mxu0 %v764
    %1742 = vmatpush1.bf16.msra.mxu0 %v763
    %1743 = vmatprep.subr.bf16.mxu0 %v760
    %1744 = vmatpush1.bf16.msra.mxu0 %v759
    %1745 = vmatprep.subr.bf16.mxu0 %v756
    %1746 = vmatpush1.bf16.msra.mxu0 %v755
    %1747 = vmatprep.subr.bf16.mxu0 %v752
    %1748 = vmatpush1.bf16.msra.mxu0 %v751
    %1749 = vmatprep.subr.bf16.mxu0 %v748
    %1750 = vmatpush1.bf16.msra.mxu0 %v747
    %1751 = vmatprep.subr.bf16.mxu0 %v744
    %1752 = vmatpush1.bf16.msra.mxu0 %v743
    %1753 = vmatprep.subr.bf16.mxu0 %v740
    %1754 = vmatpush1.bf16.msra.mxu0 %v739
    %1755 = vmatprep.subr.bf16.mxu0 %v800
    %1756 = vmatpush2.bf16.msra.mxu0 %v799
    %1757 = vmatprep.subr.bf16.mxu0 %v796
    %1758 = vmatpush2.bf16.msra.mxu0 %v795
    %1759 = vmatprep.subr.bf16.mxu0 %v792
    %1760 = vmatpush2.bf16.msra.mxu0 %v791
    %1761 = vmatprep.subr.bf16.mxu0 %v788
    %1762 = vmatpush2.bf16.msra.mxu0 %v787
    %1763 = vmatprep.subr.bf16.mxu0 %v784
    %1764 = vmatpush2.bf16.msra.mxu0 %v783
    %1765 = vmatprep.subr.bf16.mxu0 %v780
    %1766 = vmatpush2.bf16.msra.mxu0 %v779
    %1767 = vmatprep.subr.bf16.mxu0 %v776
    %1768 = vmatpush2.bf16.msra.mxu0 %v775
    %1769 = vmatprep.subr.bf16.mxu0 %v772
    %1770 = vmatpush2.bf16.msra.mxu0 %v771
    %1771 = vmatprep.mubr.bf16.mxu0 %v1738
    %1772 = vmatmul.mubr.bf16.gmra.mxu0 %v1737
    %v1773 = vpop.f32.mrf.mxu0
    %v1774 = vadd.f32 0.0, %v1773
    %v1775 = vpop.f32.mrf.mxu0
    %v1776 = vadd.f32 0.0, %v1775
    %v1777 = vpop.f32.mrf.mxu0
    %v1778 = vpop.f32.mrf.mxu0
    %1779 = vdwg.mxu0
    %1780 = vmatprep.subr.bf16.mxu0 %v770
    %1781 = vmatpush1.bf16.msra.mxu0 %v769
    %1782 = vmatprep.subr.bf16.mxu0 %v766
    %1783 = vmatpush1.bf16.msra.mxu0 %v765
    %1784 = vmatprep.subr.bf16.mxu0 %v762
    %1785 = vmatpush1.bf16.msra.mxu0 %v761
    %1786 = vmatprep.subr.bf16.mxu0 %v758
    %1787 = vmatpush1.bf16.msra.mxu0 %v757
    %1788 = vmatprep.subr.bf16.mxu0 %v754
    %1789 = vmatpush1.bf16.msra.mxu0 %v753
    %1790 = vmatprep.subr.bf16.mxu0 %v750
    %1791 = vmatpush1.bf16.msra.mxu0 %v749
    %1792 = vmatprep.subr.bf16.mxu0 %v746
    %1793 = vmatpush1.bf16.msra.mxu0 %v745
    %1794 = vmatprep.subr.bf16.mxu0 %v742
    %1795 = vmatpush1.bf16.msra.mxu0 %v741
    %1796 = vmatprep.subr.bf16.mxu0 %v802
    %1797 = vmatpush2.bf16.msra.mxu0 %v801
    %1798 = vmatprep.subr.bf16.mxu0 %v798
    %1799 = vmatpush2.bf16.msra.mxu0 %v797
    %1800 = vmatprep.subr.bf16.mxu0 %v794
    %1801 = vmatpush2.bf16.msra.mxu0 %v793
    %1802 = vmatprep.subr.bf16.mxu0 %v790
    %1803 = vmatpush2.bf16.msra.mxu0 %v789
    %1804 = vmatprep.subr.bf16.mxu0 %v786
    %1805 = vmatpush2.bf16.msra.mxu0 %v785
    %1806 = vmatprep.subr.bf16.mxu0 %v782
    %1807 = vmatpush2.bf16.msra.mxu0 %v781
    %1808 = vmatprep.subr.bf16.mxu0 %v778
    %1809 = vmatpush2.bf16.msra.mxu0 %v777
    %1810 = vmatprep.subr.bf16.mxu0 %v774
    %1811 = vmatpush2.bf16.msra.mxu0 %v773
    %1812 = vmatprep.mubr.bf16.mxu0 %v1738
    %1813 = vmatmul.mubr.bf16.gmra.mxu0 %v1737
    %v1814 = vpop.f32.mrf.mxu0
    %v1815 = vadd.f32 0.0, %v1814
    %v1816 = vpop.f32.mrf.mxu0
    %v1817 = vadd.f32 0.0, %v1816
    %v1818 = vpop.f32.mrf.mxu0
    %v1819 = vpop.f32.mrf.mxu0
    %1820 = vdwg.mxu0
    %v1821 = vadd.f32 %v1774, %v255
    %v1822 = vadd.f32 %v1776, %v259
    %v1823 = vxor.u32 %v1821, 2147483648
    %v1824 = vxor.u32 %v1822, 2147483648
    %v1825 = vmul.f32 %v1823, 1.442695
    %v1826 = vpow.pop %v1825
    %v1827 = vmul.f32 %v1824, 1.442695
    %v1828 = vpow.pop %v1827
    %v1829 = vadd.f32 %v1826, 1.0
    %v1830 = vadd.f32 %v1828, 1.0
    %v1831 = vrcp.pop %v1829
    %v1832 = vmul.f32 1.0, %v1831
    %v1833 = vrcp.pop %v1830
    %v1834 = vmul.f32 1.0, %v1833
    %v1835 = vadd.f32 %v1815, %v275
    %v1836 = vadd.f32 %v1817, %v290
    %v1837 = vmul.f32 %v1832, %v1836
    %v1838 = vadd.f32 %v1835, %v1837
    %v1839 = vtanh.pop %v1838
    %v1840 = vsub.f32 1.0, %v1834
    %v1841 = vmul.f32 %v1840, %v1839
    %v1842 = vmul.f32 %v1834, %v1625
    %v1843 = vadd.f32 %v1841, %v1842
    %1844 = vst [vmem:[#allocation2 + $0x20] sm:$0xff] %v1843
    %s1845 = scalar_lea.vmem [#allocation3], 120
    %v1846 = vld [vmem:[%s1845] sm:$0xff]
    %v1847 = vld [vmem:[%s1845 + $0x8] sm:$0xff]
    %v1848 = vld [vmem:[%s1845 + $0x10] sm:$0xff]
    %1849 = vmatprep.subr.bf16.mxu0 %v413
    %1850 = vmatpush1.bf16.msra.mxu0 %v412
    %1851 = vmatprep.subr.bf16.mxu0 %v410
    %1852 = vmatpush1.bf16.msra.mxu0 %v409
    %1853 = vmatprep.subr.bf16.mxu0 %v407
    %1854 = vmatpush1.bf16.msra.mxu0 %v406
    %1855 = vmatprep.subr.bf16.mxu0 %v404
    %1856 = vmatpush1.bf16.msra.mxu0 %v403
    %1857 = vmatprep.subr.bf16.mxu0 %v401
    %1858 = vmatpush1.bf16.msra.mxu0 %v400
    %1859 = vmatprep.subr.bf16.mxu0 %v398
    %1860 = vmatpush1.bf16.msra.mxu0 %v397
    %1861 = vmatprep.subr.bf16.mxu0 %v395
    %1862 = vmatpush1.bf16.msra.mxu0 %v394
    %1863 = vmatprep.subr.bf16.mxu0 %v392
    %1864 = vmatpush1.bf16.msra.mxu0 %v391
    %1865 = vmatprep.subr.bf16.mxu0 0
    %1866 = vmatpush2.bf16.msra.mxu0 0
    %1867 = vmatprep.subr.bf16.mxu0 0
    %1868 = vmatpush2.bf16.msra.mxu0 0
    %1869 = vmatprep.subr.bf16.mxu0 0
    %1870 = vmatpush2.bf16.msra.mxu0 0
    %1871 = vmatprep.subr.bf16.mxu0 0
    %1872 = vmatpush2.bf16.msra.mxu0 0
    %1873 = vmatprep.subr.bf16.mxu0 0
    %1874 = vmatpush2.bf16.msra.mxu0 0
    %1875 = vmatprep.subr.bf16.mxu0 0
    %1876 = vmatpush2.bf16.msra.mxu0 0
    %1877 = vmatprep.subr.bf16.mxu0 0
    %1878 = vmatpush2.bf16.msra.mxu0 0
    %1879 = vmatprep.subr.bf16.mxu0 0
    %1880 = vmatpush2.bf16.msra.mxu0 0
    %1881 = vmatprep.mubr.bf16.mxu0 0
    %1882 = vmatmul.mubr.bf16.gmra.mxu0 %v1737
    %v1883 = vpop.f32.mrf.mxu0
    %v1884 = vadd.f32 0.0, %v1883
    %v1885 = vpop.f32.mrf.mxu0
    %v1886 = vadd.f32 0.0, %v1885
    %v1887 = vpop.f32.mrf.mxu0
    %v1888 = vpop.f32.mrf.mxu0
    %1889 = vdwg.mxu0
    %1890 = vmatprep.subr.bf16.mxu0 0
    %1891 = vmatpush1.bf16.msra.mxu0 %v414
    %1892 = vmatprep.subr.bf16.mxu0 0
    %1893 = vmatpush1.bf16.msra.mxu0 %v411
    %1894 = vmatprep.subr.bf16.mxu0 0
    %1895 = vmatpush1.bf16.msra.mxu0 %v408
    %1896 = vmatprep.subr.bf16.mxu0 0
    %1897 = vmatpush1.bf16.msra.mxu0 %v405
    %1898 = vmatprep.subr.bf16.mxu0 0
    %1899 = vmatpush1.bf16.msra.mxu0 %v402
    %1900 = vmatprep.subr.bf16.mxu0 0
    %1901 = vmatpush1.bf16.msra.mxu0 %v399
    %1902 = vmatprep.subr.bf16.mxu0 0
    %1903 = vmatpush1.bf16.msra.mxu0 %v396
    %1904 = vmatprep.subr.bf16.mxu0 0
    %1905 = vmatpush1.bf16.msra.mxu0 %v393
    %1906 = vmatprep.subr.bf16.mxu0 0
    %1907 = vmatpush2.bf16.msra.mxu0 0
    %1908 = vmatprep.subr.bf16.mxu0 0
    %1909 = vmatpush2.bf16.msra.mxu0 0
    %1910 = vmatprep.subr.bf16.mxu0 0
    %1911 = vmatpush2.bf16.msra.mxu0 0
    %1912 = vmatprep.subr.bf16.mxu0 0
    %1913 = vmatpush2.bf16.msra.mxu0 0
    %1914 = vmatprep.subr.bf16.mxu0 0
    %1915 = vmatpush2.bf16.msra.mxu0 0
    %1916 = vmatprep.subr.bf16.mxu0 0
    %1917 = vmatpush2.bf16.msra.mxu0 0
    %1918 = vmatprep.subr.bf16.mxu0 0
    %1919 = vmatpush2.bf16.msra.mxu0 0
    %1920 = vmatprep.subr.bf16.mxu0 0
    %1921 = vmatpush2.bf16.msra.mxu0 0
    %1922 = vmatprep.mubr.bf16.mxu0 0
    %1923 = vmatmul.mubr.bf16.gmra.mxu0 %v1737
    %v1924 = vpop.f32.mrf.mxu0
    %v1925 = vadd.f32 0.0, %v1924
    %v1926 = vpop.f32.mrf.mxu0
    %v1927 = vpop.f32.mrf.mxu0
    %v1928 = vpop.f32.mrf.mxu0
    %1929 = vdwg.mxu0
    %v1930 = vadd.f32 %v1846, %v1884
    %v1931 = vadd.f32 %v1847, %v1886
    %v1932 = vadd.f32 %v1930, %v242
    %v1933 = vadd.f32 %v1931, %v246
    %v1934 = vxor.u32 %v1932, 2147483648
    %v1935 = vxor.u32 %v1933, 2147483648
    %v1936 = vmul.f32 %v1934, 1.442695
    %v1937 = vpow.pop %v1936
    %v1938 = vmul.f32 %v1935, 1.442695
    %v1939 = vpow.pop %v1938
    %v1940 = vadd.f32 %v1937, 1.0
    %v1941 = vadd.f32 %v1939, 1.0
    %v1942 = vrcp.pop %v1940
    %v1943 = vmul.f32 1.0, %v1942
    %v1944 = vrcp.pop %v1941
    %v1945 = vmul.f32 1.0, %v1944
    %v1946 = vadd.f32 %v1848, %v267
    %v1947 = vadd.f32 %v1925, %v282
    %v1948 = vmul.f32 %v1943, %v1947
    %v1949 = vadd.f32 %v1946, %v1948
    %v1950 = vtanh.pop %v1949
    %v1951 = vsub.f32 1.0, %v1945
    %v1952 = vmul.f32 %v1951, %v1950
    %v1953 = vmul.f32 %v1945, %v1736
    %v1954 = vadd.f32 %v1952, %v1953
    %v1955 = vpack.c.bf16 %v1954, %v1954
    %v1956 = vpack.c.bf16 %v1843, %v1843
    %1957 = vmatprep.subr.bf16.mxu0 %v768
    %1958 = vmatpush1.bf16.msra.mxu0 %v767
    %1959 = vmatprep.subr.bf16.mxu0 %v764
    %1960 = vmatpush1.bf16.msra.mxu0 %v763
    %1961 = vmatprep.subr.bf16.mxu0 %v760
    %1962 = vmatpush1.bf16.msra.mxu0 %v759
    %1963 = vmatprep.subr.bf16.mxu0 %v756
    %1964 = vmatpush1.bf16.msra.mxu0 %v755
    %1965 = vmatprep.subr.bf16.mxu0 %v752
    %1966 = vmatpush1.bf16.msra.mxu0 %v751
    %1967 = vmatprep.subr.bf16.mxu0 %v748
    %1968 = vmatpush1.bf16.msra.mxu0 %v747
    %1969 = vmatprep.subr.bf16.mxu0 %v744
    %1970 = vmatpush1.bf16.msra.mxu0 %v743
    %1971 = vmatprep.subr.bf16.mxu0 %v740
    %1972 = vmatpush1.bf16.msra.mxu0 %v739
    %1973 = vmatprep.subr.bf16.mxu0 %v800
    %1974 = vmatpush2.bf16.msra.mxu0 %v799
    %1975 = vmatprep.subr.bf16.mxu0 %v796
    %1976 = vmatpush2.bf16.msra.mxu0 %v795
    %1977 = vmatprep.subr.bf16.mxu0 %v792
    %1978 = vmatpush2.bf16.msra.mxu0 %v791
    %1979 = vmatprep.subr.bf16.mxu0 %v788
    %1980 = vmatpush2.bf16.msra.mxu0 %v787
    %1981 = vmatprep.subr.bf16.mxu0 %v784
    %1982 = vmatpush2.bf16.msra.mxu0 %v783
    %1983 = vmatprep.subr.bf16.mxu0 %v780
    %1984 = vmatpush2.bf16.msra.mxu0 %v779
    %1985 = vmatprep.subr.bf16.mxu0 %v776
    %1986 = vmatpush2.bf16.msra.mxu0 %v775
    %1987 = vmatprep.subr.bf16.mxu0 %v772
    %1988 = vmatpush2.bf16.msra.mxu0 %v771
    %1989 = vmatprep.mubr.bf16.mxu0 %v1956
    %1990 = vmatmul.mubr.bf16.gmra.mxu0 %v1955
    %v1991 = vpop.f32.mrf.mxu0
    %v1992 = vadd.f32 0.0, %v1991
    %v1993 = vpop.f32.mrf.mxu0
    %v1994 = vadd.f32 0.0, %v1993
    %v1995 = vpop.f32.mrf.mxu0
    %v1996 = vpop.f32.mrf.mxu0
    %1997 = vdwg.mxu0
    %1998 = vmatprep.subr.bf16.mxu0 %v770
    %1999 = vmatpush1.bf16.msra.mxu0 %v769
    %2000 = vmatprep.subr.bf16.mxu0 %v766
    %2001 = vmatpush1.bf16.msra.mxu0 %v765
    %2002 = vmatprep.subr.bf16.mxu0 %v762
    %2003 = vmatpush1.bf16.msra.mxu0 %v761
    %2004 = vmatprep.subr.bf16.mxu0 %v758
    %2005 = vmatpush1.bf16.msra.mxu0 %v757
    %2006 = vmatprep.subr.bf16.mxu0 %v754
    %2007 = vmatpush1.bf16.msra.mxu0 %v753
    %2008 = vmatprep.subr.bf16.mxu0 %v750
    %2009 = vmatpush1.bf16.msra.mxu0 %v749
    %2010 = vmatprep.subr.bf16.mxu0 %v746
    %2011 = vmatpush1.bf16.msra.mxu0 %v745
    %2012 = vmatprep.subr.bf16.mxu0 %v742
    %2013 = vmatpush1.bf16.msra.mxu0 %v741
    %2014 = vmatprep.subr.bf16.mxu0 %v802
    %2015 = vmatpush2.bf16.msra.mxu0 %v801
    %2016 = vmatprep.subr.bf16.mxu0 %v798
    %2017 = vmatpush2.bf16.msra.mxu0 %v797
    %2018 = vmatprep.subr.bf16.mxu0 %v794
    %2019 = vmatpush2.bf16.msra.mxu0 %v793
    %2020 = vmatprep.subr.bf16.mxu0 %v790
    %2021 = vmatpush2.bf16.msra.mxu0 %v789
    %2022 = vmatprep.subr.bf16.mxu0 %v786
    %2023 = vmatpush2.bf16.msra.mxu0 %v785
    %2024 = vmatprep.subr.bf16.mxu0 %v782
    %2025 = vmatpush2.bf16.msra.mxu0 %v781
    %2026 = vmatprep.subr.bf16.mxu0 %v778
    %2027 = vmatpush2.bf16.msra.mxu0 %v777
    %2028 = vmatprep.subr.bf16.mxu0 %v774
    %2029 = vmatpush2.bf16.msra.mxu0 %v773
    %2030 = vmatprep.mubr.bf16.mxu0 %v1956
    %2031 = vmatmul.mubr.bf16.gmra.mxu0 %v1955
    %v2032 = vpop.f32.mrf.mxu0
    %v2033 = vadd.f32 0.0, %v2032
    %v2034 = vpop.f32.mrf.mxu0
    %v2035 = vadd.f32 0.0, %v2034
    %v2036 = vpop.f32.mrf.mxu0
    %v2037 = vpop.f32.mrf.mxu0
    %2038 = vdwg.mxu0
    %v2039 = vadd.f32 %v1992, %v255
    %v2040 = vadd.f32 %v1994, %v259
    %v2041 = vxor.u32 %v2039, 2147483648
    %v2042 = vxor.u32 %v2040, 2147483648
    %v2043 = vmul.f32 %v2041, 1.442695
    %v2044 = vpow.pop %v2043
    %v2045 = vmul.f32 %v2042, 1.442695
    %v2046 = vpow.pop %v2045
    %v2047 = vadd.f32 %v2044, 1.0
    %v2048 = vadd.f32 %v2046, 1.0
    %v2049 = vrcp.pop %v2047
    %v2050 = vmul.f32 1.0, %v2049
    %v2051 = vrcp.pop %v2048
    %v2052 = vmul.f32 1.0, %v2051
    %v2053 = vadd.f32 %v2033, %v275
    %v2054 = vadd.f32 %v2035, %v290
    %v2055 = vmul.f32 %v2050, %v2054
    %v2056 = vadd.f32 %v2053, %v2055
    %v2057 = vtanh.pop %v2056
    %v2058 = vsub.f32 1.0, %v2052
    %v2059 = vmul.f32 %v2058, %v2057
    %v2060 = vmul.f32 %v2052, %v1843
    %v2061 = vadd.f32 %v2059, %v2060
    %2062 = vst [vmem:[#allocation2 + $0x28] sm:$0xff] %v2061
    %s2063 = scalar_lea.vmem [#allocation3], 144
    %v2064 = vld [vmem:[%s2063] sm:$0xff]
    %v2065 = vld [vmem:[%s2063 + $0x8] sm:$0xff]
    %v2066 = vld [vmem:[%s2063 + $0x10] sm:$0xff]
    %2067 = vmatprep.subr.bf16.mxu0 %v413
    %2068 = vmatpush1.bf16.msra.mxu0 %v412
    %2069 = vmatprep.subr.bf16.mxu0 %v410
    %2070 = vmatpush1.bf16.msra.mxu0 %v409
    %2071 = vmatprep.subr.bf16.mxu0 %v407
    %2072 = vmatpush1.bf16.msra.mxu0 %v406
    %2073 = vmatprep.subr.bf16.mxu0 %v404
    %2074 = vmatpush1.bf16.msra.mxu0 %v403
    %2075 = vmatprep.subr.bf16.mxu0 %v401
    %2076 = vmatpush1.bf16.msra.mxu0 %v400
    %2077 = vmatprep.subr.bf16.mxu0 %v398
    %2078 = vmatpush1.bf16.msra.mxu0 %v397
    %2079 = vmatprep.subr.bf16.mxu0 %v395
    %2080 = vmatpush1.bf16.msra.mxu0 %v394
    %2081 = vmatprep.subr.bf16.mxu0 %v392
    %2082 = vmatpush1.bf16.msra.mxu0 %v391
    %2083 = vmatprep.subr.bf16.mxu0 0
    %2084 = vmatpush2.bf16.msra.mxu0 0
    %2085 = vmatprep.subr.bf16.mxu0 0
    %2086 = vmatpush2.bf16.msra.mxu0 0
    %2087 = vmatprep.subr.bf16.mxu0 0
    %2088 = vmatpush2.bf16.msra.mxu0 0
    %2089 = vmatprep.subr.bf16.mxu0 0
    %2090 = vmatpush2.bf16.msra.mxu0 0
    %2091 = vmatprep.subr.bf16.mxu0 0
    %2092 = vmatpush2.bf16.msra.mxu0 0
    %2093 = vmatprep.subr.bf16.mxu0 0
    %2094 = vmatpush2.bf16.msra.mxu0 0
    %2095 = vmatprep.subr.bf16.mxu0 0
    %2096 = vmatpush2.bf16.msra.mxu0 0
    %2097 = vmatprep.subr.bf16.mxu0 0
    %2098 = vmatpush2.bf16.msra.mxu0 0
    %2099 = vmatprep.mubr.bf16.mxu0 0
    %2100 = vmatmul.mubr.bf16.gmra.mxu0 %v1955
    %v2101 = vpop.f32.mrf.mxu0
    %v2102 = vadd.f32 0.0, %v2101
    %v2103 = vpop.f32.mrf.mxu0
    %v2104 = vadd.f32 0.0, %v2103
    %v2105 = vpop.f32.mrf.mxu0
    %v2106 = vpop.f32.mrf.mxu0
    %2107 = vdwg.mxu0
    %2108 = vmatprep.subr.bf16.mxu0 0
    %2109 = vmatpush1.bf16.msra.mxu0 %v414
    %2110 = vmatprep.subr.bf16.mxu0 0
    %2111 = vmatpush1.bf16.msra.mxu0 %v411
    %2112 = vmatprep.subr.bf16.mxu0 0
    %2113 = vmatpush1.bf16.msra.mxu0 %v408
    %2114 = vmatprep.subr.bf16.mxu0 0
    %2115 = vmatpush1.bf16.msra.mxu0 %v405
    %2116 = vmatprep.subr.bf16.mxu0 0
    %2117 = vmatpush1.bf16.msra.mxu0 %v402
    %2118 = vmatprep.subr.bf16.mxu0 0
    %2119 = vmatpush1.bf16.msra.mxu0 %v399
    %2120 = vmatprep.subr.bf16.mxu0 0
    %2121 = vmatpush1.bf16.msra.mxu0 %v396
    %2122 = vmatprep.subr.bf16.mxu0 0
    %2123 = vmatpush1.bf16.msra.mxu0 %v393
    %2124 = vmatprep.subr.bf16.mxu0 0
    %2125 = vmatpush2.bf16.msra.mxu0 0
    %2126 = vmatprep.subr.bf16.mxu0 0
    %2127 = vmatpush2.bf16.msra.mxu0 0
    %2128 = vmatprep.subr.bf16.mxu0 0
    %2129 = vmatpush2.bf16.msra.mxu0 0
    %2130 = vmatprep.subr.bf16.mxu0 0
    %2131 = vmatpush2.bf16.msra.mxu0 0
    %2132 = vmatprep.subr.bf16.mxu0 0
    %2133 = vmatpush2.bf16.msra.mxu0 0
    %2134 = vmatprep.subr.bf16.mxu0 0
    %2135 = vmatpush2.bf16.msra.mxu0 0
    %2136 = vmatprep.subr.bf16.mxu0 0
    %2137 = vmatpush2.bf16.msra.mxu0 0
    %2138 = vmatprep.subr.bf16.mxu0 0
    %2139 = vmatpush2.bf16.msra.mxu0 0
    %2140 = vmatprep.mubr.bf16.mxu0 0
    %2141 = vmatmul.mubr.bf16.gmra.mxu0 %v1955
    %v2142 = vpop.f32.mrf.mxu0
    %v2143 = vadd.f32 0.0, %v2142
    %v2144 = vpop.f32.mrf.mxu0
    %v2145 = vpop.f32.mrf.mxu0
    %v2146 = vpop.f32.mrf.mxu0
    %2147 = vdwg.mxu0
    %v2148 = vadd.f32 %v2064, %v2102
    %v2149 = vadd.f32 %v2065, %v2104
    %v2150 = vadd.f32 %v2148, %v242
    %v2151 = vadd.f32 %v2149, %v246
    %v2152 = vxor.u32 %v2150, 2147483648
    %v2153 = vxor.u32 %v2151, 2147483648
    %v2154 = vmul.f32 %v2152, 1.442695
    %v2155 = vpow.pop %v2154
    %v2156 = vmul.f32 %v2153, 1.442695
    %v2157 = vpow.pop %v2156
    %v2158 = vadd.f32 %v2155, 1.0
    %v2159 = vadd.f32 %v2157, 1.0
    %v2160 = vrcp.pop %v2158
    %v2161 = vmul.f32 1.0, %v2160
    %v2162 = vrcp.pop %v2159
    %v2163 = vmul.f32 1.0, %v2162
    %v2164 = vadd.f32 %v2066, %v267
    %v2165 = vadd.f32 %v2143, %v282
    %v2166 = vmul.f32 %v2161, %v2165
    %v2167 = vadd.f32 %v2164, %v2166
    %v2168 = vtanh.pop %v2167
    %v2169 = vsub.f32 1.0, %v2163
    %v2170 = vmul.f32 %v2169, %v2168
    %v2171 = vmul.f32 %v2163, %v1954
    %v2172 = vadd.f32 %v2170, %v2171
    %v2173 = vpack.c.bf16 %v2172, %v2172
    %v2174 = vpack.c.bf16 %v2061, %v2061
    %2175 = vmatprep.subr.bf16.mxu0 %v768
    %2176 = vmatpush1.bf16.msra.mxu0 %v767
    %2177 = vmatprep.subr.bf16.mxu0 %v764
    %2178 = vmatpush1.bf16.msra.mxu0 %v763
    %2179 = vmatprep.subr.bf16.mxu0 %v760
    %2180 = vmatpush1.bf16.msra.mxu0 %v759
    %2181 = vmatprep.subr.bf16.mxu0 %v756
    %2182 = vmatpush1.bf16.msra.mxu0 %v755
    %2183 = vmatprep.subr.bf16.mxu0 %v752
    %2184 = vmatpush1.bf16.msra.mxu0 %v751
    %2185 = vmatprep.subr.bf16.mxu0 %v748
    %2186 = vmatpush1.bf16.msra.mxu0 %v747
    %2187 = vmatprep.subr.bf16.mxu0 %v744
    %2188 = vmatpush1.bf16.msra.mxu0 %v743
    %2189 = vmatprep.subr.bf16.mxu0 %v740
    %2190 = vmatpush1.bf16.msra.mxu0 %v739
    %2191 = vmatprep.subr.bf16.mxu0 %v800
    %2192 = vmatpush2.bf16.msra.mxu0 %v799
    %2193 = vmatprep.subr.bf16.mxu0 %v796
    %2194 = vmatpush2.bf16.msra.mxu0 %v795
    %2195 = vmatprep.subr.bf16.mxu0 %v792
    %2196 = vmatpush2.bf16.msra.mxu0 %v791
    %2197 = vmatprep.subr.bf16.mxu0 %v788
    %2198 = vmatpush2.bf16.msra.mxu0 %v787
    %2199 = vmatprep.subr.bf16.mxu0 %v784
    %2200 = vmatpush2.bf16.msra.mxu0 %v783
    %2201 = vmatprep.subr.bf16.mxu0 %v780
    %2202 = vmatpush2.bf16.msra.mxu0 %v779
    %2203 = vmatprep.subr.bf16.mxu0 %v776
    %2204 = vmatpush2.bf16.msra.mxu0 %v775
    %2205 = vmatprep.subr.bf16.mxu0 %v772
    %2206 = vmatpush2.bf16.msra.mxu0 %v771
    %2207 = vmatprep.mubr.bf16.mxu0 %v2174
    %2208 = vmatmul.mubr.bf16.gmra.mxu0 %v2173
    %v2209 = vpop.f32.mrf.mxu0
    %v2210 = vadd.f32 0.0, %v2209
    %v2211 = vpop.f32.mrf.mxu0
    %v2212 = vadd.f32 0.0, %v2211
    %v2213 = vpop.f32.mrf.mxu0
    %v2214 = vpop.f32.mrf.mxu0
    %2215 = vdwg.mxu0
    %2216 = vmatprep.subr.bf16.mxu0 %v770
    %2217 = vmatpush1.bf16.msra.mxu0 %v769
    %2218 = vmatprep.subr.bf16.mxu0 %v766
    %2219 = vmatpush1.bf16.msra.mxu0 %v765
    %2220 = vmatprep.subr.bf16.mxu0 %v762
    %2221 = vmatpush1.bf16.msra.mxu0 %v761
    %2222 = vmatprep.subr.bf16.mxu0 %v758
    %2223 = vmatpush1.bf16.msra.mxu0 %v757
    %2224 = vmatprep.subr.bf16.mxu0 %v754
    %2225 = vmatpush1.bf16.msra.mxu0 %v753
    %2226 = vmatprep.subr.bf16.mxu0 %v750
    %2227 = vmatpush1.bf16.msra.mxu0 %v749
    %2228 = vmatprep.subr.bf16.mxu0 %v746
    %2229 = vmatpush1.bf16.msra.mxu0 %v745
    %2230 = vmatprep.subr.bf16.mxu0 %v742
    %2231 = vmatpush1.bf16.msra.mxu0 %v741
    %2232 = vmatprep.subr.bf16.mxu0 %v802
    %2233 = vmatpush2.bf16.msra.mxu0 %v801
    %2234 = vmatprep.subr.bf16.mxu0 %v798
    %2235 = vmatpush2.bf16.msra.mxu0 %v797
    %2236 = vmatprep.subr.bf16.mxu0 %v794
    %2237 = vmatpush2.bf16.msra.mxu0 %v793
    %2238 = vmatprep.subr.bf16.mxu0 %v790
    %2239 = vmatpush2.bf16.msra.mxu0 %v789
    %2240 = vmatprep.subr.bf16.mxu0 %v786
    %2241 = vmatpush2.bf16.msra.mxu0 %v785
    %2242 = vmatprep.subr.bf16.mxu0 %v782
    %2243 = vmatpush2.bf16.msra.mxu0 %v781
    %2244 = vmatprep.subr.bf16.mxu0 %v778
    %2245 = vmatpush2.bf16.msra.mxu0 %v777
    %2246 = vmatprep.subr.bf16.mxu0 %v774
    %2247 = vmatpush2.bf16.msra.mxu0 %v773
    %2248 = vmatprep.mubr.bf16.mxu0 %v2174
    %2249 = vmatmul.mubr.bf16.gmra.mxu0 %v2173
    %v2250 = vpop.f32.mrf.mxu0
    %v2251 = vadd.f32 0.0, %v2250
    %v2252 = vpop.f32.mrf.mxu0
    %v2253 = vadd.f32 0.0, %v2252
    %v2254 = vpop.f32.mrf.mxu0
    %v2255 = vpop.f32.mrf.mxu0
    %2256 = vdwg.mxu0
    %v2257 = vadd.f32 %v2210, %v255
    %v2258 = vadd.f32 %v2212, %v259
    %v2259 = vxor.u32 %v2257, 2147483648
    %v2260 = vxor.u32 %v2258, 2147483648
    %v2261 = vmul.f32 %v2259, 1.442695
    %v2262 = vpow.pop %v2261
    %v2263 = vmul.f32 %v2260, 1.442695
    %v2264 = vpow.pop %v2263
    %v2265 = vadd.f32 %v2262, 1.0
    %v2266 = vadd.f32 %v2264, 1.0
    %v2267 = vrcp.pop %v2265
    %v2268 = vmul.f32 1.0, %v2267
    %v2269 = vrcp.pop %v2266
    %v2270 = vmul.f32 1.0, %v2269
    %v2271 = vadd.f32 %v2251, %v275
    %v2272 = vadd.f32 %v2253, %v290
    %v2273 = vmul.f32 %v2268, %v2272
    %v2274 = vadd.f32 %v2271, %v2273
    %v2275 = vtanh.pop %v2274
    %v2276 = vsub.f32 1.0, %v2270
    %v2277 = vmul.f32 %v2276, %v2275
    %v2278 = vmul.f32 %v2270, %v2061
    %v2279 = vadd.f32 %v2277, %v2278
    %2280 = vst [vmem:[#allocation2 + $0x30] sm:$0xff] %v2279
    %s2281 = scalar_lea.vmem [#allocation3], 168
    %v2282 = vld [vmem:[%s2281] sm:$0xff]
    %v2283 = vld [vmem:[%s2281 + $0x8] sm:$0xff]
    %v2284 = vld [vmem:[%s2281 + $0x10] sm:$0xff]
    %2285 = vmatprep.subr.bf16.mxu0 %v413
    %2286 = vmatpush1.bf16.msra.mxu0 %v412
    %2287 = vmatprep.subr.bf16.mxu0 %v410
    %2288 = vmatpush1.bf16.msra.mxu0 %v409
    %2289 = vmatprep.subr.bf16.mxu0 %v407
    %2290 = vmatpush1.bf16.msra.mxu0 %v406
    %2291 = vmatprep.subr.bf16.mxu0 %v404
    %2292 = vmatpush1.bf16.msra.mxu0 %v403
    %2293 = vmatprep.subr.bf16.mxu0 %v401
    %2294 = vmatpush1.bf16.msra.mxu0 %v400
    %2295 = vmatprep.subr.bf16.mxu0 %v398
    %2296 = vmatpush1.bf16.msra.mxu0 %v397
    %2297 = vmatprep.subr.bf16.mxu0 %v395
    %2298 = vmatpush1.bf16.msra.mxu0 %v394
    %2299 = vmatprep.subr.bf16.mxu0 %v392
    %2300 = vmatpush1.bf16.msra.mxu0 %v391
    %2301 = vmatprep.subr.bf16.mxu0 0
    %2302 = vmatpush2.bf16.msra.mxu0 0
    %2303 = vmatprep.subr.bf16.mxu0 0
    %2304 = vmatpush2.bf16.msra.mxu0 0
    %2305 = vmatprep.subr.bf16.mxu0 0
    %2306 = vmatpush2.bf16.msra.mxu0 0
    %2307 = vmatprep.subr.bf16.mxu0 0
    %2308 = vmatpush2.bf16.msra.mxu0 0
    %2309 = vmatprep.subr.bf16.mxu0 0
    %2310 = vmatpush2.bf16.msra.mxu0 0
    %2311 = vmatprep.subr.bf16.mxu0 0
    %2312 = vmatpush2.bf16.msra.mxu0 0
    %2313 = vmatprep.subr.bf16.mxu0 0
    %2314 = vmatpush2.bf16.msra.mxu0 0
    %2315 = vmatprep.subr.bf16.mxu0 0
    %2316 = vmatpush2.bf16.msra.mxu0 0
    %2317 = vmatprep.mubr.bf16.mxu0 0
    %2318 = vmatmul.mubr.bf16.gmra.mxu0 %v2173
    %v2319 = vpop.f32.mrf.mxu0
    %v2320 = vadd.f32 0.0, %v2319
    %v2321 = vpop.f32.mrf.mxu0
    %v2322 = vadd.f32 0.0, %v2321
    %v2323 = vpop.f32.mrf.mxu0
    %v2324 = vpop.f32.mrf.mxu0
    %2325 = vdwg.mxu0
    %2326 = vmatprep.subr.bf16.mxu0 0
    %2327 = vmatpush1.bf16.msra.mxu0 %v414
    %2328 = vmatprep.subr.bf16.mxu0 0
    %2329 = vmatpush1.bf16.msra.mxu0 %v411
    %2330 = vmatprep.subr.bf16.mxu0 0
    %2331 = vmatpush1.bf16.msra.mxu0 %v408
    %2332 = vmatprep.subr.bf16.mxu0 0
    %2333 = vmatpush1.bf16.msra.mxu0 %v405
    %2334 = vmatprep.subr.bf16.mxu0 0
    %2335 = vmatpush1.bf16.msra.mxu0 %v402
    %2336 = vmatprep.subr.bf16.mxu0 0
    %2337 = vmatpush1.bf16.msra.mxu0 %v399
    %2338 = vmatprep.subr.bf16.mxu0 0
    %2339 = vmatpush1.bf16.msra.mxu0 %v396
    %2340 = vmatprep.subr.bf16.mxu0 0
    %2341 = vmatpush1.bf16.msra.mxu0 %v393
    %2342 = vmatprep.subr.bf16.mxu0 0
    %2343 = vmatpush2.bf16.msra.mxu0 0
    %2344 = vmatprep.subr.bf16.mxu0 0
    %2345 = vmatpush2.bf16.msra.mxu0 0
    %2346 = vmatprep.subr.bf16.mxu0 0
    %2347 = vmatpush2.bf16.msra.mxu0 0
    %2348 = vmatprep.subr.bf16.mxu0 0
    %2349 = vmatpush2.bf16.msra.mxu0 0
    %2350 = vmatprep.subr.bf16.mxu0 0
    %2351 = vmatpush2.bf16.msra.mxu0 0
    %2352 = vmatprep.subr.bf16.mxu0 0
    %2353 = vmatpush2.bf16.msra.mxu0 0
    %2354 = vmatprep.subr.bf16.mxu0 0
    %2355 = vmatpush2.bf16.msra.mxu0 0
    %2356 = vmatprep.subr.bf16.mxu0 0
    %2357 = vmatpush2.bf16.msra.mxu0 0
    %2358 = vmatprep.mubr.bf16.mxu0 0
    %2359 = vmatmul.mubr.bf16.gmra.mxu0 %v2173
    %v2360 = vpop.f32.mrf.mxu0
    %v2361 = vadd.f32 0.0, %v2360
    %v2362 = vpop.f32.mrf.mxu0
    %v2363 = vpop.f32.mrf.mxu0
    %v2364 = vpop.f32.mrf.mxu0
    %2365 = vdwg.mxu0
    %v2366 = vadd.f32 %v2282, %v2320
    %v2367 = vadd.f32 %v2283, %v2322
    %v2368 = vadd.f32 %v2366, %v242
    %v2369 = vadd.f32 %v2367, %v246
    %v2370 = vxor.u32 %v2368, 2147483648
    %v2371 = vxor.u32 %v2369, 2147483648
    %v2372 = vmul.f32 %v2370, 1.442695
    %v2373 = vpow.pop %v2372
    %v2374 = vmul.f32 %v2371, 1.442695
    %v2375 = vpow.pop %v2374
    %v2376 = vadd.f32 %v2373, 1.0
    %v2377 = vadd.f32 %v2375, 1.0
    %v2378 = vrcp.pop %v2376
    %v2379 = vmul.f32 1.0, %v2378
    %v2380 = vrcp.pop %v2377
    %v2381 = vmul.f32 1.0, %v2380
    %v2382 = vadd.f32 %v2284, %v267
    %v2383 = vadd.f32 %v2361, %v282
    %v2384 = vmul.f32 %v2379, %v2383
    %v2385 = vadd.f32 %v2382, %v2384
    %v2386 = vtanh.pop %v2385
    %v2387 = vsub.f32 1.0, %v2381
    %v2388 = vmul.f32 %v2387, %v2386
    %v2389 = vmul.f32 %v2381, %v2172
    %v2390 = vadd.f32 %v2388, %v2389
    %v2391 = vpack.c.bf16 %v2390, %v2390
    %v2392 = vpack.c.bf16 %v2279, %v2279
    %2393 = vmatprep.subr.bf16.mxu0 %v768
    %2394 = vmatpush1.bf16.msra.mxu0 %v767
    %2395 = vmatprep.subr.bf16.mxu0 %v764
    %2396 = vmatpush1.bf16.msra.mxu0 %v763
    %2397 = vmatprep.subr.bf16.mxu0 %v760
    %2398 = vmatpush1.bf16.msra.mxu0 %v759
    %2399 = vmatprep.subr.bf16.mxu0 %v756
    %2400 = vmatpush1.bf16.msra.mxu0 %v755
    %2401 = vmatprep.subr.bf16.mxu0 %v752
    %2402 = vmatpush1.bf16.msra.mxu0 %v751
    %2403 = vmatprep.subr.bf16.mxu0 %v748
    %2404 = vmatpush1.bf16.msra.mxu0 %v747
    %2405 = vmatprep.subr.bf16.mxu0 %v744
    %2406 = vmatpush1.bf16.msra.mxu0 %v743
    %2407 = vmatprep.subr.bf16.mxu0 %v740
    %2408 = vmatpush1.bf16.msra.mxu0 %v739
    %2409 = vmatprep.subr.bf16.mxu0 %v800
    %2410 = vmatpush2.bf16.msra.mxu0 %v799
    %2411 = vmatprep.subr.bf16.mxu0 %v796
    %2412 = vmatpush2.bf16.msra.mxu0 %v795
    %2413 = vmatprep.subr.bf16.mxu0 %v792
    %2414 = vmatpush2.bf16.msra.mxu0 %v791
    %2415 = vmatprep.subr.bf16.mxu0 %v788
    %2416 = vmatpush2.bf16.msra.mxu0 %v787
    %2417 = vmatprep.subr.bf16.mxu0 %v784
    %2418 = vmatpush2.bf16.msra.mxu0 %v783
    %2419 = vmatprep.subr.bf16.mxu0 %v780
    %2420 = vmatpush2.bf16.msra.mxu0 %v779
    %2421 = vmatprep.subr.bf16.mxu0 %v776
    %2422 = vmatpush2.bf16.msra.mxu0 %v775
    %2423 = vmatprep.subr.bf16.mxu0 %v772
    %2424 = vmatpush2.bf16.msra.mxu0 %v771
    %2425 = vmatprep.mubr.bf16.mxu0 %v2392
    %2426 = vmatmul.mubr.bf16.gmra.mxu0 %v2391
    %v2427 = vpop.f32.mrf.mxu0
    %v2428 = vadd.f32 0.0, %v2427
    %v2429 = vpop.f32.mrf.mxu0
    %v2430 = vadd.f32 0.0, %v2429
    %v2431 = vpop.f32.mrf.mxu0
    %v2432 = vpop.f32.mrf.mxu0
    %2433 = vdwg.mxu0
    %2434 = vmatprep.subr.bf16.mxu0 %v770
    %2435 = vmatpush1.bf16.msra.mxu0 %v769
    %2436 = vmatprep.subr.bf16.mxu0 %v766
    %2437 = vmatpush1.bf16.msra.mxu0 %v765
    %2438 = vmatprep.subr.bf16.mxu0 %v762
    %2439 = vmatpush1.bf16.msra.mxu0 %v761
    %2440 = vmatprep.subr.bf16.mxu0 %v758
    %2441 = vmatpush1.bf16.msra.mxu0 %v757
    %2442 = vmatprep.subr.bf16.mxu0 %v754
    %2443 = vmatpush1.bf16.msra.mxu0 %v753
    %2444 = vmatprep.subr.bf16.mxu0 %v750
    %2445 = vmatpush1.bf16.msra.mxu0 %v749
    %2446 = vmatprep.subr.bf16.mxu0 %v746
    %2447 = vmatpush1.bf16.msra.mxu0 %v745
    %2448 = vmatprep.subr.bf16.mxu0 %v742
    %2449 = vmatpush1.bf16.msra.mxu0 %v741
    %2450 = vmatprep.subr.bf16.mxu0 %v802
    %2451 = vmatpush2.bf16.msra.mxu0 %v801
    %2452 = vmatprep.subr.bf16.mxu0 %v798
    %2453 = vmatpush2.bf16.msra.mxu0 %v797
    %2454 = vmatprep.subr.bf16.mxu0 %v794
    %2455 = vmatpush2.bf16.msra.mxu0 %v793
    %2456 = vmatprep.subr.bf16.mxu0 %v790
    %2457 = vmatpush2.bf16.msra.mxu0 %v789
    %2458 = vmatprep.subr.bf16.mxu0 %v786
    %2459 = vmatpush2.bf16.msra.mxu0 %v785
    %2460 = vmatprep.subr.bf16.mxu0 %v782
    %2461 = vmatpush2.bf16.msra.mxu0 %v781
    %2462 = vmatprep.subr.bf16.mxu0 %v778
    %2463 = vmatpush2.bf16.msra.mxu0 %v777
    %2464 = vmatprep.subr.bf16.mxu0 %v774
    %2465 = vmatpush2.bf16.msra.mxu0 %v773
    %2466 = vmatprep.mubr.bf16.mxu0 %v2392
    %2467 = vmatmul.mubr.bf16.gmra.mxu0 %v2391
    %v2468 = vpop.f32.mrf.mxu0
    %v2469 = vadd.f32 0.0, %v2468
    %v2470 = vpop.f32.mrf.mxu0
    %v2471 = vadd.f32 0.0, %v2470
    %v2472 = vpop.f32.mrf.mxu0
    %v2473 = vpop.f32.mrf.mxu0
    %2474 = vdwg.mxu0
    %v2475 = vadd.f32 %v2428, %v255
    %v2476 = vadd.f32 %v2430, %v259
    %v2477 = vxor.u32 %v2475, 2147483648
    %v2478 = vxor.u32 %v2476, 2147483648
    %v2479 = vmul.f32 %v2477, 1.442695
    %v2480 = vpow.pop %v2479
    %v2481 = vmul.f32 %v2478, 1.442695
    %v2482 = vpow.pop %v2481
    %v2483 = vadd.f32 %v2480, 1.0
    %v2484 = vadd.f32 %v2482, 1.0
    %v2485 = vrcp.pop %v2483
    %v2486 = vmul.f32 1.0, %v2485
    %v2487 = vrcp.pop %v2484
    %v2488 = vmul.f32 1.0, %v2487
    %v2489 = vadd.f32 %v2469, %v275
    %v2490 = vadd.f32 %v2471, %v290
    %v2491 = vmul.f32 %v2486, %v2490
    %v2492 = vadd.f32 %v2489, %v2491
    %v2493 = vtanh.pop %v2492
    %v2494 = vsub.f32 1.0, %v2488
    %v2495 = vmul.f32 %v2494, %v2493
    %v2496 = vmul.f32 %v2488, %v2279
    %v2497 = vadd.f32 %v2495, %v2496
    %2498 = vst [vmem:[#allocation2 + $0x38] sm:$0xff] %v2497
    %2499 = vst [vmem:[#allocation14] sm:$0xff] %v2390
    %s2500 = scalar_lea.vmem [#allocation14], 8
    %2501 = vst [vmem:[%s2500] sm:$0xff] %v2497
    %v2502 = vld [vmem:[#allocation2] sm:$0xff]
    %v2503 = vld [vmem:[#allocation2 + $0x8] sm:$0xff]
    %v2504 = vld [vmem:[#allocation2 + $0x10] sm:$0xff]
    %v2505 = vld [vmem:[#allocation2 + $0x18] sm:$0xff]
    %v2506 = vld [vmem:[#allocation2 + $0x20] sm:$0xff]
    %v2507 = vld [vmem:[#allocation2 + $0x28] sm:$0xff]
    %v2508 = vld [vmem:[#allocation2 + $0x30] sm:$0xff]
    %v2509 = vld [vmem:[#allocation2 + $0x38] sm:$0xff]
    %v2510 = vpack.c.bf16 %v2503, %v2502
    %v2511 = vpack.c.bf16 %v2505, %v2504
    %v2512 = vpack.c.bf16 %v2507, %v2506
    %v2513 = vpack.c.bf16 %v2509, %v2508
    %v2530 = vunpack.c.l.b16 %v221
    %v2531 = vunpack.c.h.b16 %v221
    %v2532 = vunpack.c.l.b16 %v222
    %v2533 = vunpack.c.h.b16 %v222
    %v2534 = vunpack.c.l.b16 %v223
    %v2535 = vunpack.c.h.b16 %v223
    %v2536 = vunpack.c.l.b16 %v224
    %v2537 = vunpack.c.h.b16 %v224
    %v2538 = vunpack.c.l.b16 %v225
    %v2539 = vunpack.c.h.b16 %v225
    %v2540 = vunpack.c.l.b16 %v226
    %v2541 = vunpack.c.h.b16 %v226
    %v2542 = vunpack.c.l.b16 %v227
    %v2543 = vunpack.c.h.b16 %v227
    %v2544 = vunpack.c.l.b16 %v228
    %v2545 = vunpack.c.h.b16 %v228
    %v2546 = vunpack.c.l.b16 %v229
    %v2547 = vunpack.c.h.b16 %v229
    %v2548 = vunpack.c.l.b16 %v230
    %v2549 = vunpack.c.h.b16 %v230
    %v2550 = vunpack.c.l.b16 %v231
    %v2551 = vunpack.c.h.b16 %v231
    %v2552 = vunpack.c.l.b16 %v232
    %v2553 = vunpack.c.h.b16 %v232
    %v2554 = vunpack.c.l.b16 %v233
    %v2555 = vunpack.c.h.b16 %v233
    %v2556 = vunpack.c.l.b16 %v234
    %v2557 = vunpack.c.h.b16 %v234
    %v2558 = vunpack.c.l.b16 %v235
    %v2559 = vunpack.c.h.b16 %v235
    %v2560 = vunpack.c.l.b16 %v236
    %v2561 = vunpack.c.h.b16 %v236
    %v2562 = vpack.c.b16 %v2532, %v2530
    %v2563 = vpack.c.b16 %v2533, %v2531
    %v2564 = vpack.c.b16 %v2536, %v2534
    %v2565 = vpack.c.b16 %v2537, %v2535
    %v2566 = vpack.c.b16 %v2540, %v2538
    %v2567 = vpack.c.b16 %v2541, %v2539
    %v2568 = vpack.c.b16 %v2544, %v2542
    %v2569 = vpack.c.b16 %v2545, %v2543
    %v2570 = vpack.c.b16 %v2548, %v2546
    %v2571 = vpack.c.b16 %v2549, %v2547
    %v2572 = vpack.c.b16 %v2552, %v2550
    %v2573 = vpack.c.b16 %v2553, %v2551
    %v2574 = vpack.c.b16 %v2556, %v2554
    %v2575 = vpack.c.b16 %v2557, %v2555
    %v2576 = vpack.c.b16 %v2560, %v2558
    %v2577 = vpack.c.b16 %v2561, %v2559
    %2594 = vmatprep.subr.bf16.mxu0 %v2577
    %2595 = vmatpush1.bf16.msra.mxu0 %v2576
    %2596 = vmatprep.subr.bf16.mxu0 %v2575
    %2597 = vmatpush1.bf16.msra.mxu0 %v2574
    %2598 = vmatprep.subr.bf16.mxu0 %v2573
    %2599 = vmatpush1.bf16.msra.mxu0 %v2572
    %2600 = vmatprep.subr.bf16.mxu0 %v2571
    %2601 = vmatpush1.bf16.msra.mxu0 %v2570
    %2602 = vmatprep.subr.bf16.mxu0 %v2569
    %2603 = vmatpush1.bf16.msra.mxu0 %v2568
    %2604 = vmatprep.subr.bf16.mxu0 %v2567
    %2605 = vmatpush1.bf16.msra.mxu0 %v2566
    %2606 = vmatprep.subr.bf16.mxu0 %v2565
    %2607 = vmatpush1.bf16.msra.mxu0 %v2564
    %2608 = vmatprep.subr.bf16.mxu0 %v2563
    %2609 = vmatpush1.bf16.msra.mxu0 %v2562
    %2610 = vmatprep.subr.bf16.mxu0 0
    %2611 = vmatpush2.bf16.msra.mxu0 0
    %2612 = vmatprep.subr.bf16.mxu0 0
    %2613 = vmatpush2.bf16.msra.mxu0 0
    %2614 = vmatprep.subr.bf16.mxu0 0
    %2615 = vmatpush2.bf16.msra.mxu0 0
    %2616 = vmatprep.subr.bf16.mxu0 0
    %2617 = vmatpush2.bf16.msra.mxu0 0
    %2618 = vmatprep.subr.bf16.mxu0 0
    %2619 = vmatpush2.bf16.msra.mxu0 0
    %2620 = vmatprep.subr.bf16.mxu0 0
    %2621 = vmatpush2.bf16.msra.mxu0 0
    %2622 = vmatprep.subr.bf16.mxu0 0
    %2623 = vmatpush2.bf16.msra.mxu0 0
    %2624 = vmatprep.subr.bf16.mxu0 0
    %2625 = vmatpush2.bf16.msra.mxu0 0
    %2626 = vmatprep.mubr.bf16.mxu0 0
    %2627 = vmatmul.mubr.bf16.gmra.mxu0 %v2510
    %v2628 = vpop.f32.mrf.mxu0
    %v2629 = vadd.f32 %v297, %v2628
    %v2630 = vpop.f32.mrf.mxu0
    %v2631 = vadd.f32 %v301, %v2630
    %v2632 = vpop.f32.mrf.mxu0
    %v2633 = vadd.f32 %v297, %v2632
    %v2634 = vpop.f32.mrf.mxu0
    %v2635 = vadd.f32 %v301, %v2634
    %2636 = vmatprep.mubr.bf16.mxu0 0
    %2637 = vmatmul.mubr.bf16.gmra.mxu0 %v2511
    %v2638 = vpop.f32.mrf.mxu0
    %v2639 = vadd.f32 %v297, %v2638
    %v2640 = vpop.f32.mrf.mxu0
    %v2641 = vadd.f32 %v301, %v2640
    %v2642 = vpop.f32.mrf.mxu0
    %v2643 = vadd.f32 %v297, %v2642
    %v2644 = vpop.f32.mrf.mxu0
    %v2645 = vadd.f32 %v301, %v2644
    %2646 = vmatprep.mubr.bf16.mxu0 0
    %2647 = vmatmul.mubr.bf16.gmra.mxu0 %v2512
    %v2648 = vpop.f32.mrf.mxu0
    %v2649 = vadd.f32 %v297, %v2648
    %v2650 = vpop.f32.mrf.mxu0
    %v2651 = vadd.f32 %v301, %v2650
    %v2652 = vpop.f32.mrf.mxu0
    %v2653 = vadd.f32 %v297, %v2652
    %v2654 = vpop.f32.mrf.mxu0
    %v2655 = vadd.f32 %v301, %v2654
    %2656 = vmatprep.mubr.bf16.mxu0 0
    %2657 = vmatmul.mubr.bf16.gmra.mxu0 %v2513
    %v2658 = vpop.f32.mrf.mxu0
    %v2659 = vadd.f32 %v297, %v2658
    %v2660 = vpop.f32.mrf.mxu0
    %v2661 = vadd.f32 %v301, %v2660
    %v2662 = vpop.f32.mrf.mxu0
    %v2663 = vadd.f32 %v297, %v2662
    %v2664 = vpop.f32.mrf.mxu0
    %v2665 = vadd.f32 %v301, %v2664
    %2666 = vdwg.mxu0
    %v2667 = vmax.f32 %v2629, 0.0
    %v2668 = vmax.f32 %v2631, 0.0
    %v2669 = vmax.f32 %v2633, 0.0
    %v2670 = vmax.f32 %v2635, 0.0
    %v2671 = vmax.f32 %v2639, 0.0
    %v2672 = vmax.f32 %v2641, 0.0
    %v2673 = vmax.f32 %v2643, 0.0
    %v2674 = vmax.f32 %v2645, 0.0
    %v2675 = vmax.f32 %v2649, 0.0
    %v2676 = vmax.f32 %v2651, 0.0
    %v2677 = vmax.f32 %v2653, 0.0
    %v2678 = vmax.f32 %v2655, 0.0
    %v2679 = vmax.f32 %v2659, 0.0
    %v2680 = vmax.f32 %v2661, 0.0
    %v2681 = vmax.f32 %v2663, 0.0
    %v2682 = vmax.f32 %v2665, 0.0
    %v2683 = vmul.f32 %v2668, 0.5
    %v2684 = vmul.f32 %v2670, 0.5
    %v2685 = vmul.f32 %v2672, 0.5
    %v2686 = vmul.f32 %v2674, 0.5
    %v2687 = vmul.f32 %v2676, 0.5
    %v2688 = vmul.f32 %v2678, 0.5
    %v2689 = vmul.f32 %v2680, 0.5
    %v2690 = vmul.f32 %v2682, 0.5
    %v2691 = vmul.f32 %v2683, 1.442695
    %v2692 = vpow.pop %v2691
    %v2693 = vmul.f32 %v2684, 1.442695
    %v2694 = vpow.pop %v2693
    %v2695 = vmul.f32 %v2685, 1.442695
    %v2696 = vpow.pop %v2695
    %v2697 = vmul.f32 %v2686, 1.442695
    %v2698 = vpow.pop %v2697
    %v2699 = vmul.f32 %v2687, 1.442695
    %v2700 = vpow.pop %v2699
    %v2701 = vmul.f32 %v2688, 1.442695
    %v2702 = vpow.pop %v2701
    %v2703 = vmul.f32 %v2689, 1.442695
    %v2704 = vpow.pop %v2703
    %v2705 = vmul.f32 %v2690, 1.442695
    %v2706 = vpow.pop %v2705
    %v2707 = vld [vmem:[#allocation6] sm:$0xff]
    %v2708 = vld [vmem:[#allocation6 + $0x8] sm:$0xff]
    %v2709 = vld [vmem:[#allocation6 + $0x10] sm:$0xff]
    %v2710 = vld [vmem:[#allocation6 + $0x18] sm:$0xff]
    %v2711 = vld [vmem:[#allocation6 + $0x20] sm:$0xff]
    %v2712 = vld [vmem:[#allocation6 + $0x28] sm:$0xff]
    %v2713 = vld [vmem:[#allocation6 + $0x30] sm:$0xff]
    %v2714 = vld [vmem:[#allocation6 + $0x38] sm:$0xff]
    %v2715 = vmul.f32 %v2707, %v2692
    %v2716 = vmul.f32 %v2708, %v2694
    %v2717 = vmul.f32 %v2709, %v2696
    %v2718 = vmul.f32 %v2710, %v2698
    %v2719 = vmul.f32 %v2711, %v2700
    %v2720 = vmul.f32 %v2712, %v2702
    %v2721 = vmul.f32 %v2713, %v2704
    %v2722 = vmul.f32 %v2714, %v2706
    %v2723 = vadd.f32 %v2715, %v2667
    %v2724 = vadd.f32 %v2716, %v2669
    %v2725 = vadd.f32 %v2717, %v2671
    %v2726 = vadd.f32 %v2718, %v2673
    %v2727 = vadd.f32 %v2719, %v2675
    %v2728 = vadd.f32 %v2720, %v2677
    %v2729 = vadd.f32 %v2721, %v2679
    %v2730 = vadd.f32 %v2722, %v2681
    %2731 = vst [vmem:[#allocation15] sm:$0xff] %v2723
    %2732 = vst [vmem:[#allocation15 + $0x8] sm:$0xff] %v2724
    %2733 = vst [vmem:[#allocation15 + $0x10] sm:$0xff] %v2725
    %2734 = vst [vmem:[#allocation15 + $0x18] sm:$0xff] %v2726
    %2735 = vst [vmem:[#allocation15 + $0x20] sm:$0xff] %v2727
    %2736 = vst [vmem:[#allocation15 + $0x28] sm:$0xff] %v2728
    %2737 = vst [vmem:[#allocation15 + $0x30] sm:$0xff] %v2729
    %2738 = vst [vmem:[#allocation15 + $0x38] sm:$0xff] %v2730
    %2739 = vst [vmem:[#allocation17] sm:$0xff] %v2667
    %2740 = vst [vmem:[#allocation17 + $0x8] sm:$0xff] %v2669
    %2741 = vst [vmem:[#allocation17 + $0x10] sm:$0xff] %v2671
    %2742 = vst [vmem:[#allocation17 + $0x18] sm:$0xff] %v2673
    %2743 = vst [vmem:[#allocation17 + $0x20] sm:$0xff] %v2675
    %2744 = vst [vmem:[#allocation17 + $0x28] sm:$0xff] %v2677
    %2745 = vst [vmem:[#allocation17 + $0x30] sm:$0xff] %v2679
    %2746 = vst [vmem:[#allocation17 + $0x38] sm:$0xff] %v2681
    %2747 = vst [vmem:[#allocation18] sm:$0xff] %v2668
    %2748 = vst [vmem:[#allocation18 + $0x8] sm:$0xff] %v2670
    %2749 = vst [vmem:[#allocation18 + $0x10] sm:$0xff] %v2672
    %2750 = vst [vmem:[#allocation18 + $0x18] sm:$0xff] %v2674
    %2751 = vst [vmem:[#allocation18 + $0x20] sm:$0xff] %v2676
    %2752 = vst [vmem:[#allocation18 + $0x28] sm:$0xff] %v2678
    %2753 = vst [vmem:[#allocation18 + $0x30] sm:$0xff] %v2680
    %2754 = vst [vmem:[#allocation18 + $0x38] sm:$0xff] %v2682
    // Predicated region
    $region66: #{tpu_custom_call.1} parent=1 // pred_check
      _
    $region67: #{tpu_custom_call.1} parent=1 // pred_check_branch
      %2756 = sbr.rel (0) target = $region69
    $region68: #{tpu_custom_call.1} parent=1 // pred_region
      %s2758 = ssub.s32 256, 256
      %2759 = vsyncadd [#allocation5], %s2758
      %s2760 = sshll.u32 [#allocation14], 4
      %s2761 = int_to_ptr.vmem [resolvable:$true] %s2760
      %2766 = dma.vmem_to_hbm [thread:$0]  %s2761, 256, %s10, [#allocation5], 128, 128, 8
    $region69: #{tpu_custom_call.1} parent=1 // pred_fallthru
      _
    // Predicated region
    $region70: #{tpu_custom_call.1} parent=1 // pred_check
      _
    $region71: #{tpu_custom_call.1} parent=1 // pred_check_branch
      %2768 = sbr.rel (0) target = $region73
    $region72: #{tpu_custom_call.1} parent=1 // pred_region
      %s2770 = ssub.s32 1024, 1024
      %2771 = vsyncadd [#allocation16], %s2770
      %s2772 = sshll.u32 [#allocation15], 4
      %s2773 = int_to_ptr.vmem [resolvable:$true] %s2772
      %2778 = dma.vmem_to_hbm [thread:$0]  %s2773, 1024, %s11, [#allocation16], 128, 128, 8
    $region73: #{tpu_custom_call.1} parent=1 // pred_fallthru
      _
    // Predicated region
    $region74: #{tpu_custom_call.1} parent=1 // pred_check
      _
    $region75: #{tpu_custom_call.1} parent=1 // pred_check_branch
      %2780 = sbr.rel (0) target = $region77
    $region76: #{tpu_custom_call.1} parent=1 // pred_region
      %s2782 = ssub.s32 1024, 1024
      %2783 = vsyncadd [#allocation16], %s2782
      %s2784 = sshll.u32 [#allocation17], 4
      %s2785 = int_to_ptr.vmem [resolvable:$true] %s2784
      %2790 = dma.vmem_to_hbm [thread:$0]  %s2785, 1024, %s12, [#allocation16], 128, 128, 8
    $region77: #{tpu_custom_call.1} parent=1 // pred_fallthru
      _
    // Predicated region
    $region78: #{tpu_custom_call.1} parent=1 // pred_check
      _
    $region79: #{tpu_custom_call.1} parent=1 // pred_check_branch
      %2792 = sbr.rel (0) target = $region81
    $region80: #{tpu_custom_call.1} parent=1 // pred_region
      %s2794 = ssub.s32 1024, 1024
      %2795 = vsyncadd [#allocation19], %s2794
      %s2796 = sshll.u32 [#allocation18], 4
      %s2797 = int_to_ptr.vmem [resolvable:$true] %s2796
      %2802 = dma.vmem_to_hbm [thread:$0]  %s2797, 1024, %s13, [#allocation19], 128, 128, 8
    $region81: #{tpu_custom_call.1} parent=1 // pred_fallthru
      _
    // Predicated region
    $region82: #{tpu_custom_call.1} parent=1 // pred_check
      _
    $region83: #{tpu_custom_call.1} parent=1 // pred_check_branch
      %2804 = sbr.rel (0) target = $region85
    $region84: #{tpu_custom_call.1} parent=1 // pred_region
      %2805 = dma.done [#allocation5], 256
    $region85: #{tpu_custom_call.1} parent=1 // pred_fallthru
      _
    // Predicated region
    $region86: #{tpu_custom_call.1} parent=1 // pred_check
      _
    $region87: #{tpu_custom_call.1} parent=1 // pred_check_branch
      %2807 = sbr.rel (0) target = $region89
    $region88: #{tpu_custom_call.1} parent=1 // pred_region
      %2808 = dma.done [#allocation16], 1024
    $region89: #{tpu_custom_call.1} parent=1 // pred_fallthru
      _
    // Predicated region
    $region90: #{tpu_custom_call.1} parent=1 // pred_check
      _
    $region91: #{tpu_custom_call.1} parent=1 // pred_check_branch
      %2810 = sbr.rel (0) target = $region93
    $region92: #{tpu_custom_call.1} parent=1 // pred_region
      %2811 = dma.done [#allocation16], 1024
    $region93: #{tpu_custom_call.1} parent=1 // pred_fallthru
      _
    // Predicated region
    $region94: #{tpu_custom_call.1} parent=1 // pred_check
      _
    $region95: #{tpu_custom_call.1} parent=1 // pred_check_branch
      %2813 = sbr.rel (0) target = $region97
    $region96: #{tpu_custom_call.1} parent=1 // pred_region
      %2814 = dma.done [#allocation19], 1024
    $region97: #{tpu_custom_call.1} parent=1 // pred_fallthru
      _
    %2815 = vsyncpa [#allocation4], 1
    %2816 = vsyncpa [#allocation7], 1
    %2817 = vsyncpa [#allocation10], 1
    %2818 = vsyncpa [#allocation13], 1
    %2819 = vsyncpa [#allocation5], 1
    %2820 = vsyncpa [#allocation16], 1
    %2821 = vsyncpa [#allocation19], 1

</llo_original>
